<compile_context>
chip_gen: v5e
topology: v5e:2x2
jax: 0.10.0
libtpu: 0.0.40
codegen_flags: <defaults>
</compile_context>

<pallas_src>
import math

import jax
import jax.numpy as jnp
from jax.experimental import pallas as pl
from jax.experimental.pallas import tpu as pltpu

# Small deterministic hyperparameters (scaled down from the PyTorch defaults
# ninp=300, nhid=150, nlayers=4; structure is identical).
VOCAB = 50
NINP = 64          # == 2*NHID so every LSTM layer sees the same input width
NHID = 32
NLAYERS = 2
NUM_CLASSES = 15
BATCH = 2
SEQ = 8


def _sigmoid(z):
    return 1.0 / (1.0 + jnp.exp(-z))


def _bilstm_fused_kernel(x_ref, wih_ref, whh_ref, b_ref, h0_ref, c0_ref,
                         watt_ref, batt_ref, wfc_ref, bfc_ref,
                         y_ref, act_ref):
    """Fused bidirectional multi-layer LSTM + attention head.

    x_ref:    (S*B, NINP)   time-major flattened embedded input (row = t*B + b)
    wih_ref:  (L, NINP, 8H) [W_ih_fwd | W_ih_bwd], PyTorch gate order i,f,g,o
    whh_ref:  (L, 2H, 8H)   blockdiag(W_hh_fwd, W_hh_bwd)
    b_ref:    (L, 1, 8H)    [b_ih_f+b_hh_f | b_ih_b+b_hh_b]
    h0_ref/c0_ref: (2L,B,H) initial states (PyTorch layout: 2l fwd, 2l+1 bwd)
    watt/batt, wfc/bfc:     attention Linear and fc Linear (pre-transposed)
    y_ref:    (B, NUM_CLASSES)
    act_ref:  VMEM scratch (S*B, 2H) carrying the inter-layer activation.
    """
    nlayers = wih_ref.shape[0]
    batch = h0_ref.shape[1]
    hid = h0_ref.shape[2]
    seq = x_ref.shape[0] // batch
    g4 = 4 * hid

    h_acc = jnp.zeros((batch, hid), jnp.float32)   # sum of final h over layers & dirs
    outs_f = [None] * seq
    outs_b = [None] * seq

    for l in range(nlayers):
        # ---- input projection for the whole sequence and BOTH directions, hoisted
        # out of the serial recurrence: one (S*B,Din) @ (Din,8H) MXU call + bias.
        x_all = x_ref[...] if l == 0 else act_ref[...]                     # (S*B, Din)
        xw = jnp.dot(x_all, wih_ref[l],
                     preferred_element_type=jnp.float32) + b_ref[l]        # (S*B, 8H)

        h_f = h0_ref[2 * l]
        h_b = h0_ref[2 * l + 1]
        c_f = c0_ref[2 * l]
        c_b = c0_ref[2 * l + 1]
        h_fb = jnp.concatenate([h_f, h_b], axis=1)                         # (B, 2H)
        whh = whh_ref[l]                                                   # (2H, 8H)

        # ---- fully unrolled recurrence: forward walks t, backward walks seq-1-t;
        # one block-diagonal matmul serves both directions each step.
        for t in range(seq):
            tr = seq - 1 - t
            grec = jnp.dot(h_fb, whh, preferred_element_type=jnp.float32)  # (B, 8H)
            gf = xw[t * batch:(t + 1) * batch, 0:g4] + grec[:, 0:g4]
            gb = xw[tr * batch:(tr + 1) * batch, g4:2 * g4] + grec[:, g4:2 * g4]

            i_f = _sigmoid(gf[:, 0:hid])
            f_f = _sigmoid(gf[:, hid:2 * hid])
            g_f = jnp.tanh(gf[:, 2 * hid:3 * hid])
            o_f = _sigmoid(gf[:, 3 * hid:4 * hid])
            c_f = f_f * c_f + i_f * g_f
            h_f = o_f * jnp.tanh(c_f)

            i_b = _sigmoid(gb[:, 0:hid])
            f_b = _sigmoid(gb[:, hid:2 * hid])
            g_b = jnp.tanh(gb[:, 2 * hid:3 * hid])
            o_b = _sigmoid(gb[:, 3 * hid:4 * hid])
            c_b = f_b * c_b + i_b * g_b
            h_b = o_b * jnp.tanh(c_b)

            h_fb = jnp.concatenate([h_f, h_b], axis=1)

            if l == nlayers - 1:
                # last layer: keep per-position outputs as values for the head
                outs_f[t] = h_f
                outs_b[tr] = h_b
            else:
                # VMEM-resident inter-layer activation (never round-trips HBM)
                act_ref[t * batch:(t + 1) * batch, 0:hid] = h_f
                act_ref[tr * batch:(tr + 1) * batch, hid:2 * hid] = h_b

        h_acc = h_acc + h_f + h_b        # final hidden state of each direction

    # ---- head: attention (Linear+ReLU, bmm, softmax, bmm) + fc + Softmax(dim=1)
    osum_seq = [outs_f[s] + outs_b[s] for s in range(seq)]                 # fwd+bwd, S x (B,H)
    osum_flat = jnp.concatenate(osum_seq, axis=1)                          # (B, S*H) lane-dense

    attw = jnp.dot(h_acc, watt_ref[...],
                   preferred_element_type=jnp.float32) + batt_ref[...]
    attw = jnp.maximum(attw, 0.0)                                          # (B, H)

    # scores[b,s] = <attw[b], out_sum[b,s]> via one MXU matmul with a constant
    # group-sum matrix (avoids per-position cross-lane reductions).
    attw_rep = jnp.concatenate([attw] * seq, axis=1)                       # (B, S*H)
    j_idx = jax.lax.broadcasted_iota(jnp.int32, (seq * hid, seq), 0)
    s_idx = jax.lax.broadcasted_iota(jnp.int32, (seq * hid, seq), 1)
    seg_s = jnp.logical_and(j_idx >= s_idx * hid,
                            j_idx < (s_idx + 1) * hid).astype(jnp.float32)  # (S*H, S)
    scores = jnp.dot(osum_flat * attw_rep, seg_s,
                     preferred_element_type=jnp.float32)                   # (B, S)

    scores = scores - jnp.max(scores, axis=-1, keepdims=True)
    p = jnp.exp(scores)
    p = p / jnp.sum(p, axis=-1, keepdims=True)                             # softmax over S

    ctx = jnp.zeros((batch, hid), jnp.float32)
    for s in range(seq):
        ctx = ctx + p[:, s:s + 1] * osum_seq[s]                            # (B, H)

    logits = jnp.dot(ctx, wfc_ref[...],
                     preferred_element_type=jnp.float32) + bfc_ref[...]    # (B, C)
    logits = logits - jnp.max(logits, axis=-1, keepdims=True)
    e = jnp.exp(logits)
    y_ref[...] = e / jnp.sum(e, axis=-1, keepdims=True)                    # Softmax(dim=1)


_VMEM_SPEC = pl.BlockSpec(memory_space=pltpu.MemorySpace.VMEM)


def bilstm_forward(tokens, params, h0, c0):
    # Embedding lookup (gather) -- plain-JAX glue in front of the single fused kernel.
    emb = jnp.take(params["embed"], tokens, axis=0)                        # (B, S, NINP)
    x_flat = jnp.transpose(emb, (1, 0, 2)).reshape(SEQ * BATCH, NINP)      # time-major rows
    x_flat = x_flat.astype(jnp.float32)

    return pl.pallas_call(
        _bilstm_fused_kernel,
        out_shape=jax.ShapeDtypeStruct((BATCH, NUM_CLASSES), jnp.float32),
        in_specs=[_VMEM_SPEC] * 10,
        out_specs=_VMEM_SPEC,
        scratch_shapes=[pltpu.VMEM((SEQ * BATCH, 2 * NHID), jnp.float32)],
    )(x_flat, params["wih"], params["whh"], params["b"], h0, c0,
      params["watt"], params["batt"], params["wfc"], params["bfc"])


def init_params(key):
    """Parameters pre-packed for the fused kernel (PyTorch gate order i,f,g,o):
       wih[l] = [W_ih_fwd | W_ih_bwd]           (NINP, 8H)
       whh[l] = blockdiag(W_hh_fwd, W_hh_bwd)   (2H, 8H)
       b[l]   = [b_ih_f+b_hh_f | b_ih_b+b_hh_b] (1, 8H)
    """
    assert NINP == 2 * NHID, "per-layer weight stacking assumes ninp == 2*nhid"
    keys = iter(jax.random.split(key, 3 + 6 * NLAYERS))
    scale = 1.0 / math.sqrt(NHID)
    params = {
        "embed": jax.random.normal(next(keys), (VOCAB, NINP), jnp.float32) * 0.1,
        "watt": jax.random.normal(next(keys), (NHID, NHID), jnp.float32) * 0.1,
        "batt": jnp.zeros((1, NHID), jnp.float32),
        "wfc": jax.random.normal(next(keys), (NHID, NUM_CLASSES), jnp.float32) * 0.1,
        "bfc": jnp.zeros((1, NUM_CLASSES), jnp.float32),
    }
    wih_l, whh_l, b_l = [], [], []
    for l in range(NLAYERS):
        din = NINP if l == 0 else 2 * NHID
        wih_f = jax.random.uniform(next(keys), (din, 4 * NHID), jnp.float32, -scale, scale)
        whh_f = jax.random.uniform(next(keys), (NHID, 4 * NHID), jnp.float32, -scale, scale)
        b_f = jax.random.uniform(next(keys), (1, 4 * NHID), jnp.float32, -scale, scale)
        wih_b = jax.random.uniform(next(keys), (din, 4 * NHID), jnp.float32, -scale, scale)
        whh_b = jax.random.uniform(next(keys), (NHID, 4 * NHID), jnp.float32, -scale, scale)
        b_b = jax.random.uniform(next(keys), (1, 4 * NHID), jnp.float32, -scale, scale)

        wih_l.append(jnp.concatenate([wih_f, wih_b], axis=1))              # (Din, 8H)
        bd = jnp.zeros((2 * NHID, 8 * NHID), jnp.float32)
        bd = bd.at[:NHID, :4 * NHID].set(whh_f)
        bd = bd.at[NHID:, 4 * NHID:].set(whh_b)
        whh_l.append(bd)                                                   # (2H, 8H)
        b_l.append(jnp.concatenate([b_f, b_b], axis=1))                    # (1, 8H)

    params["wih"] = jnp.stack(wih_l)
    params["whh"] = jnp.stack(whh_l)
    params["b"] = jnp.stack(b_l)
    return params


if __name__ == "__main__":
    key = jax.random.PRNGKey(0)
    kp, kt, kh, kc = jax.random.split(key, 4)
    params = init_params(kp)
    tokens = jax.random.randint(kt, (BATCH, SEQ), 0, VOCAB, dtype=jnp.int32)
    # forward() draws random h_0 / c_0 -- generated deterministically here.
    h0 = jax.random.normal(kh, (2 * NLAYERS, BATCH, NHID), jnp.float32)
    c0 = jax.random.normal(kc, (2 * NLAYERS, BATCH, NHID), jnp.float32)

    y = jax.jit(bilstm_forward)(tokens, params, h0, c0)
    y = jax.block_until_ready(y)
    assert y.shape == (BATCH, NUM_CLASSES)
    assert bool(jnp.all(jnp.isfinite(y)))
    print("KERNEL_OK")
</pallas_src>

<mosaic_0001>
module attributes {stable_mosaic.version = 11 : i64} {
  func.func @_bilstm_fused_kernel(%arg0: memref<16x64xf32, #tpu.memory_space<vmem>>, %arg1: memref<2x64x256xf32, #tpu.memory_space<vmem>>, %arg2: memref<2x64x256xf32, #tpu.memory_space<vmem>>, %arg3: memref<2x1x256xf32, #tpu.memory_space<vmem>>, %arg4: memref<4x2x32xf32, #tpu.memory_space<vmem>>, %arg5: memref<4x2x32xf32, #tpu.memory_space<vmem>>, %arg6: memref<32x32xf32, #tpu.memory_space<vmem>>, %arg7: memref<1x32xf32, #tpu.memory_space<vmem>>, %arg8: memref<32x15xf32, #tpu.memory_space<vmem>>, %arg9: memref<1x15xf32, #tpu.memory_space<vmem>>, %arg10: memref<2x15xf32, #tpu.memory_space<vmem>>, %arg11: memref<16x64xf32, #tpu.memory_space<vmem>>) attributes {dimension_semantics = [], scalar_prefetch = 0 : i64, scratch_operands = 1 : i64, tpu.core_type = #tpu.core_type<tc>} {
    %cst = arith.constant 0.000000e+00 : f32
    %0 = vector.broadcast %cst : f32 to vector<2x32xf32>
    %c0 = arith.constant 0 : index
    %c0_0 = arith.constant 0 : index
    %1 = vector.load %arg0[%c0, %c0_0] : memref<16x64xf32, #tpu.memory_space<vmem>>, vector<16x64xf32>
    %c0_1 = arith.constant 0 : index
    %c0_2 = arith.constant 0 : index
    %c0_3 = arith.constant 0 : index
    %2 = vector.load %arg1[%c0_1, %c0_2, %c0_3] : memref<2x64x256xf32, #tpu.memory_space<vmem>>, vector<1x64x256xf32>
    %3 = vector.shape_cast %2 : vector<1x64x256xf32> to vector<64x256xf32>
    %cst_4 = arith.constant dense<0.000000e+00> : vector<16x256xf32>
    %4 = tpu.matmul %1, %3, %cst_4 {dimension_numbers = #tpu.dot_dimension_numbers<[1], [0], [0], [1], [0, 0, 1, 1], [], []>} : vector<16x64xf32>, vector<64x256xf32>, vector<16x256xf32> -> vector<16x256xf32>
    %c0_5 = arith.constant 0 : index
    %c0_6 = arith.constant 0 : index
    %c0_7 = arith.constant 0 : index
    %5 = vector.load %arg3[%c0_5, %c0_6, %c0_7] : memref<2x1x256xf32, #tpu.memory_space<vmem>>, vector<1x1x256xf32>
    %6 = vector.shape_cast %5 : vector<1x1x256xf32> to vector<1x256xf32>
    %7 = vector.broadcast %6 : vector<1x256xf32> to vector<16x256xf32>
    %8 = arith.addf %4, %7 : vector<16x256xf32>
    %c0_8 = arith.constant 0 : index
    %c0_9 = arith.constant 0 : index
    %c0_10 = arith.constant 0 : index
    %9 = vector.load %arg4[%c0_8, %c0_9, %c0_10] : memref<4x2x32xf32, #tpu.memory_space<vmem>>, vector<1x2x32xf32>
    %10 = vector.shape_cast %9 : vector<1x2x32xf32> to vector<2x32xf32>
    %c1 = arith.constant 1 : index
    %c0_11 = arith.constant 0 : index
    %c0_12 = arith.constant 0 : index
    %11 = vector.load %arg4[%c1, %c0_11, %c0_12] : memref<4x2x32xf32, #tpu.memory_space<vmem>>, vector<1x2x32xf32>
    %12 = vector.shape_cast %11 : vector<1x2x32xf32> to vector<2x32xf32>
    %c0_13 = arith.constant 0 : index
    %c0_14 = arith.constant 0 : index
    %c0_15 = arith.constant 0 : index
    %13 = vector.load %arg5[%c0_13, %c0_14, %c0_15] : memref<4x2x32xf32, #tpu.memory_space<vmem>>, vector<1x2x32xf32>
    %14 = vector.shape_cast %13 : vector<1x2x32xf32> to vector<2x32xf32>
    %c1_16 = arith.constant 1 : index
    %c0_17 = arith.constant 0 : index
    %c0_18 = arith.constant 0 : index
    %15 = vector.load %arg5[%c1_16, %c0_17, %c0_18] : memref<4x2x32xf32, #tpu.memory_space<vmem>>, vector<1x2x32xf32>
    %16 = vector.shape_cast %15 : vector<1x2x32xf32> to vector<2x32xf32>
    %17 = tpu.concatenate %10, %12 in 1 : vector<2x32xf32>, vector<2x32xf32> -> vector<2x64xf32>
    %c0_19 = arith.constant 0 : index
    %c0_20 = arith.constant 0 : index
    %c0_21 = arith.constant 0 : index
    %18 = vector.load %arg2[%c0_19, %c0_20, %c0_21] : memref<2x64x256xf32, #tpu.memory_space<vmem>>, vector<1x64x256xf32>
    %19 = vector.shape_cast %18 : vector<1x64x256xf32> to vector<64x256xf32>
    %cst_22 = arith.constant dense<0.000000e+00> : vector<2x256xf32>
    %20 = tpu.matmul %17, %19, %cst_22 {dimension_numbers = #tpu.dot_dimension_numbers<[1], [0], [0], [1], [0, 0, 1, 1], [], []>} : vector<2x64xf32>, vector<64x256xf32>, vector<2x256xf32> -> vector<2x256xf32>
    %21 = vector.extract_strided_slice %8 {offsets = [0, 0], sizes = [2, 128], strides = [1, 1]} : vector<16x256xf32> to vector<2x128xf32>
    %22 = vector.extract_strided_slice %20 {offsets = [0, 0], sizes = [2, 128], strides = [1, 1]} : vector<2x256xf32> to vector<2x128xf32>
    %23 = arith.addf %21, %22 : vector<2x128xf32>
    %24 = vector.extract_strided_slice %8 {offsets = [14, 128], sizes = [2, 128], strides = [1, 1]} : vector<16x256xf32> to vector<2x128xf32>
    %25 = vector.extract_strided_slice %20 {offsets = [0, 128], sizes = [2, 128], strides = [1, 1]} : vector<2x256xf32> to vector<2x128xf32>
    %26 = arith.addf %24, %25 : vector<2x128xf32>
    %27 = vector.extract_strided_slice %23 {offsets = [0, 0], sizes = [2, 32], strides = [1, 1]} : vector<2x128xf32> to vector<2x32xf32>
    %cst_23 = arith.constant 0.000000e+00 : f32
    %28 = vector.broadcast %cst_23 : f32 to vector<2x32xf32>
    %29 = arith.subf %28, %27 : vector<2x32xf32>
    %30 = math.exp %29 : vector<2x32xf32>
    %cst_24 = arith.constant 1.000000e+00 : f32
    %31 = vector.broadcast %cst_24 : f32 to vector<2x32xf32>
    %32 = arith.addf %31, %30 : vector<2x32xf32>
    %cst_25 = arith.constant 1.000000e+00 : f32
    %33 = vector.broadcast %cst_25 : f32 to vector<2x32xf32>
    %34 = arith.divf %33, %32 : vector<2x32xf32>
    %35 = vector.extract_strided_slice %23 {offsets = [0, 32], sizes = [2, 32], strides = [1, 1]} : vector<2x128xf32> to vector<2x32xf32>
    %cst_26 = arith.constant 0.000000e+00 : f32
    %36 = vector.broadcast %cst_26 : f32 to vector<2x32xf32>
    %37 = arith.subf %36, %35 : vector<2x32xf32>
    %38 = math.exp %37 : vector<2x32xf32>
    %cst_27 = arith.constant 1.000000e+00 : f32
    %39 = vector.broadcast %cst_27 : f32 to vector<2x32xf32>
    %40 = arith.addf %39, %38 : vector<2x32xf32>
    %cst_28 = arith.constant 1.000000e+00 : f32
    %41 = vector.broadcast %cst_28 : f32 to vector<2x32xf32>
    %42 = arith.divf %41, %40 : vector<2x32xf32>
    %43 = vector.extract_strided_slice %23 {offsets = [0, 64], sizes = [2, 32], strides = [1, 1]} : vector<2x128xf32> to vector<2x32xf32>
    %44 = math.tanh %43 : vector<2x32xf32>
    %45 = vector.extract_strided_slice %23 {offsets = [0, 96], sizes = [2, 32], strides = [1, 1]} : vector<2x128xf32> to vector<2x32xf32>
    %cst_29 = arith.constant 0.000000e+00 : f32
    %46 = vector.broadcast %cst_29 : f32 to vector<2x32xf32>
    %47 = arith.subf %46, %45 : vector<2x32xf32>
    %48 = math.exp %47 : vector<2x32xf32>
    %cst_30 = arith.constant 1.000000e+00 : f32
    %49 = vector.broadcast %cst_30 : f32 to vector<2x32xf32>
    %50 = arith.addf %49, %48 : vector<2x32xf32>
    %cst_31 = arith.constant 1.000000e+00 : f32
    %51 = vector.broadcast %cst_31 : f32 to vector<2x32xf32>
    %52 = arith.divf %51, %50 : vector<2x32xf32>
    %53 = arith.mulf %42, %14 : vector<2x32xf32>
    %54 = arith.mulf %34, %44 : vector<2x32xf32>
    %55 = arith.addf %53, %54 : vector<2x32xf32>
    %56 = math.tanh %55 : vector<2x32xf32>
    %57 = arith.mulf %52, %56 : vector<2x32xf32>
    %58 = vector.extract_strided_slice %26 {offsets = [0, 0], sizes = [2, 32], strides = [1, 1]} : vector<2x128xf32> to vector<2x32xf32>
    %cst_32 = arith.constant 0.000000e+00 : f32
    %59 = vector.broadcast %cst_32 : f32 to vector<2x32xf32>
    %60 = arith.subf %59, %58 : vector<2x32xf32>
    %61 = math.exp %60 : vector<2x32xf32>
    %cst_33 = arith.constant 1.000000e+00 : f32
    %62 = vector.broadcast %cst_33 : f32 to vector<2x32xf32>
    %63 = arith.addf %62, %61 : vector<2x32xf32>
    %cst_34 = arith.constant 1.000000e+00 : f32
    %64 = vector.broadcast %cst_34 : f32 to vector<2x32xf32>
    %65 = arith.divf %64, %63 : vector<2x32xf32>
    %66 = vector.extract_strided_slice %26 {offsets = [0, 32], sizes = [2, 32], strides = [1, 1]} : vector<2x128xf32> to vector<2x32xf32>
    %cst_35 = arith.constant 0.000000e+00 : f32
    %67 = vector.broadcast %cst_35 : f32 to vector<2x32xf32>
    %68 = arith.subf %67, %66 : vector<2x32xf32>
    %69 = math.exp %68 : vector<2x32xf32>
    %cst_36 = arith.constant 1.000000e+00 : f32
    %70 = vector.broadcast %cst_36 : f32 to vector<2x32xf32>
    %71 = arith.addf %70, %69 : vector<2x32xf32>
    %cst_37 = arith.constant 1.000000e+00 : f32
    %72 = vector.broadcast %cst_37 : f32 to vector<2x32xf32>
    %73 = arith.divf %72, %71 : vector<2x32xf32>
    %74 = vector.extract_strided_slice %26 {offsets = [0, 64], sizes = [2, 32], strides = [1, 1]} : vector<2x128xf32> to vector<2x32xf32>
    %75 = math.tanh %74 : vector<2x32xf32>
    %76 = vector.extract_strided_slice %26 {offsets = [0, 96], sizes = [2, 32], strides = [1, 1]} : vector<2x128xf32> to vector<2x32xf32>
    %cst_38 = arith.constant 0.000000e+00 : f32
    %77 = vector.broadcast %cst_38 : f32 to vector<2x32xf32>
    %78 = arith.subf %77, %76 : vector<2x32xf32>
    %79 = math.exp %78 : vector<2x32xf32>
    %cst_39 = arith.constant 1.000000e+00 : f32
    %80 = vector.broadcast %cst_39 : f32 to vector<2x32xf32>
    %81 = arith.addf %80, %79 : vector<2x32xf32>
    %cst_40 = arith.constant 1.000000e+00 : f32
    %82 = vector.broadcast %cst_40 : f32 to vector<2x32xf32>
    %83 = arith.divf %82, %81 : vector<2x32xf32>
    %84 = arith.mulf %73, %16 : vector<2x32xf32>
    %85 = arith.mulf %65, %75 : vector<2x32xf32>
    %86 = arith.addf %84, %85 : vector<2x32xf32>
    %87 = math.tanh %86 : vector<2x32xf32>
    %88 = arith.mulf %83, %87 : vector<2x32xf32>
    %89 = tpu.concatenate %57, %88 in 1 : vector<2x32xf32>, vector<2x32xf32> -> vector<2x64xf32>
    %c0_41 = arith.constant 0 : index
    %c0_42 = arith.constant 0 : index
    %90 = vector.load %arg11[%c0_41, %c0_42] : memref<16x64xf32, #tpu.memory_space<vmem>>, vector<2x32xf32>
    tpu.vector_store %arg11[%c0_41, %c0_42], %57 {strides = array<i32>} : memref<16x64xf32, #tpu.memory_space<vmem>>, vector<2x32xf32>,
    %c14 = arith.constant 14 : index
    %c32 = arith.constant 32 : index
    %91 = vector.load %arg11[%c14, %c32] : memref<16x64xf32, #tpu.memory_space<vmem>>, vector<2x32xf32>
    tpu.vector_store %arg11[%c14, %c32], %88 {strides = array<i32>} : memref<16x64xf32, #tpu.memory_space<vmem>>, vector<2x32xf32>,
    %cst_43 = arith.constant dense<0.000000e+00> : vector<2x256xf32>
    %92 = tpu.matmul %89, %19, %cst_43 {dimension_numbers = #tpu.dot_dimension_numbers<[1], [0], [0], [1], [0, 0, 1, 1], [], []>} : vector<2x64xf32>, vector<64x256xf32>, vector<2x256xf32> -> vector<2x256xf32>
    %93 = vector.extract_strided_slice %8 {offsets = [2, 0], sizes = [2, 128], strides = [1, 1]} : vector<16x256xf32> to vector<2x128xf32>
    %94 = vector.extract_strided_slice %92 {offsets = [0, 0], sizes = [2, 128], strides = [1, 1]} : vector<2x256xf32> to vector<2x128xf32>
    %95 = arith.addf %93, %94 : vector<2x128xf32>
    %96 = vector.extract_strided_slice %8 {offsets = [12, 128], sizes = [2, 128], strides = [1, 1]} : vector<16x256xf32> to vector<2x128xf32>
    %97 = vector.extract_strided_slice %92 {offsets = [0, 128], sizes = [2, 128], strides = [1, 1]} : vector<2x256xf32> to vector<2x128xf32>
    %98 = arith.addf %96, %97 : vector<2x128xf32>
    %99 = vector.extract_strided_slice %95 {offsets = [0, 0], sizes = [2, 32], strides = [1, 1]} : vector<2x128xf32> to vector<2x32xf32>
    %cst_44 = arith.constant 0.000000e+00 : f32
    %100 = vector.broadcast %cst_44 : f32 to vector<2x32xf32>
    %101 = arith.subf %100, %99 : vector<2x32xf32>
    %102 = math.exp %101 : vector<2x32xf32>
    %cst_45 = arith.constant 1.000000e+00 : f32
    %103 = vector.broadcast %cst_45 : f32 to vector<2x32xf32>
    %104 = arith.addf %103, %102 : vector<2x32xf32>
    %cst_46 = arith.constant 1.000000e+00 : f32
    %105 = vector.broadcast %cst_46 : f32 to vector<2x32xf32>
    %106 = arith.divf %105, %104 : vector<2x32xf32>
    %107 = vector.extract_strided_slice %95 {offsets = [0, 32], sizes = [2, 32], strides = [1, 1]} : vector<2x128xf32> to vector<2x32xf32>
    %cst_47 = arith.constant 0.000000e+00 : f32
    %108 = vector.broadcast %cst_47 : f32 to vector<2x32xf32>
    %109 = arith.subf %108, %107 : vector<2x32xf32>
    %110 = math.exp %109 : vector<2x32xf32>
    %cst_48 = arith.constant 1.000000e+00 : f32
    %111 = vector.broadcast %cst_48 : f32 to vector<2x32xf32>
    %112 = arith.addf %111, %110 : vector<2x32xf32>
    %cst_49 = arith.constant 1.000000e+00 : f32
    %113 = vector.broadcast %cst_49 : f32 to vector<2x32xf32>
    %114 = arith.divf %113, %112 : vector<2x32xf32>
    %115 = vector.extract_strided_slice %95 {offsets = [0, 64], sizes = [2, 32], strides = [1, 1]} : vector<2x128xf32> to vector<2x32xf32>
    %116 = math.tanh %115 : vector<2x32xf32>
    %117 = vector.extract_strided_slice %95 {offsets = [0, 96], sizes = [2, 32], strides = [1, 1]} : vector<2x128xf32> to vector<2x32xf32>
    %cst_50 = arith.constant 0.000000e+00 : f32
    %118 = vector.broadcast %cst_50 : f32 to vector<2x32xf32>
    %119 = arith.subf %118, %117 : vector<2x32xf32>
    %120 = math.exp %119 : vector<2x32xf32>
    %cst_51 = arith.constant 1.000000e+00 : f32
    %121 = vector.broadcast %cst_51 : f32 to vector<2x32xf32>
    %122 = arith.addf %121, %120 : vector<2x32xf32>
    %cst_52 = arith.constant 1.000000e+00 : f32
    %123 = vector.broadcast %cst_52 : f32 to vector<2x32xf32>
    %124 = arith.divf %123, %122 : vector<2x32xf32>
    %125 = arith.mulf %114, %55 : vector<2x32xf32>
    %126 = arith.mulf %106, %116 : vector<2x32xf32>
    %127 = arith.addf %125, %126 : vector<2x32xf32>
    %128 = math.tanh %127 : vector<2x32xf32>
    %129 = arith.mulf %124, %128 : vector<2x32xf32>
    %130 = vector.extract_strided_slice %98 {offsets = [0, 0], sizes = [2, 32], strides = [1, 1]} : vector<2x128xf32> to vector<2x32xf32>
    %cst_53 = arith.constant 0.000000e+00 : f32
    %131 = vector.broadcast %cst_53 : f32 to vector<2x32xf32>
    %132 = arith.subf %131, %130 : vector<2x32xf32>
    %133 = math.exp %132 : vector<2x32xf32>
    %cst_54 = arith.constant 1.000000e+00 : f32
    %134 = vector.broadcast %cst_54 : f32 to vector<2x32xf32>
    %135 = arith.addf %134, %133 : vector<2x32xf32>
    %cst_55 = arith.constant 1.000000e+00 : f32
    %136 = vector.broadcast %cst_55 : f32 to vector<2x32xf32>
    %137 = arith.divf %136, %135 : vector<2x32xf32>
    %138 = vector.extract_strided_slice %98 {offsets = [0, 32], sizes = [2, 32], strides = [1, 1]} : vector<2x128xf32> to vector<2x32xf32>
    %cst_56 = arith.constant 0.000000e+00 : f32
    %139 = vector.broadcast %cst_56 : f32 to vector<2x32xf32>
    %140 = arith.subf %139, %138 : vector<2x32xf32>
    %141 = math.exp %140 : vector<2x32xf32>
    %cst_57 = arith.constant 1.000000e+00 : f32
    %142 = vector.broadcast %cst_57 : f32 to vector<2x32xf32>
    %143 = arith.addf %142, %141 : vector<2x32xf32>
    %cst_58 = arith.constant 1.000000e+00 : f32
    %144 = vector.broadcast %cst_58 : f32 to vector<2x32xf32>
    %145 = arith.divf %144, %143 : vector<2x32xf32>
    %146 = vector.extract_strided_slice %98 {offsets = [0, 64], sizes = [2, 32], strides = [1, 1]} : vector<2x128xf32> to vector<2x32xf32>
    %147 = math.tanh %146 : vector<2x32xf32>
    %148 = vector.extract_strided_slice %98 {offsets = [0, 96], sizes = [2, 32], strides = [1, 1]} : vector<2x128xf32> to vector<2x32xf32>
    %cst_59 = arith.constant 0.000000e+00 : f32
    %149 = vector.broadcast %cst_59 : f32 to vector<2x32xf32>
    %150 = arith.subf %149, %148 : vector<2x32xf32>
    %151 = math.exp %150 : vector<2x32xf32>
    %cst_60 = arith.constant 1.000000e+00 : f32
    %152 = vector.broadcast %cst_60 : f32 to vector<2x32xf32>
    %153 = arith.addf %152, %151 : vector<2x32xf32>
    %cst_61 = arith.constant 1.000000e+00 : f32
    %154 = vector.broadcast %cst_61 : f32 to vector<2x32xf32>
    %155 = arith.divf %154, %153 : vector<2x32xf32>
    %156 = arith.mulf %145, %86 : vector<2x32xf32>
    %157 = arith.mulf %137, %147 : vector<2x32xf32>
    %158 = arith.addf %156, %157 : vector<2x32xf32>
    %159 = math.tanh %158 : vector<2x32xf32>
    %160 = arith.mulf %155, %159 : vector<2x32xf32>
    %161 = tpu.concatenate %129, %160 in 1 : vector<2x32xf32>, vector<2x32xf32> -> vector<2x64xf32>
    %c2 = arith.constant 2 : index
    %c0_62 = arith.constant 0 : index
    %162 = vector.load %arg11[%c2, %c0_62] : memref<16x64xf32, #tpu.memory_space<vmem>>, vector<2x32xf32>
    tpu.vector_store %arg11[%c2, %c0_62], %129 {strides = array<i32>} : memref<16x64xf32, #tpu.memory_space<vmem>>, vector<2x32xf32>,
    %c12 = arith.constant 12 : index
    %c32_63 = arith.constant 32 : index
    %163 = vector.load %arg11[%c12, %c32_63] : memref<16x64xf32, #tpu.memory_space<vmem>>, vector<2x32xf32>
    tpu.vector_store %arg11[%c12, %c32_63], %160 {strides = array<i32>} : memref<16x64xf32, #tpu.memory_space<vmem>>, vector<2x32xf32>,
    %cst_64 = arith.constant dense<0.000000e+00> : vector<2x256xf32>
    %164 = tpu.matmul %161, %19, %cst_64 {dimension_numbers = #tpu.dot_dimension_numbers<[1], [0], [0], [1], [0, 0, 1, 1], [], []>} : vector<2x64xf32>, vector<64x256xf32>, vector<2x256xf32> -> vector<2x256xf32>
    %165 = vector.extract_strided_slice %8 {offsets = [4, 0], sizes = [2, 128], strides = [1, 1]} : vector<16x256xf32> to vector<2x128xf32>
    %166 = vector.extract_strided_slice %164 {offsets = [0, 0], sizes = [2, 128], strides = [1, 1]} : vector<2x256xf32> to vector<2x128xf32>
    %167 = arith.addf %165, %166 : vector<2x128xf32>
    %168 = vector.extract_strided_slice %8 {offsets = [10, 128], sizes = [2, 128], strides = [1, 1]} : vector<16x256xf32> to vector<2x128xf32>
    %169 = vector.extract_strided_slice %164 {offsets = [0, 128], sizes = [2, 128], strides = [1, 1]} : vector<2x256xf32> to vector<2x128xf32>
    %170 = arith.addf %168, %169 : vector<2x128xf32>
    %171 = vector.extract_strided_slice %167 {offsets = [0, 0], sizes = [2, 32], strides = [1, 1]} : vector<2x128xf32> to vector<2x32xf32>
    %cst_65 = arith.constant 0.000000e+00 : f32
    %172 = vector.broadcast %cst_65 : f32 to vector<2x32xf32>
    %173 = arith.subf %172, %171 : vector<2x32xf32>
    %174 = math.exp %173 : vector<2x32xf32>
    %cst_66 = arith.constant 1.000000e+00 : f32
    %175 = vector.broadcast %cst_66 : f32 to vector<2x32xf32>
    %176 = arith.addf %175, %174 : vector<2x32xf32>
    %cst_67 = arith.constant 1.000000e+00 : f32
    %177 = vector.broadcast %cst_67 : f32 to vector<2x32xf32>
    %178 = arith.divf %177, %176 : vector<2x32xf32>
    %179 = vector.extract_strided_slice %167 {offsets = [0, 32], sizes = [2, 32], strides = [1, 1]} : vector<2x128xf32> to vector<2x32xf32>
    %cst_68 = arith.constant 0.000000e+00 : f32
    %180 = vector.broadcast %cst_68 : f32 to vector<2x32xf32>
    %181 = arith.subf %180, %179 : vector<2x32xf32>
    %182 = math.exp %181 : vector<2x32xf32>
    %cst_69 = arith.constant 1.000000e+00 : f32
    %183 = vector.broadcast %cst_69 : f32 to vector<2x32xf32>
    %184 = arith.addf %183, %182 : vector<2x32xf32>
    %cst_70 = arith.constant 1.000000e+00 : f32
    %185 = vector.broadcast %cst_70 : f32 to vector<2x32xf32>
    %186 = arith.divf %185, %184 : vector<2x32xf32>
    %187 = vector.extract_strided_slice %167 {offsets = [0, 64], sizes = [2, 32], strides = [1, 1]} : vector<2x128xf32> to vector<2x32xf32>
    %188 = math.tanh %187 : vector<2x32xf32>
    %189 = vector.extract_strided_slice %167 {offsets = [0, 96], sizes = [2, 32], strides = [1, 1]} : vector<2x128xf32> to vector<2x32xf32>
    %cst_71 = arith.constant 0.000000e+00 : f32
    %190 = vector.broadcast %cst_71 : f32 to vector<2x32xf32>
    %191 = arith.subf %190, %189 : vector<2x32xf32>
    %192 = math.exp %191 : vector<2x32xf32>
    %cst_72 = arith.constant 1.000000e+00 : f32
    %193 = vector.broadcast %cst_72 : f32 to vector<2x32xf32>
    %194 = arith.addf %193, %192 : vector<2x32xf32>
    %cst_73 = arith.constant 1.000000e+00 : f32
    %195 = vector.broadcast %cst_73 : f32 to vector<2x32xf32>
    %196 = arith.divf %195, %194 : vector<2x32xf32>
    %197 = arith.mulf %186, %127 : vector<2x32xf32>
    %198 = arith.mulf %178, %188 : vector<2x32xf32>
    %199 = arith.addf %197, %198 : vector<2x32xf32>
    %200 = math.tanh %199 : vector<2x32xf32>
    %201 = arith.mulf %196, %200 : vector<2x32xf32>
    %202 = vector.extract_strided_slice %170 {offsets = [0, 0], sizes = [2, 32], strides = [1, 1]} : vector<2x128xf32> to vector<2x32xf32>
    %cst_74 = arith.constant 0.000000e+00 : f32
    %203 = vector.broadcast %cst_74 : f32 to vector<2x32xf32>
    %204 = arith.subf %203, %202 : vector<2x32xf32>
    %205 = math.exp %204 : vector<2x32xf32>
    %cst_75 = arith.constant 1.000000e+00 : f32
    %206 = vector.broadcast %cst_75 : f32 to vector<2x32xf32>
    %207 = arith.addf %206, %205 : vector<2x32xf32>
    %cst_76 = arith.constant 1.000000e+00 : f32
    %208 = vector.broadcast %cst_76 : f32 to vector<2x32xf32>
    %209 = arith.divf %208, %207 : vector<2x32xf32>
    %210 = vector.extract_strided_slice %170 {offsets = [0, 32], sizes = [2, 32], strides = [1, 1]} : vector<2x128xf32> to vector<2x32xf32>
    %cst_77 = arith.constant 0.000000e+00 : f32
    %211 = vector.broadcast %cst_77 : f32 to vector<2x32xf32>
    %212 = arith.subf %211, %210 : vector<2x32xf32>
    %213 = math.exp %212 : vector<2x32xf32>
    %cst_78 = arith.constant 1.000000e+00 : f32
    %214 = vector.broadcast %cst_78 : f32 to vector<2x32xf32>
    %215 = arith.addf %214, %213 : vector<2x32xf32>
    %cst_79 = arith.constant 1.000000e+00 : f32
    %216 = vector.broadcast %cst_79 : f32 to vector<2x32xf32>
    %217 = arith.divf %216, %215 : vector<2x32xf32>
    %218 = vector.extract_strided_slice %170 {offsets = [0, 64], sizes = [2, 32], strides = [1, 1]} : vector<2x128xf32> to vector<2x32xf32>
    %219 = math.tanh %218 : vector<2x32xf32>
    %220 = vector.extract_strided_slice %170 {offsets = [0, 96], sizes = [2, 32], strides = [1, 1]} : vector<2x128xf32> to vector<2x32xf32>
    %cst_80 = arith.constant 0.000000e+00 : f32
    %221 = vector.broadcast %cst_80 : f32 to vector<2x32xf32>
    %222 = arith.subf %221, %220 : vector<2x32xf32>
    %223 = math.exp %222 : vector<2x32xf32>
    %cst_81 = arith.constant 1.000000e+00 : f32
    %224 = vector.broadcast %cst_81 : f32 to vector<2x32xf32>
    %225 = arith.addf %224, %223 : vector<2x32xf32>
    %cst_82 = arith.constant 1.000000e+00 : f32
    %226 = vector.broadcast %cst_82 : f32 to vector<2x32xf32>
    %227 = arith.divf %226, %225 : vector<2x32xf32>
    %228 = arith.mulf %217, %158 : vector<2x32xf32>
    %229 = arith.mulf %209, %219 : vector<2x32xf32>
    %230 = arith.addf %228, %229 : vector<2x32xf32>
    %231 = math.tanh %230 : vector<2x32xf32>
    %232 = arith.mulf %227, %231 : vector<2x32xf32>
    %233 = tpu.concatenate %201, %232 in 1 : vector<2x32xf32>, vector<2x32xf32> -> vector<2x64xf32>
    %c4 = arith.constant 4 : index
    %c0_83 = arith.constant 0 : index
    %234 = vector.load %arg11[%c4, %c0_83] : memref<16x64xf32, #tpu.memory_space<vmem>>, vector<2x32xf32>
    tpu.vector_store %arg11[%c4, %c0_83], %201 {strides = array<i32>} : memref<16x64xf32, #tpu.memory_space<vmem>>, vector<2x32xf32>,
    %c10 = arith.constant 10 : index
    %c32_84 = arith.constant 32 : index
    %235 = vector.load %arg11[%c10, %c32_84] : memref<16x64xf32, #tpu.memory_space<vmem>>, vector<2x32xf32>
    tpu.vector_store %arg11[%c10, %c32_84], %232 {strides = array<i32>} : memref<16x64xf32, #tpu.memory_space<vmem>>, vector<2x32xf32>,
    %cst_85 = arith.constant dense<0.000000e+00> : vector<2x256xf32>
    %236 = tpu.matmul %233, %19, %cst_85 {dimension_numbers = #tpu.dot_dimension_numbers<[1], [0], [0], [1], [0, 0, 1, 1], [], []>} : vector<2x64xf32>, vector<64x256xf32>, vector<2x256xf32> -> vector<2x256xf32>
    %237 = vector.extract_strided_slice %8 {offsets = [6, 0], sizes = [2, 128], strides = [1, 1]} : vector<16x256xf32> to vector<2x128xf32>
    %238 = vector.extract_strided_slice %236 {offsets = [0, 0], sizes = [2, 128], strides = [1, 1]} : vector<2x256xf32> to vector<2x128xf32>
    %239 = arith.addf %237, %238 : vector<2x128xf32>
    %240 = vector.extract_strided_slice %8 {offsets = [8, 128], sizes = [2, 128], strides = [1, 1]} : vector<16x256xf32> to vector<2x128xf32>
    %241 = vector.extract_strided_slice %236 {offsets = [0, 128], sizes = [2, 128], strides = [1, 1]} : vector<2x256xf32> to vector<2x128xf32>
    %242 = arith.addf %240, %241 : vector<2x128xf32>
    %243 = vector.extract_strided_slice %239 {offsets = [0, 0], sizes = [2, 32], strides = [1, 1]} : vector<2x128xf32> to vector<2x32xf32>
    %cst_86 = arith.constant 0.000000e+00 : f32
    %244 = vector.broadcast %cst_86 : f32 to vector<2x32xf32>
    %245 = arith.subf %244, %243 : vector<2x32xf32>
    %246 = math.exp %245 : vector<2x32xf32>
    %cst_87 = arith.constant 1.000000e+00 : f32
    %247 = vector.broadcast %cst_87 : f32 to vector<2x32xf32>
    %248 = arith.addf %247, %246 : vector<2x32xf32>
    %cst_88 = arith.constant 1.000000e+00 : f32
    %249 = vector.broadcast %cst_88 : f32 to vector<2x32xf32>
    %250 = arith.divf %249, %248 : vector<2x32xf32>
    %251 = vector.extract_strided_slice %239 {offsets = [0, 32], sizes = [2, 32], strides = [1, 1]} : vector<2x128xf32> to vector<2x32xf32>
    %cst_89 = arith.constant 0.000000e+00 : f32
    %252 = vector.broadcast %cst_89 : f32 to vector<2x32xf32>
    %253 = arith.subf %252, %251 : vector<2x32xf32>
    %254 = math.exp %253 : vector<2x32xf32>
    %cst_90 = arith.constant 1.000000e+00 : f32
    %255 = vector.broadcast %cst_90 : f32 to vector<2x32xf32>
    %256 = arith.addf %255, %254 : vector<2x32xf32>
    %cst_91 = arith.constant 1.000000e+00 : f32
    %257 = vector.broadcast %cst_91 : f32 to vector<2x32xf32>
    %258 = arith.divf %257, %256 : vector<2x32xf32>
    %259 = vector.extract_strided_slice %239 {offsets = [0, 64], sizes = [2, 32], strides = [1, 1]} : vector<2x128xf32> to vector<2x32xf32>
    %260 = math.tanh %259 : vector<2x32xf32>
    %261 = vector.extract_strided_slice %239 {offsets = [0, 96], sizes = [2, 32], strides = [1, 1]} : vector<2x128xf32> to vector<2x32xf32>
    %cst_92 = arith.constant 0.000000e+00 : f32
    %262 = vector.broadcast %cst_92 : f32 to vector<2x32xf32>
    %263 = arith.subf %262, %261 : vector<2x32xf32>
    %264 = math.exp %263 : vector<2x32xf32>
    %cst_93 = arith.constant 1.000000e+00 : f32
    %265 = vector.broadcast %cst_93 : f32 to vector<2x32xf32>
    %266 = arith.addf %265, %264 : vector<2x32xf32>
    %cst_94 = arith.constant 1.000000e+00 : f32
    %267 = vector.broadcast %cst_94 : f32 to vector<2x32xf32>
    %268 = arith.divf %267, %266 : vector<2x32xf32>
    %269 = arith.mulf %258, %199 : vector<2x32xf32>
    %270 = arith.mulf %250, %260 : vector<2x32xf32>
    %271 = arith.addf %269, %270 : vector<2x32xf32>
    %272 = math.tanh %271 : vector<2x32xf32>
    %273 = arith.mulf %268, %272 : vector<2x32xf32>
    %274 = vector.extract_strided_slice %242 {offsets = [0, 0], sizes = [2, 32], strides = [1, 1]} : vector<2x128xf32> to vector<2x32xf32>
    %cst_95 = arith.constant 0.000000e+00 : f32
    %275 = vector.broadcast %cst_95 : f32 to vector<2x32xf32>
    %276 = arith.subf %275, %274 : vector<2x32xf32>
    %277 = math.exp %276 : vector<2x32xf32>
    %cst_96 = arith.constant 1.000000e+00 : f32
    %278 = vector.broadcast %cst_96 : f32 to vector<2x32xf32>
    %279 = arith.addf %278, %277 : vector<2x32xf32>
    %cst_97 = arith.constant 1.000000e+00 : f32
    %280 = vector.broadcast %cst_97 : f32 to vector<2x32xf32>
    %281 = arith.divf %280, %279 : vector<2x32xf32>
    %282 = vector.extract_strided_slice %242 {offsets = [0, 32], sizes = [2, 32], strides = [1, 1]} : vector<2x128xf32> to vector<2x32xf32>
    %cst_98 = arith.constant 0.000000e+00 : f32
    %283 = vector.broadcast %cst_98 : f32 to vector<2x32xf32>
    %284 = arith.subf %283, %282 : vector<2x32xf32>
    %285 = math.exp %284 : vector<2x32xf32>
    %cst_99 = arith.constant 1.000000e+00 : f32
    %286 = vector.broadcast %cst_99 : f32 to vector<2x32xf32>
    %287 = arith.addf %286, %285 : vector<2x32xf32>
    %cst_100 = arith.constant 1.000000e+00 : f32
    %288 = vector.broadcast %cst_100 : f32 to vector<2x32xf32>
    %289 = arith.divf %288, %287 : vector<2x32xf32>
    %290 = vector.extract_strided_slice %242 {offsets = [0, 64], sizes = [2, 32], strides = [1, 1]} : vector<2x128xf32> to vector<2x32xf32>
    %291 = math.tanh %290 : vector<2x32xf32>
    %292 = vector.extract_strided_slice %242 {offsets = [0, 96], sizes = [2, 32], strides = [1, 1]} : vector<2x128xf32> to vector<2x32xf32>
    %cst_101 = arith.constant 0.000000e+00 : f32
    %293 = vector.broadcast %cst_101 : f32 to vector<2x32xf32>
    %294 = arith.subf %293, %292 : vector<2x32xf32>
    %295 = math.exp %294 : vector<2x32xf32>
    %cst_102 = arith.constant 1.000000e+00 : f32
    %296 = vector.broadcast %cst_102 : f32 to vector<2x32xf32>
    %297 = arith.addf %296, %295 : vector<2x32xf32>
    %cst_103 = arith.constant 1.000000e+00 : f32
    %298 = vector.broadcast %cst_103 : f32 to vector<2x32xf32>
    %299 = arith.divf %298, %297 : vector<2x32xf32>
    %300 = arith.mulf %289, %230 : vector<2x32xf32>
    %301 = arith.mulf %281, %291 : vector<2x32xf32>
    %302 = arith.addf %300, %301 : vector<2x32xf32>
    %303 = math.tanh %302 : vector<2x32xf32>
    %304 = arith.mulf %299, %303 : vector<2x32xf32>
    %305 = tpu.concatenate %273, %304 in 1 : vector<2x32xf32>, vector<2x32xf32> -> vector<2x64xf32>
    %c6 = arith.constant 6 : index
    %c0_104 = arith.constant 0 : index
    %306 = vector.load %arg11[%c6, %c0_104] : memref<16x64xf32, #tpu.memory_space<vmem>>, vector<2x32xf32>
    tpu.vector_store %arg11[%c6, %c0_104], %273 {strides = array<i32>} : memref<16x64xf32, #tpu.memory_space<vmem>>, vector<2x32xf32>,
    %c8 = arith.constant 8 : index
    %c32_105 = arith.constant 32 : index
    %307 = vector.load %arg11[%c8, %c32_105] : memref<16x64xf32, #tpu.memory_space<vmem>>, vector<2x32xf32>
    tpu.vector_store %arg11[%c8, %c32_105], %304 {strides = array<i32>} : memref<16x64xf32, #tpu.memory_space<vmem>>, vector<2x32xf32>,
    %cst_106 = arith.constant dense<0.000000e+00> : vector<2x256xf32>
    %308 = tpu.matmul %305, %19, %cst_106 {dimension_numbers = #tpu.dot_dimension_numbers<[1], [0], [0], [1], [0, 0, 1, 1], [], []>} : vector<2x64xf32>, vector<64x256xf32>, vector<2x256xf32> -> vector<2x256xf32>
    %309 = vector.extract_strided_slice %8 {offsets = [8, 0], sizes = [2, 128], strides = [1, 1]} : vector<16x256xf32> to vector<2x128xf32>
    %310 = vector.extract_strided_slice %308 {offsets = [0, 0], sizes = [2, 128], strides = [1, 1]} : vector<2x256xf32> to vector<2x128xf32>
    %311 = arith.addf %309, %310 : vector<2x128xf32>
    %312 = vector.extract_strided_slice %8 {offsets = [6, 128], sizes = [2, 128], strides = [1, 1]} : vector<16x256xf32> to vector<2x128xf32>
    %313 = vector.extract_strided_slice %308 {offsets = [0, 128], sizes = [2, 128], strides = [1, 1]} : vector<2x256xf32> to vector<2x128xf32>
    %314 = arith.addf %312, %313 : vector<2x128xf32>
    %315 = vector.extract_strided_slice %311 {offsets = [0, 0], sizes = [2, 32], strides = [1, 1]} : vector<2x128xf32> to vector<2x32xf32>
    %cst_107 = arith.constant 0.000000e+00 : f32
    %316 = vector.broadcast %cst_107 : f32 to vector<2x32xf32>
    %317 = arith.subf %316, %315 : vector<2x32xf32>
    %318 = math.exp %317 : vector<2x32xf32>
    %cst_108 = arith.constant 1.000000e+00 : f32
    %319 = vector.broadcast %cst_108 : f32 to vector<2x32xf32>
    %320 = arith.addf %319, %318 : vector<2x32xf32>
    %cst_109 = arith.constant 1.000000e+00 : f32
    %321 = vector.broadcast %cst_109 : f32 to vector<2x32xf32>
    %322 = arith.divf %321, %320 : vector<2x32xf32>
    %323 = vector.extract_strided_slice %311 {offsets = [0, 32], sizes = [2, 32], strides = [1, 1]} : vector<2x128xf32> to vector<2x32xf32>
    %cst_110 = arith.constant 0.000000e+00 : f32
    %324 = vector.broadcast %cst_110 : f32 to vector<2x32xf32>
    %325 = arith.subf %324, %323 : vector<2x32xf32>
    %326 = math.exp %325 : vector<2x32xf32>
    %cst_111 = arith.constant 1.000000e+00 : f32
    %327 = vector.broadcast %cst_111 : f32 to vector<2x32xf32>
    %328 = arith.addf %327, %326 : vector<2x32xf32>
    %cst_112 = arith.constant 1.000000e+00 : f32
    %329 = vector.broadcast %cst_112 : f32 to vector<2x32xf32>
    %330 = arith.divf %329, %328 : vector<2x32xf32>
    %331 = vector.extract_strided_slice %311 {offsets = [0, 64], sizes = [2, 32], strides = [1, 1]} : vector<2x128xf32> to vector<2x32xf32>
    %332 = math.tanh %331 : vector<2x32xf32>
    %333 = vector.extract_strided_slice %311 {offsets = [0, 96], sizes = [2, 32], strides = [1, 1]} : vector<2x128xf32> to vector<2x32xf32>
    %cst_113 = arith.constant 0.000000e+00 : f32
    %334 = vector.broadcast %cst_113 : f32 to vector<2x32xf32>
    %335 = arith.subf %334, %333 : vector<2x32xf32>
    %336 = math.exp %335 : vector<2x32xf32>
    %cst_114 = arith.constant 1.000000e+00 : f32
    %337 = vector.broadcast %cst_114 : f32 to vector<2x32xf32>
    %338 = arith.addf %337, %336 : vector<2x32xf32>
    %cst_115 = arith.constant 1.000000e+00 : f32
    %339 = vector.broadcast %cst_115 : f32 to vector<2x32xf32>
    %340 = arith.divf %339, %338 : vector<2x32xf32>
    %341 = arith.mulf %330, %271 : vector<2x32xf32>
    %342 = arith.mulf %322, %332 : vector<2x32xf32>
    %343 = arith.addf %341, %342 : vector<2x32xf32>
    %344 = math.tanh %343 : vector<2x32xf32>
    %345 = arith.mulf %340, %344 : vector<2x32xf32>
    %346 = vector.extract_strided_slice %314 {offsets = [0, 0], sizes = [2, 32], strides = [1, 1]} : vector<2x128xf32> to vector<2x32xf32>
    %cst_116 = arith.constant 0.000000e+00 : f32
    %347 = vector.broadcast %cst_116 : f32 to vector<2x32xf32>
    %348 = arith.subf %347, %346 : vector<2x32xf32>
    %349 = math.exp %348 : vector<2x32xf32>
    %cst_117 = arith.constant 1.000000e+00 : f32
    %350 = vector.broadcast %cst_117 : f32 to vector<2x32xf32>
    %351 = arith.addf %350, %349 : vector<2x32xf32>
    %cst_118 = arith.constant 1.000000e+00 : f32
    %352 = vector.broadcast %cst_118 : f32 to vector<2x32xf32>
    %353 = arith.divf %352, %351 : vector<2x32xf32>
    %354 = vector.extract_strided_slice %314 {offsets = [0, 32], sizes = [2, 32], strides = [1, 1]} : vector<2x128xf32> to vector<2x32xf32>
    %cst_119 = arith.constant 0.000000e+00 : f32
    %355 = vector.broadcast %cst_119 : f32 to vector<2x32xf32>
    %356 = arith.subf %355, %354 : vector<2x32xf32>
    %357 = math.exp %356 : vector<2x32xf32>
    %cst_120 = arith.constant 1.000000e+00 : f32
    %358 = vector.broadcast %cst_120 : f32 to vector<2x32xf32>
    %359 = arith.addf %358, %357 : vector<2x32xf32>
    %cst_121 = arith.constant 1.000000e+00 : f32
    %360 = vector.broadcast %cst_121 : f32 to vector<2x32xf32>
    %361 = arith.divf %360, %359 : vector<2x32xf32>
    %362 = vector.extract_strided_slice %314 {offsets = [0, 64], sizes = [2, 32], strides = [1, 1]} : vector<2x128xf32> to vector<2x32xf32>
    %363 = math.tanh %362 : vector<2x32xf32>
    %364 = vector.extract_strided_slice %314 {offsets = [0, 96], sizes = [2, 32], strides = [1, 1]} : vector<2x128xf32> to vector<2x32xf32>
    %cst_122 = arith.constant 0.000000e+00 : f32
    %365 = vector.broadcast %cst_122 : f32 to vector<2x32xf32>
    %366 = arith.subf %365, %364 : vector<2x32xf32>
    %367 = math.exp %366 : vector<2x32xf32>
    %cst_123 = arith.constant 1.000000e+00 : f32
    %368 = vector.broadcast %cst_123 : f32 to vector<2x32xf32>
    %369 = arith.addf %368, %367 : vector<2x32xf32>
    %cst_124 = arith.constant 1.000000e+00 : f32
    %370 = vector.broadcast %cst_124 : f32 to vector<2x32xf32>
    %371 = arith.divf %370, %369 : vector<2x32xf32>
    %372 = arith.mulf %361, %302 : vector<2x32xf32>
    %373 = arith.mulf %353, %363 : vector<2x32xf32>
    %374 = arith.addf %372, %373 : vector<2x32xf32>
    %375 = math.tanh %374 : vector<2x32xf32>
    %376 = arith.mulf %371, %375 : vector<2x32xf32>
    %377 = tpu.concatenate %345, %376 in 1 : vector<2x32xf32>, vector<2x32xf32> -> vector<2x64xf32>
    %c8_125 = arith.constant 8 : index
    %c0_126 = arith.constant 0 : index
    %378 = vector.load %arg11[%c8_125, %c0_126] : memref<16x64xf32, #tpu.memory_space<vmem>>, vector<2x32xf32>
    tpu.vector_store %arg11[%c8_125, %c0_126], %345 {strides = array<i32>} : memref<16x64xf32, #tpu.memory_space<vmem>>, vector<2x32xf32>,
    %c6_127 = arith.constant 6 : index
    %c32_128 = arith.constant 32 : index
    %379 = vector.load %arg11[%c6_127, %c32_128] : memref<16x64xf32, #tpu.memory_space<vmem>>, vector<2x32xf32>
    tpu.vector_store %arg11[%c6_127, %c32_128], %376 {strides = array<i32>} : memref<16x64xf32, #tpu.memory_space<vmem>>, vector<2x32xf32>,
    %cst_129 = arith.constant dense<0.000000e+00> : vector<2x256xf32>
    %380 = tpu.matmul %377, %19, %cst_129 {dimension_numbers = #tpu.dot_dimension_numbers<[1], [0], [0], [1], [0, 0, 1, 1], [], []>} : vector<2x64xf32>, vector<64x256xf32>, vector<2x256xf32> -> vector<2x256xf32>
    %381 = vector.extract_strided_slice %8 {offsets = [10, 0], sizes = [2, 128], strides = [1, 1]} : vector<16x256xf32> to vector<2x128xf32>
    %382 = vector.extract_strided_slice %380 {offsets = [0, 0], sizes = [2, 128], strides = [1, 1]} : vector<2x256xf32> to vector<2x128xf32>
    %383 = arith.addf %381, %382 : vector<2x128xf32>
    %384 = vector.extract_strided_slice %8 {offsets = [4, 128], sizes = [2, 128], strides = [1, 1]} : vector<16x256xf32> to vector<2x128xf32>
    %385 = vector.extract_strided_slice %380 {offsets = [0, 128], sizes = [2, 128], strides = [1, 1]} : vector<2x256xf32> to vector<2x128xf32>
    %386 = arith.addf %384, %385 : vector<2x128xf32>
    %387 = vector.extract_strided_slice %383 {offsets = [0, 0], sizes = [2, 32], strides = [1, 1]} : vector<2x128xf32> to vector<2x32xf32>
    %cst_130 = arith.constant 0.000000e+00 : f32
    %388 = vector.broadcast %cst_130 : f32 to vector<2x32xf32>
    %389 = arith.subf %388, %387 : vector<2x32xf32>
    %390 = math.exp %389 : vector<2x32xf32>
    %cst_131 = arith.constant 1.000000e+00 : f32
    %391 = vector.broadcast %cst_131 : f32 to vector<2x32xf32>
    %392 = arith.addf %391, %390 : vector<2x32xf32>
    %cst_132 = arith.constant 1.000000e+00 : f32
    %393 = vector.broadcast %cst_132 : f32 to vector<2x32xf32>
    %394 = arith.divf %393, %392 : vector<2x32xf32>
    %395 = vector.extract_strided_slice %383 {offsets = [0, 32], sizes = [2, 32], strides = [1, 1]} : vector<2x128xf32> to vector<2x32xf32>
    %cst_133 = arith.constant 0.000000e+00 : f32
    %396 = vector.broadcast %cst_133 : f32 to vector<2x32xf32>
    %397 = arith.subf %396, %395 : vector<2x32xf32>
    %398 = math.exp %397 : vector<2x32xf32>
    %cst_134 = arith.constant 1.000000e+00 : f32
    %399 = vector.broadcast %cst_134 : f32 to vector<2x32xf32>
    %400 = arith.addf %399, %398 : vector<2x32xf32>
    %cst_135 = arith.constant 1.000000e+00 : f32
    %401 = vector.broadcast %cst_135 : f32 to vector<2x32xf32>
    %402 = arith.divf %401, %400 : vector<2x32xf32>
    %403 = vector.extract_strided_slice %383 {offsets = [0, 64], sizes = [2, 32], strides = [1, 1]} : vector<2x128xf32> to vector<2x32xf32>
    %404 = math.tanh %403 : vector<2x32xf32>
    %405 = vector.extract_strided_slice %383 {offsets = [0, 96], sizes = [2, 32], strides = [1, 1]} : vector<2x128xf32> to vector<2x32xf32>
    %cst_136 = arith.constant 0.000000e+00 : f32
    %406 = vector.broadcast %cst_136 : f32 to vector<2x32xf32>
    %407 = arith.subf %406, %405 : vector<2x32xf32>
    %408 = math.exp %407 : vector<2x32xf32>
    %cst_137 = arith.constant 1.000000e+00 : f32
    %409 = vector.broadcast %cst_137 : f32 to vector<2x32xf32>
    %410 = arith.addf %409, %408 : vector<2x32xf32>
    %cst_138 = arith.constant 1.000000e+00 : f32
    %411 = vector.broadcast %cst_138 : f32 to vector<2x32xf32>
    %412 = arith.divf %411, %410 : vector<2x32xf32>
    %413 = arith.mulf %402, %343 : vector<2x32xf32>
    %414 = arith.mulf %394, %404 : vector<2x32xf32>
    %415 = arith.addf %413, %414 : vector<2x32xf32>
    %416 = math.tanh %415 : vector<2x32xf32>
    %417 = arith.mulf %412, %416 : vector<2x32xf32>
    %418 = vector.extract_strided_slice %386 {offsets = [0, 0], sizes = [2, 32], strides = [1, 1]} : vector<2x128xf32> to vector<2x32xf32>
    %cst_139 = arith.constant 0.000000e+00 : f32
    %419 = vector.broadcast %cst_139 : f32 to vector<2x32xf32>
    %420 = arith.subf %419, %418 : vector<2x32xf32>
    %421 = math.exp %420 : vector<2x32xf32>
    %cst_140 = arith.constant 1.000000e+00 : f32
    %422 = vector.broadcast %cst_140 : f32 to vector<2x32xf32>
    %423 = arith.addf %422, %421 : vector<2x32xf32>
    %cst_141 = arith.constant 1.000000e+00 : f32
    %424 = vector.broadcast %cst_141 : f32 to vector<2x32xf32>
    %425 = arith.divf %424, %423 : vector<2x32xf32>
    %426 = vector.extract_strided_slice %386 {offsets = [0, 32], sizes = [2, 32], strides = [1, 1]} : vector<2x128xf32> to vector<2x32xf32>
    %cst_142 = arith.constant 0.000000e+00 : f32
    %427 = vector.broadcast %cst_142 : f32 to vector<2x32xf32>
    %428 = arith.subf %427, %426 : vector<2x32xf32>
    %429 = math.exp %428 : vector<2x32xf32>
    %cst_143 = arith.constant 1.000000e+00 : f32
    %430 = vector.broadcast %cst_143 : f32 to vector<2x32xf32>
    %431 = arith.addf %430, %429 : vector<2x32xf32>
    %cst_144 = arith.constant 1.000000e+00 : f32
    %432 = vector.broadcast %cst_144 : f32 to vector<2x32xf32>
    %433 = arith.divf %432, %431 : vector<2x32xf32>
    %434 = vector.extract_strided_slice %386 {offsets = [0, 64], sizes = [2, 32], strides = [1, 1]} : vector<2x128xf32> to vector<2x32xf32>
    %435 = math.tanh %434 : vector<2x32xf32>
    %436 = vector.extract_strided_slice %386 {offsets = [0, 96], sizes = [2, 32], strides = [1, 1]} : vector<2x128xf32> to vector<2x32xf32>
    %cst_145 = arith.constant 0.000000e+00 : f32
    %437 = vector.broadcast %cst_145 : f32 to vector<2x32xf32>
    %438 = arith.subf %437, %436 : vector<2x32xf32>
    %439 = math.exp %438 : vector<2x32xf32>
    %cst_146 = arith.constant 1.000000e+00 : f32
    %440 = vector.broadcast %cst_146 : f32 to vector<2x32xf32>
    %441 = arith.addf %440, %439 : vector<2x32xf32>
    %cst_147 = arith.constant 1.000000e+00 : f32
    %442 = vector.broadcast %cst_147 : f32 to vector<2x32xf32>
    %443 = arith.divf %442, %441 : vector<2x32xf32>
    %444 = arith.mulf %433, %374 : vector<2x32xf32>
    %445 = arith.mulf %425, %435 : vector<2x32xf32>
    %446 = arith.addf %444, %445 : vector<2x32xf32>
    %447 = math.tanh %446 : vector<2x32xf32>
    %448 = arith.mulf %443, %447 : vector<2x32xf32>
    %449 = tpu.concatenate %417, %448 in 1 : vector<2x32xf32>, vector<2x32xf32> -> vector<2x64xf32>
    %c10_148 = arith.constant 10 : index
    %c0_149 = arith.constant 0 : index
    %450 = vector.load %arg11[%c10_148, %c0_149] : memref<16x64xf32, #tpu.memory_space<vmem>>, vector<2x32xf32>
    tpu.vector_store %arg11[%c10_148, %c0_149], %417 {strides = array<i32>} : memref<16x64xf32, #tpu.memory_space<vmem>>, vector<2x32xf32>,
    %c4_150 = arith.constant 4 : index
    %c32_151 = arith.constant 32 : index
    %451 = vector.load %arg11[%c4_150, %c32_151] : memref<16x64xf32, #tpu.memory_space<vmem>>, vector<2x32xf32>
    tpu.vector_store %arg11[%c4_150, %c32_151], %448 {strides = array<i32>} : memref<16x64xf32, #tpu.memory_space<vmem>>, vector<2x32xf32>,
    %cst_152 = arith.constant dense<0.000000e+00> : vector<2x256xf32>
    %452 = tpu.matmul %449, %19, %cst_152 {dimension_numbers = #tpu.dot_dimension_numbers<[1], [0], [0], [1], [0, 0, 1, 1], [], []>} : vector<2x64xf32>, vector<64x256xf32>, vector<2x256xf32> -> vector<2x256xf32>
    %453 = vector.extract_strided_slice %8 {offsets = [12, 0], sizes = [2, 128], strides = [1, 1]} : vector<16x256xf32> to vector<2x128xf32>
    %454 = vector.extract_strided_slice %452 {offsets = [0, 0], sizes = [2, 128], strides = [1, 1]} : vector<2x256xf32> to vector<2x128xf32>
    %455 = arith.addf %453, %454 : vector<2x128xf32>
    %456 = vector.extract_strided_slice %8 {offsets = [2, 128], sizes = [2, 128], strides = [1, 1]} : vector<16x256xf32> to vector<2x128xf32>
    %457 = vector.extract_strided_slice %452 {offsets = [0, 128], sizes = [2, 128], strides = [1, 1]} : vector<2x256xf32> to vector<2x128xf32>
    %458 = arith.addf %456, %457 : vector<2x128xf32>
    %459 = vector.extract_strided_slice %455 {offsets = [0, 0], sizes = [2, 32], strides = [1, 1]} : vector<2x128xf32> to vector<2x32xf32>
    %cst_153 = arith.constant 0.000000e+00 : f32
    %460 = vector.broadcast %cst_153 : f32 to vector<2x32xf32>
    %461 = arith.subf %460, %459 : vector<2x32xf32>
    %462 = math.exp %461 : vector<2x32xf32>
    %cst_154 = arith.constant 1.000000e+00 : f32
    %463 = vector.broadcast %cst_154 : f32 to vector<2x32xf32>
    %464 = arith.addf %463, %462 : vector<2x32xf32>
    %cst_155 = arith.constant 1.000000e+00 : f32
    %465 = vector.broadcast %cst_155 : f32 to vector<2x32xf32>
    %466 = arith.divf %465, %464 : vector<2x32xf32>
    %467 = vector.extract_strided_slice %455 {offsets = [0, 32], sizes = [2, 32], strides = [1, 1]} : vector<2x128xf32> to vector<2x32xf32>
    %cst_156 = arith.constant 0.000000e+00 : f32
    %468 = vector.broadcast %cst_156 : f32 to vector<2x32xf32>
    %469 = arith.subf %468, %467 : vector<2x32xf32>
    %470 = math.exp %469 : vector<2x32xf32>
    %cst_157 = arith.constant 1.000000e+00 : f32
    %471 = vector.broadcast %cst_157 : f32 to vector<2x32xf32>
    %472 = arith.addf %471, %470 : vector<2x32xf32>
    %cst_158 = arith.constant 1.000000e+00 : f32
    %473 = vector.broadcast %cst_158 : f32 to vector<2x32xf32>
    %474 = arith.divf %473, %472 : vector<2x32xf32>
    %475 = vector.extract_strided_slice %455 {offsets = [0, 64], sizes = [2, 32], strides = [1, 1]} : vector<2x128xf32> to vector<2x32xf32>
    %476 = math.tanh %475 : vector<2x32xf32>
    %477 = vector.extract_strided_slice %455 {offsets = [0, 96], sizes = [2, 32], strides = [1, 1]} : vector<2x128xf32> to vector<2x32xf32>
    %cst_159 = arith.constant 0.000000e+00 : f32
    %478 = vector.broadcast %cst_159 : f32 to vector<2x32xf32>
    %479 = arith.subf %478, %477 : vector<2x32xf32>
    %480 = math.exp %479 : vector<2x32xf32>
    %cst_160 = arith.constant 1.000000e+00 : f32
    %481 = vector.broadcast %cst_160 : f32 to vector<2x32xf32>
    %482 = arith.addf %481, %480 : vector<2x32xf32>
    %cst_161 = arith.constant 1.000000e+00 : f32
    %483 = vector.broadcast %cst_161 : f32 to vector<2x32xf32>
    %484 = arith.divf %483, %482 : vector<2x32xf32>
    %485 = arith.mulf %474, %415 : vector<2x32xf32>
    %486 = arith.mulf %466, %476 : vector<2x32xf32>
    %487 = arith.addf %485, %486 : vector<2x32xf32>
    %488 = math.tanh %487 : vector<2x32xf32>
    %489 = arith.mulf %484, %488 : vector<2x32xf32>
    %490 = vector.extract_strided_slice %458 {offsets = [0, 0], sizes = [2, 32], strides = [1, 1]} : vector<2x128xf32> to vector<2x32xf32>
    %cst_162 = arith.constant 0.000000e+00 : f32
    %491 = vector.broadcast %cst_162 : f32 to vector<2x32xf32>
    %492 = arith.subf %491, %490 : vector<2x32xf32>
    %493 = math.exp %492 : vector<2x32xf32>
    %cst_163 = arith.constant 1.000000e+00 : f32
    %494 = vector.broadcast %cst_163 : f32 to vector<2x32xf32>
    %495 = arith.addf %494, %493 : vector<2x32xf32>
    %cst_164 = arith.constant 1.000000e+00 : f32
    %496 = vector.broadcast %cst_164 : f32 to vector<2x32xf32>
    %497 = arith.divf %496, %495 : vector<2x32xf32>
    %498 = vector.extract_strided_slice %458 {offsets = [0, 32], sizes = [2, 32], strides = [1, 1]} : vector<2x128xf32> to vector<2x32xf32>
    %cst_165 = arith.constant 0.000000e+00 : f32
    %499 = vector.broadcast %cst_165 : f32 to vector<2x32xf32>
    %500 = arith.subf %499, %498 : vector<2x32xf32>
    %501 = math.exp %500 : vector<2x32xf32>
    %cst_166 = arith.constant 1.000000e+00 : f32
    %502 = vector.broadcast %cst_166 : f32 to vector<2x32xf32>
    %503 = arith.addf %502, %501 : vector<2x32xf32>
    %cst_167 = arith.constant 1.000000e+00 : f32
    %504 = vector.broadcast %cst_167 : f32 to vector<2x32xf32>
    %505 = arith.divf %504, %503 : vector<2x32xf32>
    %506 = vector.extract_strided_slice %458 {offsets = [0, 64], sizes = [2, 32], strides = [1, 1]} : vector<2x128xf32> to vector<2x32xf32>
    %507 = math.tanh %506 : vector<2x32xf32>
    %508 = vector.extract_strided_slice %458 {offsets = [0, 96], sizes = [2, 32], strides = [1, 1]} : vector<2x128xf32> to vector<2x32xf32>
    %cst_168 = arith.constant 0.000000e+00 : f32
    %509 = vector.broadcast %cst_168 : f32 to vector<2x32xf32>
    %510 = arith.subf %509, %508 : vector<2x32xf32>
    %511 = math.exp %510 : vector<2x32xf32>
    %cst_169 = arith.constant 1.000000e+00 : f32
    %512 = vector.broadcast %cst_169 : f32 to vector<2x32xf32>
    %513 = arith.addf %512, %511 : vector<2x32xf32>
    %cst_170 = arith.constant 1.000000e+00 : f32
    %514 = vector.broadcast %cst_170 : f32 to vector<2x32xf32>
    %515 = arith.divf %514, %513 : vector<2x32xf32>
    %516 = arith.mulf %505, %446 : vector<2x32xf32>
    %517 = arith.mulf %497, %507 : vector<2x32xf32>
    %518 = arith.addf %516, %517 : vector<2x32xf32>
    %519 = math.tanh %518 : vector<2x32xf32>
    %520 = arith.mulf %515, %519 : vector<2x32xf32>
    %521 = tpu.concatenate %489, %520 in 1 : vector<2x32xf32>, vector<2x32xf32> -> vector<2x64xf32>
    %c12_171 = arith.constant 12 : index
    %c0_172 = arith.constant 0 : index
    %522 = vector.load %arg11[%c12_171, %c0_172] : memref<16x64xf32, #tpu.memory_space<vmem>>, vector<2x32xf32>
    tpu.vector_store %arg11[%c12_171, %c0_172], %489 {strides = array<i32>} : memref<16x64xf32, #tpu.memory_space<vmem>>, vector<2x32xf32>,
    %c2_173 = arith.constant 2 : index
    %c32_174 = arith.constant 32 : index
    %523 = vector.load %arg11[%c2_173, %c32_174] : memref<16x64xf32, #tpu.memory_space<vmem>>, vector<2x32xf32>
    tpu.vector_store %arg11[%c2_173, %c32_174], %520 {strides = array<i32>} : memref<16x64xf32, #tpu.memory_space<vmem>>, vector<2x32xf32>,
    %cst_175 = arith.constant dense<0.000000e+00> : vector<2x256xf32>
    %524 = tpu.matmul %521, %19, %cst_175 {dimension_numbers = #tpu.dot_dimension_numbers<[1], [0], [0], [1], [0, 0, 1, 1], [], []>} : vector<2x64xf32>, vector<64x256xf32>, vector<2x256xf32> -> vector<2x256xf32>
    %525 = vector.extract_strided_slice %8 {offsets = [14, 0], sizes = [2, 128], strides = [1, 1]} : vector<16x256xf32> to vector<2x128xf32>
    %526 = vector.extract_strided_slice %524 {offsets = [0, 0], sizes = [2, 128], strides = [1, 1]} : vector<2x256xf32> to vector<2x128xf32>
    %527 = arith.addf %525, %526 : vector<2x128xf32>
    %528 = vector.extract_strided_slice %8 {offsets = [0, 128], sizes = [2, 128], strides = [1, 1]} : vector<16x256xf32> to vector<2x128xf32>
    %529 = vector.extract_strided_slice %524 {offsets = [0, 128], sizes = [2, 128], strides = [1, 1]} : vector<2x256xf32> to vector<2x128xf32>
    %530 = arith.addf %528, %529 : vector<2x128xf32>
    %531 = vector.extract_strided_slice %527 {offsets = [0, 0], sizes = [2, 32], strides = [1, 1]} : vector<2x128xf32> to vector<2x32xf32>
    %cst_176 = arith.constant 0.000000e+00 : f32
    %532 = vector.broadcast %cst_176 : f32 to vector<2x32xf32>
    %533 = arith.subf %532, %531 : vector<2x32xf32>
    %534 = math.exp %533 : vector<2x32xf32>
    %cst_177 = arith.constant 1.000000e+00 : f32
    %535 = vector.broadcast %cst_177 : f32 to vector<2x32xf32>
    %536 = arith.addf %535, %534 : vector<2x32xf32>
    %cst_178 = arith.constant 1.000000e+00 : f32
    %537 = vector.broadcast %cst_178 : f32 to vector<2x32xf32>
    %538 = arith.divf %537, %536 : vector<2x32xf32>
    %539 = vector.extract_strided_slice %527 {offsets = [0, 32], sizes = [2, 32], strides = [1, 1]} : vector<2x128xf32> to vector<2x32xf32>
    %cst_179 = arith.constant 0.000000e+00 : f32
    %540 = vector.broadcast %cst_179 : f32 to vector<2x32xf32>
    %541 = arith.subf %540, %539 : vector<2x32xf32>
    %542 = math.exp %541 : vector<2x32xf32>
    %cst_180 = arith.constant 1.000000e+00 : f32
    %543 = vector.broadcast %cst_180 : f32 to vector<2x32xf32>
    %544 = arith.addf %543, %542 : vector<2x32xf32>
    %cst_181 = arith.constant 1.000000e+00 : f32
    %545 = vector.broadcast %cst_181 : f32 to vector<2x32xf32>
    %546 = arith.divf %545, %544 : vector<2x32xf32>
    %547 = vector.extract_strided_slice %527 {offsets = [0, 64], sizes = [2, 32], strides = [1, 1]} : vector<2x128xf32> to vector<2x32xf32>
    %548 = math.tanh %547 : vector<2x32xf32>
    %549 = vector.extract_strided_slice %527 {offsets = [0, 96], sizes = [2, 32], strides = [1, 1]} : vector<2x128xf32> to vector<2x32xf32>
    %cst_182 = arith.constant 0.000000e+00 : f32
    %550 = vector.broadcast %cst_182 : f32 to vector<2x32xf32>
    %551 = arith.subf %550, %549 : vector<2x32xf32>
    %552 = math.exp %551 : vector<2x32xf32>
    %cst_183 = arith.constant 1.000000e+00 : f32
    %553 = vector.broadcast %cst_183 : f32 to vector<2x32xf32>
    %554 = arith.addf %553, %552 : vector<2x32xf32>
    %cst_184 = arith.constant 1.000000e+00 : f32
    %555 = vector.broadcast %cst_184 : f32 to vector<2x32xf32>
    %556 = arith.divf %555, %554 : vector<2x32xf32>
    %557 = arith.mulf %546, %487 : vector<2x32xf32>
    %558 = arith.mulf %538, %548 : vector<2x32xf32>
    %559 = arith.addf %557, %558 : vector<2x32xf32>
    %560 = math.tanh %559 : vector<2x32xf32>
    %561 = arith.mulf %556, %560 : vector<2x32xf32>
    %562 = vector.extract_strided_slice %530 {offsets = [0, 0], sizes = [2, 32], strides = [1, 1]} : vector<2x128xf32> to vector<2x32xf32>
    %cst_185 = arith.constant 0.000000e+00 : f32
    %563 = vector.broadcast %cst_185 : f32 to vector<2x32xf32>
    %564 = arith.subf %563, %562 : vector<2x32xf32>
    %565 = math.exp %564 : vector<2x32xf32>
    %cst_186 = arith.constant 1.000000e+00 : f32
    %566 = vector.broadcast %cst_186 : f32 to vector<2x32xf32>
    %567 = arith.addf %566, %565 : vector<2x32xf32>
    %cst_187 = arith.constant 1.000000e+00 : f32
    %568 = vector.broadcast %cst_187 : f32 to vector<2x32xf32>
    %569 = arith.divf %568, %567 : vector<2x32xf32>
    %570 = vector.extract_strided_slice %530 {offsets = [0, 32], sizes = [2, 32], strides = [1, 1]} : vector<2x128xf32> to vector<2x32xf32>
    %cst_188 = arith.constant 0.000000e+00 : f32
    %571 = vector.broadcast %cst_188 : f32 to vector<2x32xf32>
    %572 = arith.subf %571, %570 : vector<2x32xf32>
    %573 = math.exp %572 : vector<2x32xf32>
    %cst_189 = arith.constant 1.000000e+00 : f32
    %574 = vector.broadcast %cst_189 : f32 to vector<2x32xf32>
    %575 = arith.addf %574, %573 : vector<2x32xf32>
    %cst_190 = arith.constant 1.000000e+00 : f32
    %576 = vector.broadcast %cst_190 : f32 to vector<2x32xf32>
    %577 = arith.divf %576, %575 : vector<2x32xf32>
    %578 = vector.extract_strided_slice %530 {offsets = [0, 64], sizes = [2, 32], strides = [1, 1]} : vector<2x128xf32> to vector<2x32xf32>
    %579 = math.tanh %578 : vector<2x32xf32>
    %580 = vector.extract_strided_slice %530 {offsets = [0, 96], sizes = [2, 32], strides = [1, 1]} : vector<2x128xf32> to vector<2x32xf32>
    %cst_191 = arith.constant 0.000000e+00 : f32
    %581 = vector.broadcast %cst_191 : f32 to vector<2x32xf32>
    %582 = arith.subf %581, %580 : vector<2x32xf32>
    %583 = math.exp %582 : vector<2x32xf32>
    %cst_192 = arith.constant 1.000000e+00 : f32
    %584 = vector.broadcast %cst_192 : f32 to vector<2x32xf32>
    %585 = arith.addf %584, %583 : vector<2x32xf32>
    %cst_193 = arith.constant 1.000000e+00 : f32
    %586 = vector.broadcast %cst_193 : f32 to vector<2x32xf32>
    %587 = arith.divf %586, %585 : vector<2x32xf32>
    %588 = arith.mulf %577, %518 : vector<2x32xf32>
    %589 = arith.mulf %569, %579 : vector<2x32xf32>
    %590 = arith.addf %588, %589 : vector<2x32xf32>
    %591 = math.tanh %590 : vector<2x32xf32>
    %592 = arith.mulf %587, %591 : vector<2x32xf32>
    %c14_194 = arith.constant 14 : index
    %c0_195 = arith.constant 0 : index
    %593 = vector.load %arg11[%c14_194, %c0_195] : memref<16x64xf32, #tpu.memory_space<vmem>>, vector<2x32xf32>
    tpu.vector_store %arg11[%c14_194, %c0_195], %561 {strides = array<i32>} : memref<16x64xf32, #tpu.memory_space<vmem>>, vector<2x32xf32>,
    %c0_196 = arith.constant 0 : index
    %c32_197 = arith.constant 32 : index
    %594 = vector.load %arg11[%c0_196, %c32_197] : memref<16x64xf32, #tpu.memory_space<vmem>>, vector<2x32xf32>
    tpu.vector_store %arg11[%c0_196, %c32_197], %592 {strides = array<i32>} : memref<16x64xf32, #tpu.memory_space<vmem>>, vector<2x32xf32>,
    %595 = arith.addf %0, %561 : vector<2x32xf32>
    %596 = arith.addf %595, %592 : vector<2x32xf32>
    %c0_198 = arith.constant 0 : index
    %c0_199 = arith.constant 0 : index
    %597 = vector.load %arg11[%c0_198, %c0_199] : memref<16x64xf32, #tpu.memory_space<vmem>>, vector<16x64xf32>
    %c1_200 = arith.constant 1 : index
    %c0_201 = arith.constant 0 : index
    %c0_202 = arith.constant 0 : index
    %598 = vector.load %arg1[%c1_200, %c0_201, %c0_202] : memref<2x64x256xf32, #tpu.memory_space<vmem>>, vector<1x64x256xf32>
    %599 = vector.shape_cast %598 : vector<1x64x256xf32> to vector<64x256xf32>
    %cst_203 = arith.constant dense<0.000000e+00> : vector<16x256xf32>
    %600 = tpu.matmul %597, %599, %cst_203 {dimension_numbers = #tpu.dot_dimension_numbers<[1], [0], [0], [1], [0, 0, 1, 1], [], []>} : vector<16x64xf32>, vector<64x256xf32>, vector<16x256xf32> -> vector<16x256xf32>
    %c1_204 = arith.constant 1 : index
    %c0_205 = arith.constant 0 : index
    %c0_206 = arith.constant 0 : index
    %601 = vector.load %arg3[%c1_204, %c0_205, %c0_206] : memref<2x1x256xf32, #tpu.memory_space<vmem>>, vector<1x1x256xf32>
    %602 = vector.shape_cast %601 : vector<1x1x256xf32> to vector<1x256xf32>
    %603 = vector.broadcast %602 : vector<1x256xf32> to vector<16x256xf32>
    %604 = arith.addf %600, %603 : vector<16x256xf32>
    %c2_207 = arith.constant 2 : index
    %c0_208 = arith.constant 0 : index
    %c0_209 = arith.constant 0 : index
    %605 = vector.load %arg4[%c2_207, %c0_208, %c0_209] : memref<4x2x32xf32, #tpu.memory_space<vmem>>, vector<1x2x32xf32>
    %606 = vector.shape_cast %605 : vector<1x2x32xf32> to vector<2x32xf32>
    %c3 = arith.constant 3 : index
    %c0_210 = arith.constant 0 : index
    %c0_211 = arith.constant 0 : index
    %607 = vector.load %arg4[%c3, %c0_210, %c0_211] : memref<4x2x32xf32, #tpu.memory_space<vmem>>, vector<1x2x32xf32>
    %608 = vector.shape_cast %607 : vector<1x2x32xf32> to vector<2x32xf32>
    %c2_212 = arith.constant 2 : index
    %c0_213 = arith.constant 0 : index
    %c0_214 = arith.constant 0 : index
    %609 = vector.load %arg5[%c2_212, %c0_213, %c0_214] : memref<4x2x32xf32, #tpu.memory_space<vmem>>, vector<1x2x32xf32>
    %610 = vector.shape_cast %609 : vector<1x2x32xf32> to vector<2x32xf32>
    %c3_215 = arith.constant 3 : index
    %c0_216 = arith.constant 0 : index
    %c0_217 = arith.constant 0 : index
    %611 = vector.load %arg5[%c3_215, %c0_216, %c0_217] : memref<4x2x32xf32, #tpu.memory_space<vmem>>, vector<1x2x32xf32>
    %612 = vector.shape_cast %611 : vector<1x2x32xf32> to vector<2x32xf32>
    %613 = tpu.concatenate %606, %608 in 1 : vector<2x32xf32>, vector<2x32xf32> -> vector<2x64xf32>
    %c1_218 = arith.constant 1 : index
    %c0_219 = arith.constant 0 : index
    %c0_220 = arith.constant 0 : index
    %614 = vector.load %arg2[%c1_218, %c0_219, %c0_220] : memref<2x64x256xf32, #tpu.memory_space<vmem>>, vector<1x64x256xf32>
    %615 = vector.shape_cast %614 : vector<1x64x256xf32> to vector<64x256xf32>
    %cst_221 = arith.constant dense<0.000000e+00> : vector<2x256xf32>
    %616 = tpu.matmul %613, %615, %cst_221 {dimension_numbers = #tpu.dot_dimension_numbers<[1], [0], [0], [1], [0, 0, 1, 1], [], []>} : vector<2x64xf32>, vector<64x256xf32>, vector<2x256xf32> -> vector<2x256xf32>
    %617 = vector.extract_strided_slice %604 {offsets = [0, 0], sizes = [2, 128], strides = [1, 1]} : vector<16x256xf32> to vector<2x128xf32>
    %618 = vector.extract_strided_slice %616 {offsets = [0, 0], sizes = [2, 128], strides = [1, 1]} : vector<2x256xf32> to vector<2x128xf32>
    %619 = arith.addf %617, %618 : vector<2x128xf32>
    %620 = vector.extract_strided_slice %604 {offsets = [14, 128], sizes = [2, 128], strides = [1, 1]} : vector<16x256xf32> to vector<2x128xf32>
    %621 = vector.extract_strided_slice %616 {offsets = [0, 128], sizes = [2, 128], strides = [1, 1]} : vector<2x256xf32> to vector<2x128xf32>
    %622 = arith.addf %620, %621 : vector<2x128xf32>
    %623 = vector.extract_strided_slice %619 {offsets = [0, 0], sizes = [2, 32], strides = [1, 1]} : vector<2x128xf32> to vector<2x32xf32>
    %cst_222 = arith.constant 0.000000e+00 : f32
    %624 = vector.broadcast %cst_222 : f32 to vector<2x32xf32>
    %625 = arith.subf %624, %623 : vector<2x32xf32>
    %626 = math.exp %625 : vector<2x32xf32>
    %cst_223 = arith.constant 1.000000e+00 : f32
    %627 = vector.broadcast %cst_223 : f32 to vector<2x32xf32>
    %628 = arith.addf %627, %626 : vector<2x32xf32>
    %cst_224 = arith.constant 1.000000e+00 : f32
    %629 = vector.broadcast %cst_224 : f32 to vector<2x32xf32>
    %630 = arith.divf %629, %628 : vector<2x32xf32>
    %631 = vector.extract_strided_slice %619 {offsets = [0, 32], sizes = [2, 32], strides = [1, 1]} : vector<2x128xf32> to vector<2x32xf32>
    %cst_225 = arith.constant 0.000000e+00 : f32
    %632 = vector.broadcast %cst_225 : f32 to vector<2x32xf32>
    %633 = arith.subf %632, %631 : vector<2x32xf32>
    %634 = math.exp %633 : vector<2x32xf32>
    %cst_226 = arith.constant 1.000000e+00 : f32
    %635 = vector.broadcast %cst_226 : f32 to vector<2x32xf32>
    %636 = arith.addf %635, %634 : vector<2x32xf32>
    %cst_227 = arith.constant 1.000000e+00 : f32
    %637 = vector.broadcast %cst_227 : f32 to vector<2x32xf32>
    %638 = arith.divf %637, %636 : vector<2x32xf32>
    %639 = vector.extract_strided_slice %619 {offsets = [0, 64], sizes = [2, 32], strides = [1, 1]} : vector<2x128xf32> to vector<2x32xf32>
    %640 = math.tanh %639 : vector<2x32xf32>
    %641 = vector.extract_strided_slice %619 {offsets = [0, 96], sizes = [2, 32], strides = [1, 1]} : vector<2x128xf32> to vector<2x32xf32>
    %cst_228 = arith.constant 0.000000e+00 : f32
    %642 = vector.broadcast %cst_228 : f32 to vector<2x32xf32>
    %643 = arith.subf %642, %641 : vector<2x32xf32>
    %644 = math.exp %643 : vector<2x32xf32>
    %cst_229 = arith.constant 1.000000e+00 : f32
    %645 = vector.broadcast %cst_229 : f32 to vector<2x32xf32>
    %646 = arith.addf %645, %644 : vector<2x32xf32>
    %cst_230 = arith.constant 1.000000e+00 : f32
    %647 = vector.broadcast %cst_230 : f32 to vector<2x32xf32>
    %648 = arith.divf %647, %646 : vector<2x32xf32>
    %649 = arith.mulf %638, %610 : vector<2x32xf32>
    %650 = arith.mulf %630, %640 : vector<2x32xf32>
    %651 = arith.addf %649, %650 : vector<2x32xf32>
    %652 = math.tanh %651 : vector<2x32xf32>
    %653 = arith.mulf %648, %652 : vector<2x32xf32>
    %654 = vector.extract_strided_slice %622 {offsets = [0, 0], sizes = [2, 32], strides = [1, 1]} : vector<2x128xf32> to vector<2x32xf32>
    %cst_231 = arith.constant 0.000000e+00 : f32
    %655 = vector.broadcast %cst_231 : f32 to vector<2x32xf32>
    %656 = arith.subf %655, %654 : vector<2x32xf32>
    %657 = math.exp %656 : vector<2x32xf32>
    %cst_232 = arith.constant 1.000000e+00 : f32
    %658 = vector.broadcast %cst_232 : f32 to vector<2x32xf32>
    %659 = arith.addf %658, %657 : vector<2x32xf32>
    %cst_233 = arith.constant 1.000000e+00 : f32
    %660 = vector.broadcast %cst_233 : f32 to vector<2x32xf32>
    %661 = arith.divf %660, %659 : vector<2x32xf32>
    %662 = vector.extract_strided_slice %622 {offsets = [0, 32], sizes = [2, 32], strides = [1, 1]} : vector<2x128xf32> to vector<2x32xf32>
    %cst_234 = arith.constant 0.000000e+00 : f32
    %663 = vector.broadcast %cst_234 : f32 to vector<2x32xf32>
    %664 = arith.subf %663, %662 : vector<2x32xf32>
    %665 = math.exp %664 : vector<2x32xf32>
    %cst_235 = arith.constant 1.000000e+00 : f32
    %666 = vector.broadcast %cst_235 : f32 to vector<2x32xf32>
    %667 = arith.addf %666, %665 : vector<2x32xf32>
    %cst_236 = arith.constant 1.000000e+00 : f32
    %668 = vector.broadcast %cst_236 : f32 to vector<2x32xf32>
    %669 = arith.divf %668, %667 : vector<2x32xf32>
    %670 = vector.extract_strided_slice %622 {offsets = [0, 64], sizes = [2, 32], strides = [1, 1]} : vector<2x128xf32> to vector<2x32xf32>
    %671 = math.tanh %670 : vector<2x32xf32>
    %672 = vector.extract_strided_slice %622 {offsets = [0, 96], sizes = [2, 32], strides = [1, 1]} : vector<2x128xf32> to vector<2x32xf32>
    %cst_237 = arith.constant 0.000000e+00 : f32
    %673 = vector.broadcast %cst_237 : f32 to vector<2x32xf32>
    %674 = arith.subf %673, %672 : vector<2x32xf32>
    %675 = math.exp %674 : vector<2x32xf32>
    %cst_238 = arith.constant 1.000000e+00 : f32
    %676 = vector.broadcast %cst_238 : f32 to vector<2x32xf32>
    %677 = arith.addf %676, %675 : vector<2x32xf32>
    %cst_239 = arith.constant 1.000000e+00 : f32
    %678 = vector.broadcast %cst_239 : f32 to vector<2x32xf32>
    %679 = arith.divf %678, %677 : vector<2x32xf32>
    %680 = arith.mulf %669, %612 : vector<2x32xf32>
    %681 = arith.mulf %661, %671 : vector<2x32xf32>
    %682 = arith.addf %680, %681 : vector<2x32xf32>
    %683 = math.tanh %682 : vector<2x32xf32>
    %684 = arith.mulf %679, %683 : vector<2x32xf32>
    %685 = tpu.concatenate %653, %684 in 1 : vector<2x32xf32>, vector<2x32xf32> -> vector<2x64xf32>
    %cst_240 = arith.constant dense<0.000000e+00> : vector<2x256xf32>
    %686 = tpu.matmul %685, %615, %cst_240 {dimension_numbers = #tpu.dot_dimension_numbers<[1], [0], [0], [1], [0, 0, 1, 1], [], []>} : vector<2x64xf32>, vector<64x256xf32>, vector<2x256xf32> -> vector<2x256xf32>
    %687 = vector.extract_strided_slice %604 {offsets = [2, 0], sizes = [2, 128], strides = [1, 1]} : vector<16x256xf32> to vector<2x128xf32>
    %688 = vector.extract_strided_slice %686 {offsets = [0, 0], sizes = [2, 128], strides = [1, 1]} : vector<2x256xf32> to vector<2x128xf32>
    %689 = arith.addf %687, %688 : vector<2x128xf32>
    %690 = vector.extract_strided_slice %604 {offsets = [12, 128], sizes = [2, 128], strides = [1, 1]} : vector<16x256xf32> to vector<2x128xf32>
    %691 = vector.extract_strided_slice %686 {offsets = [0, 128], sizes = [2, 128], strides = [1, 1]} : vector<2x256xf32> to vector<2x128xf32>
    %692 = arith.addf %690, %691 : vector<2x128xf32>
    %693 = vector.extract_strided_slice %689 {offsets = [0, 0], sizes = [2, 32], strides = [1, 1]} : vector<2x128xf32> to vector<2x32xf32>
    %cst_241 = arith.constant 0.000000e+00 : f32
    %694 = vector.broadcast %cst_241 : f32 to vector<2x32xf32>
    %695 = arith.subf %694, %693 : vector<2x32xf32>
    %696 = math.exp %695 : vector<2x32xf32>
    %cst_242 = arith.constant 1.000000e+00 : f32
    %697 = vector.broadcast %cst_242 : f32 to vector<2x32xf32>
    %698 = arith.addf %697, %696 : vector<2x32xf32>
    %cst_243 = arith.constant 1.000000e+00 : f32
    %699 = vector.broadcast %cst_243 : f32 to vector<2x32xf32>
    %700 = arith.divf %699, %698 : vector<2x32xf32>
    %701 = vector.extract_strided_slice %689 {offsets = [0, 32], sizes = [2, 32], strides = [1, 1]} : vector<2x128xf32> to vector<2x32xf32>
    %cst_244 = arith.constant 0.000000e+00 : f32
    %702 = vector.broadcast %cst_244 : f32 to vector<2x32xf32>
    %703 = arith.subf %702, %701 : vector<2x32xf32>
    %704 = math.exp %703 : vector<2x32xf32>
    %cst_245 = arith.constant 1.000000e+00 : f32
    %705 = vector.broadcast %cst_245 : f32 to vector<2x32xf32>
    %706 = arith.addf %705, %704 : vector<2x32xf32>
    %cst_246 = arith.constant 1.000000e+00 : f32
    %707 = vector.broadcast %cst_246 : f32 to vector<2x32xf32>
    %708 = arith.divf %707, %706 : vector<2x32xf32>
    %709 = vector.extract_strided_slice %689 {offsets = [0, 64], sizes = [2, 32], strides = [1, 1]} : vector<2x128xf32> to vector<2x32xf32>
    %710 = math.tanh %709 : vector<2x32xf32>
    %711 = vector.extract_strided_slice %689 {offsets = [0, 96], sizes = [2, 32], strides = [1, 1]} : vector<2x128xf32> to vector<2x32xf32>
    %cst_247 = arith.constant 0.000000e+00 : f32
    %712 = vector.broadcast %cst_247 : f32 to vector<2x32xf32>
    %713 = arith.subf %712, %711 : vector<2x32xf32>
    %714 = math.exp %713 : vector<2x32xf32>
    %cst_248 = arith.constant 1.000000e+00 : f32
    %715 = vector.broadcast %cst_248 : f32 to vector<2x32xf32>
    %716 = arith.addf %715, %714 : vector<2x32xf32>
    %cst_249 = arith.constant 1.000000e+00 : f32
    %717 = vector.broadcast %cst_249 : f32 to vector<2x32xf32>
    %718 = arith.divf %717, %716 : vector<2x32xf32>
    %719 = arith.mulf %708, %651 : vector<2x32xf32>
    %720 = arith.mulf %700, %710 : vector<2x32xf32>
    %721 = arith.addf %719, %720 : vector<2x32xf32>
    %722 = math.tanh %721 : vector<2x32xf32>
    %723 = arith.mulf %718, %722 : vector<2x32xf32>
    %724 = vector.extract_strided_slice %692 {offsets = [0, 0], sizes = [2, 32], strides = [1, 1]} : vector<2x128xf32> to vector<2x32xf32>
    %cst_250 = arith.constant 0.000000e+00 : f32
    %725 = vector.broadcast %cst_250 : f32 to vector<2x32xf32>
    %726 = arith.subf %725, %724 : vector<2x32xf32>
    %727 = math.exp %726 : vector<2x32xf32>
    %cst_251 = arith.constant 1.000000e+00 : f32
    %728 = vector.broadcast %cst_251 : f32 to vector<2x32xf32>
    %729 = arith.addf %728, %727 : vector<2x32xf32>
    %cst_252 = arith.constant 1.000000e+00 : f32
    %730 = vector.broadcast %cst_252 : f32 to vector<2x32xf32>
    %731 = arith.divf %730, %729 : vector<2x32xf32>
    %732 = vector.extract_strided_slice %692 {offsets = [0, 32], sizes = [2, 32], strides = [1, 1]} : vector<2x128xf32> to vector<2x32xf32>
    %cst_253 = arith.constant 0.000000e+00 : f32
    %733 = vector.broadcast %cst_253 : f32 to vector<2x32xf32>
    %734 = arith.subf %733, %732 : vector<2x32xf32>
    %735 = math.exp %734 : vector<2x32xf32>
    %cst_254 = arith.constant 1.000000e+00 : f32
    %736 = vector.broadcast %cst_254 : f32 to vector<2x32xf32>
    %737 = arith.addf %736, %735 : vector<2x32xf32>
    %cst_255 = arith.constant 1.000000e+00 : f32
    %738 = vector.broadcast %cst_255 : f32 to vector<2x32xf32>
    %739 = arith.divf %738, %737 : vector<2x32xf32>
    %740 = vector.extract_strided_slice %692 {offsets = [0, 64], sizes = [2, 32], strides = [1, 1]} : vector<2x128xf32> to vector<2x32xf32>
    %741 = math.tanh %740 : vector<2x32xf32>
    %742 = vector.extract_strided_slice %692 {offsets = [0, 96], sizes = [2, 32], strides = [1, 1]} : vector<2x128xf32> to vector<2x32xf32>
    %cst_256 = arith.constant 0.000000e+00 : f32
    %743 = vector.broadcast %cst_256 : f32 to vector<2x32xf32>
    %744 = arith.subf %743, %742 : vector<2x32xf32>
    %745 = math.exp %744 : vector<2x32xf32>
    %cst_257 = arith.constant 1.000000e+00 : f32
    %746 = vector.broadcast %cst_257 : f32 to vector<2x32xf32>
    %747 = arith.addf %746, %745 : vector<2x32xf32>
    %cst_258 = arith.constant 1.000000e+00 : f32
    %748 = vector.broadcast %cst_258 : f32 to vector<2x32xf32>
    %749 = arith.divf %748, %747 : vector<2x32xf32>
    %750 = arith.mulf %739, %682 : vector<2x32xf32>
    %751 = arith.mulf %731, %741 : vector<2x32xf32>
    %752 = arith.addf %750, %751 : vector<2x32xf32>
    %753 = math.tanh %752 : vector<2x32xf32>
    %754 = arith.mulf %749, %753 : vector<2x32xf32>
    %755 = tpu.concatenate %723, %754 in 1 : vector<2x32xf32>, vector<2x32xf32> -> vector<2x64xf32>
    %cst_259 = arith.constant dense<0.000000e+00> : vector<2x256xf32>
    %756 = tpu.matmul %755, %615, %cst_259 {dimension_numbers = #tpu.dot_dimension_numbers<[1], [0], [0], [1], [0, 0, 1, 1], [], []>} : vector<2x64xf32>, vector<64x256xf32>, vector<2x256xf32> -> vector<2x256xf32>
    %757 = vector.extract_strided_slice %604 {offsets = [4, 0], sizes = [2, 128], strides = [1, 1]} : vector<16x256xf32> to vector<2x128xf32>
    %758 = vector.extract_strided_slice %756 {offsets = [0, 0], sizes = [2, 128], strides = [1, 1]} : vector<2x256xf32> to vector<2x128xf32>
    %759 = arith.addf %757, %758 : vector<2x128xf32>
    %760 = vector.extract_strided_slice %604 {offsets = [10, 128], sizes = [2, 128], strides = [1, 1]} : vector<16x256xf32> to vector<2x128xf32>
    %761 = vector.extract_strided_slice %756 {offsets = [0, 128], sizes = [2, 128], strides = [1, 1]} : vector<2x256xf32> to vector<2x128xf32>
    %762 = arith.addf %760, %761 : vector<2x128xf32>
    %763 = vector.extract_strided_slice %759 {offsets = [0, 0], sizes = [2, 32], strides = [1, 1]} : vector<2x128xf32> to vector<2x32xf32>
    %cst_260 = arith.constant 0.000000e+00 : f32
    %764 = vector.broadcast %cst_260 : f32 to vector<2x32xf32>
    %765 = arith.subf %764, %763 : vector<2x32xf32>
    %766 = math.exp %765 : vector<2x32xf32>
    %cst_261 = arith.constant 1.000000e+00 : f32
    %767 = vector.broadcast %cst_261 : f32 to vector<2x32xf32>
    %768 = arith.addf %767, %766 : vector<2x32xf32>
    %cst_262 = arith.constant 1.000000e+00 : f32
    %769 = vector.broadcast %cst_262 : f32 to vector<2x32xf32>
    %770 = arith.divf %769, %768 : vector<2x32xf32>
    %771 = vector.extract_strided_slice %759 {offsets = [0, 32], sizes = [2, 32], strides = [1, 1]} : vector<2x128xf32> to vector<2x32xf32>
    %cst_263 = arith.constant 0.000000e+00 : f32
    %772 = vector.broadcast %cst_263 : f32 to vector<2x32xf32>
    %773 = arith.subf %772, %771 : vector<2x32xf32>
    %774 = math.exp %773 : vector<2x32xf32>
    %cst_264 = arith.constant 1.000000e+00 : f32
    %775 = vector.broadcast %cst_264 : f32 to vector<2x32xf32>
    %776 = arith.addf %775, %774 : vector<2x32xf32>
    %cst_265 = arith.constant 1.000000e+00 : f32
    %777 = vector.broadcast %cst_265 : f32 to vector<2x32xf32>
    %778 = arith.divf %777, %776 : vector<2x32xf32>
    %779 = vector.extract_strided_slice %759 {offsets = [0, 64], sizes = [2, 32], strides = [1, 1]} : vector<2x128xf32> to vector<2x32xf32>
    %780 = math.tanh %779 : vector<2x32xf32>
    %781 = vector.extract_strided_slice %759 {offsets = [0, 96], sizes = [2, 32], strides = [1, 1]} : vector<2x128xf32> to vector<2x32xf32>
    %cst_266 = arith.constant 0.000000e+00 : f32
    %782 = vector.broadcast %cst_266 : f32 to vector<2x32xf32>
    %783 = arith.subf %782, %781 : vector<2x32xf32>
    %784 = math.exp %783 : vector<2x32xf32>
    %cst_267 = arith.constant 1.000000e+00 : f32
    %785 = vector.broadcast %cst_267 : f32 to vector<2x32xf32>
    %786 = arith.addf %785, %784 : vector<2x32xf32>
    %cst_268 = arith.constant 1.000000e+00 : f32
    %787 = vector.broadcast %cst_268 : f32 to vector<2x32xf32>
    %788 = arith.divf %787, %786 : vector<2x32xf32>
    %789 = arith.mulf %778, %721 : vector<2x32xf32>
    %790 = arith.mulf %770, %780 : vector<2x32xf32>
    %791 = arith.addf %789, %790 : vector<2x32xf32>
    %792 = math.tanh %791 : vector<2x32xf32>
    %793 = arith.mulf %788, %792 : vector<2x32xf32>
    %794 = vector.extract_strided_slice %762 {offsets = [0, 0], sizes = [2, 32], strides = [1, 1]} : vector<2x128xf32> to vector<2x32xf32>
    %cst_269 = arith.constant 0.000000e+00 : f32
    %795 = vector.broadcast %cst_269 : f32 to vector<2x32xf32>
    %796 = arith.subf %795, %794 : vector<2x32xf32>
    %797 = math.exp %796 : vector<2x32xf32>
    %cst_270 = arith.constant 1.000000e+00 : f32
    %798 = vector.broadcast %cst_270 : f32 to vector<2x32xf32>
    %799 = arith.addf %798, %797 : vector<2x32xf32>
    %cst_271 = arith.constant 1.000000e+00 : f32
    %800 = vector.broadcast %cst_271 : f32 to vector<2x32xf32>
    %801 = arith.divf %800, %799 : vector<2x32xf32>
    %802 = vector.extract_strided_slice %762 {offsets = [0, 32], sizes = [2, 32], strides = [1, 1]} : vector<2x128xf32> to vector<2x32xf32>
    %cst_272 = arith.constant 0.000000e+00 : f32
    %803 = vector.broadcast %cst_272 : f32 to vector<2x32xf32>
    %804 = arith.subf %803, %802 : vector<2x32xf32>
    %805 = math.exp %804 : vector<2x32xf32>
    %cst_273 = arith.constant 1.000000e+00 : f32
    %806 = vector.broadcast %cst_273 : f32 to vector<2x32xf32>
    %807 = arith.addf %806, %805 : vector<2x32xf32>
    %cst_274 = arith.constant 1.000000e+00 : f32
    %808 = vector.broadcast %cst_274 : f32 to vector<2x32xf32>
    %809 = arith.divf %808, %807 : vector<2x32xf32>
    %810 = vector.extract_strided_slice %762 {offsets = [0, 64], sizes = [2, 32], strides = [1, 1]} : vector<2x128xf32> to vector<2x32xf32>
    %811 = math.tanh %810 : vector<2x32xf32>
    %812 = vector.extract_strided_slice %762 {offsets = [0, 96], sizes = [2, 32], strides = [1, 1]} : vector<2x128xf32> to vector<2x32xf32>
    %cst_275 = arith.constant 0.000000e+00 : f32
    %813 = vector.broadcast %cst_275 : f32 to vector<2x32xf32>
    %814 = arith.subf %813, %812 : vector<2x32xf32>
    %815 = math.exp %814 : vector<2x32xf32>
    %cst_276 = arith.constant 1.000000e+00 : f32
    %816 = vector.broadcast %cst_276 : f32 to vector<2x32xf32>
    %817 = arith.addf %816, %815 : vector<2x32xf32>
    %cst_277 = arith.constant 1.000000e+00 : f32
    %818 = vector.broadcast %cst_277 : f32 to vector<2x32xf32>
    %819 = arith.divf %818, %817 : vector<2x32xf32>
    %820 = arith.mulf %809, %752 : vector<2x32xf32>
    %821 = arith.mulf %801, %811 : vector<2x32xf32>
    %822 = arith.addf %820, %821 : vector<2x32xf32>
    %823 = math.tanh %822 : vector<2x32xf32>
    %824 = arith.mulf %819, %823 : vector<2x32xf32>
    %825 = tpu.concatenate %793, %824 in 1 : vector<2x32xf32>, vector<2x32xf32> -> vector<2x64xf32>
    %cst_278 = arith.constant dense<0.000000e+00> : vector<2x256xf32>
    %826 = tpu.matmul %825, %615, %cst_278 {dimension_numbers = #tpu.dot_dimension_numbers<[1], [0], [0], [1], [0, 0, 1, 1], [], []>} : vector<2x64xf32>, vector<64x256xf32>, vector<2x256xf32> -> vector<2x256xf32>
    %827 = vector.extract_strided_slice %604 {offsets = [6, 0], sizes = [2, 128], strides = [1, 1]} : vector<16x256xf32> to vector<2x128xf32>
    %828 = vector.extract_strided_slice %826 {offsets = [0, 0], sizes = [2, 128], strides = [1, 1]} : vector<2x256xf32> to vector<2x128xf32>
    %829 = arith.addf %827, %828 : vector<2x128xf32>
    %830 = vector.extract_strided_slice %604 {offsets = [8, 128], sizes = [2, 128], strides = [1, 1]} : vector<16x256xf32> to vector<2x128xf32>
    %831 = vector.extract_strided_slice %826 {offsets = [0, 128], sizes = [2, 128], strides = [1, 1]} : vector<2x256xf32> to vector<2x128xf32>
    %832 = arith.addf %830, %831 : vector<2x128xf32>
    %833 = vector.extract_strided_slice %829 {offsets = [0, 0], sizes = [2, 32], strides = [1, 1]} : vector<2x128xf32> to vector<2x32xf32>
    %cst_279 = arith.constant 0.000000e+00 : f32
    %834 = vector.broadcast %cst_279 : f32 to vector<2x32xf32>
    %835 = arith.subf %834, %833 : vector<2x32xf32>
    %836 = math.exp %835 : vector<2x32xf32>
    %cst_280 = arith.constant 1.000000e+00 : f32
    %837 = vector.broadcast %cst_280 : f32 to vector<2x32xf32>
    %838 = arith.addf %837, %836 : vector<2x32xf32>
    %cst_281 = arith.constant 1.000000e+00 : f32
    %839 = vector.broadcast %cst_281 : f32 to vector<2x32xf32>
    %840 = arith.divf %839, %838 : vector<2x32xf32>
    %841 = vector.extract_strided_slice %829 {offsets = [0, 32], sizes = [2, 32], strides = [1, 1]} : vector<2x128xf32> to vector<2x32xf32>
    %cst_282 = arith.constant 0.000000e+00 : f32
    %842 = vector.broadcast %cst_282 : f32 to vector<2x32xf32>
    %843 = arith.subf %842, %841 : vector<2x32xf32>
    %844 = math.exp %843 : vector<2x32xf32>
    %cst_283 = arith.constant 1.000000e+00 : f32
    %845 = vector.broadcast %cst_283 : f32 to vector<2x32xf32>
    %846 = arith.addf %845, %844 : vector<2x32xf32>
    %cst_284 = arith.constant 1.000000e+00 : f32
    %847 = vector.broadcast %cst_284 : f32 to vector<2x32xf32>
    %848 = arith.divf %847, %846 : vector<2x32xf32>
    %849 = vector.extract_strided_slice %829 {offsets = [0, 64], sizes = [2, 32], strides = [1, 1]} : vector<2x128xf32> to vector<2x32xf32>
    %850 = math.tanh %849 : vector<2x32xf32>
    %851 = vector.extract_strided_slice %829 {offsets = [0, 96], sizes = [2, 32], strides = [1, 1]} : vector<2x128xf32> to vector<2x32xf32>
    %cst_285 = arith.constant 0.000000e+00 : f32
    %852 = vector.broadcast %cst_285 : f32 to vector<2x32xf32>
    %853 = arith.subf %852, %851 : vector<2x32xf32>
    %854 = math.exp %853 : vector<2x32xf32>
    %cst_286 = arith.constant 1.000000e+00 : f32
    %855 = vector.broadcast %cst_286 : f32 to vector<2x32xf32>
    %856 = arith.addf %855, %854 : vector<2x32xf32>
    %cst_287 = arith.constant 1.000000e+00 : f32
    %857 = vector.broadcast %cst_287 : f32 to vector<2x32xf32>
    %858 = arith.divf %857, %856 : vector<2x32xf32>
    %859 = arith.mulf %848, %791 : vector<2x32xf32>
    %860 = arith.mulf %840, %850 : vector<2x32xf32>
    %861 = arith.addf %859, %860 : vector<2x32xf32>
    %862 = math.tanh %861 : vector<2x32xf32>
    %863 = arith.mulf %858, %862 : vector<2x32xf32>
    %864 = vector.extract_strided_slice %832 {offsets = [0, 0], sizes = [2, 32], strides = [1, 1]} : vector<2x128xf32> to vector<2x32xf32>
    %cst_288 = arith.constant 0.000000e+00 : f32
    %865 = vector.broadcast %cst_288 : f32 to vector<2x32xf32>
    %866 = arith.subf %865, %864 : vector<2x32xf32>
    %867 = math.exp %866 : vector<2x32xf32>
    %cst_289 = arith.constant 1.000000e+00 : f32
    %868 = vector.broadcast %cst_289 : f32 to vector<2x32xf32>
    %869 = arith.addf %868, %867 : vector<2x32xf32>
    %cst_290 = arith.constant 1.000000e+00 : f32
    %870 = vector.broadcast %cst_290 : f32 to vector<2x32xf32>
    %871 = arith.divf %870, %869 : vector<2x32xf32>
    %872 = vector.extract_strided_slice %832 {offsets = [0, 32], sizes = [2, 32], strides = [1, 1]} : vector<2x128xf32> to vector<2x32xf32>
    %cst_291 = arith.constant 0.000000e+00 : f32
    %873 = vector.broadcast %cst_291 : f32 to vector<2x32xf32>
    %874 = arith.subf %873, %872 : vector<2x32xf32>
    %875 = math.exp %874 : vector<2x32xf32>
    %cst_292 = arith.constant 1.000000e+00 : f32
    %876 = vector.broadcast %cst_292 : f32 to vector<2x32xf32>
    %877 = arith.addf %876, %875 : vector<2x32xf32>
    %cst_293 = arith.constant 1.000000e+00 : f32
    %878 = vector.broadcast %cst_293 : f32 to vector<2x32xf32>
    %879 = arith.divf %878, %877 : vector<2x32xf32>
    %880 = vector.extract_strided_slice %832 {offsets = [0, 64], sizes = [2, 32], strides = [1, 1]} : vector<2x128xf32> to vector<2x32xf32>
    %881 = math.tanh %880 : vector<2x32xf32>
    %882 = vector.extract_strided_slice %832 {offsets = [0, 96], sizes = [2, 32], strides = [1, 1]} : vector<2x128xf32> to vector<2x32xf32>
    %cst_294 = arith.constant 0.000000e+00 : f32
    %883 = vector.broadcast %cst_294 : f32 to vector<2x32xf32>
    %884 = arith.subf %883, %882 : vector<2x32xf32>
    %885 = math.exp %884 : vector<2x32xf32>
    %cst_295 = arith.constant 1.000000e+00 : f32
    %886 = vector.broadcast %cst_295 : f32 to vector<2x32xf32>
    %887 = arith.addf %886, %885 : vector<2x32xf32>
    %cst_296 = arith.constant 1.000000e+00 : f32
    %888 = vector.broadcast %cst_296 : f32 to vector<2x32xf32>
    %889 = arith.divf %888, %887 : vector<2x32xf32>
    %890 = arith.mulf %879, %822 : vector<2x32xf32>
    %891 = arith.mulf %871, %881 : vector<2x32xf32>
    %892 = arith.addf %890, %891 : vector<2x32xf32>
    %893 = math.tanh %892 : vector<2x32xf32>
    %894 = arith.mulf %889, %893 : vector<2x32xf32>
    %895 = tpu.concatenate %863, %894 in 1 : vector<2x32xf32>, vector<2x32xf32> -> vector<2x64xf32>
    %cst_297 = arith.constant dense<0.000000e+00> : vector<2x256xf32>
    %896 = tpu.matmul %895, %615, %cst_297 {dimension_numbers = #tpu.dot_dimension_numbers<[1], [0], [0], [1], [0, 0, 1, 1], [], []>} : vector<2x64xf32>, vector<64x256xf32>, vector<2x256xf32> -> vector<2x256xf32>
    %897 = vector.extract_strided_slice %604 {offsets = [8, 0], sizes = [2, 128], strides = [1, 1]} : vector<16x256xf32> to vector<2x128xf32>
    %898 = vector.extract_strided_slice %896 {offsets = [0, 0], sizes = [2, 128], strides = [1, 1]} : vector<2x256xf32> to vector<2x128xf32>
    %899 = arith.addf %897, %898 : vector<2x128xf32>
    %900 = vector.extract_strided_slice %604 {offsets = [6, 128], sizes = [2, 128], strides = [1, 1]} : vector<16x256xf32> to vector<2x128xf32>
    %901 = vector.extract_strided_slice %896 {offsets = [0, 128], sizes = [2, 128], strides = [1, 1]} : vector<2x256xf32> to vector<2x128xf32>
    %902 = arith.addf %900, %901 : vector<2x128xf32>
    %903 = vector.extract_strided_slice %899 {offsets = [0, 0], sizes = [2, 32], strides = [1, 1]} : vector<2x128xf32> to vector<2x32xf32>
    %cst_298 = arith.constant 0.000000e+00 : f32
    %904 = vector.broadcast %cst_298 : f32 to vector<2x32xf32>
    %905 = arith.subf %904, %903 : vector<2x32xf32>
    %906 = math.exp %905 : vector<2x32xf32>
    %cst_299 = arith.constant 1.000000e+00 : f32
    %907 = vector.broadcast %cst_299 : f32 to vector<2x32xf32>
    %908 = arith.addf %907, %906 : vector<2x32xf32>
    %cst_300 = arith.constant 1.000000e+00 : f32
    %909 = vector.broadcast %cst_300 : f32 to vector<2x32xf32>
    %910 = arith.divf %909, %908 : vector<2x32xf32>
    %911 = vector.extract_strided_slice %899 {offsets = [0, 32], sizes = [2, 32], strides = [1, 1]} : vector<2x128xf32> to vector<2x32xf32>
    %cst_301 = arith.constant 0.000000e+00 : f32
    %912 = vector.broadcast %cst_301 : f32 to vector<2x32xf32>
    %913 = arith.subf %912, %911 : vector<2x32xf32>
    %914 = math.exp %913 : vector<2x32xf32>
    %cst_302 = arith.constant 1.000000e+00 : f32
    %915 = vector.broadcast %cst_302 : f32 to vector<2x32xf32>
    %916 = arith.addf %915, %914 : vector<2x32xf32>
    %cst_303 = arith.constant 1.000000e+00 : f32
    %917 = vector.broadcast %cst_303 : f32 to vector<2x32xf32>
    %918 = arith.divf %917, %916 : vector<2x32xf32>
    %919 = vector.extract_strided_slice %899 {offsets = [0, 64], sizes = [2, 32], strides = [1, 1]} : vector<2x128xf32> to vector<2x32xf32>
    %920 = math.tanh %919 : vector<2x32xf32>
    %921 = vector.extract_strided_slice %899 {offsets = [0, 96], sizes = [2, 32], strides = [1, 1]} : vector<2x128xf32> to vector<2x32xf32>
    %cst_304 = arith.constant 0.000000e+00 : f32
    %922 = vector.broadcast %cst_304 : f32 to vector<2x32xf32>
    %923 = arith.subf %922, %921 : vector<2x32xf32>
    %924 = math.exp %923 : vector<2x32xf32>
    %cst_305 = arith.constant 1.000000e+00 : f32
    %925 = vector.broadcast %cst_305 : f32 to vector<2x32xf32>
    %926 = arith.addf %925, %924 : vector<2x32xf32>
    %cst_306 = arith.constant 1.000000e+00 : f32
    %927 = vector.broadcast %cst_306 : f32 to vector<2x32xf32>
    %928 = arith.divf %927, %926 : vector<2x32xf32>
    %929 = arith.mulf %918, %861 : vector<2x32xf32>
    %930 = arith.mulf %910, %920 : vector<2x32xf32>
    %931 = arith.addf %929, %930 : vector<2x32xf32>
    %932 = math.tanh %931 : vector<2x32xf32>
    %933 = arith.mulf %928, %932 : vector<2x32xf32>
    %934 = vector.extract_strided_slice %902 {offsets = [0, 0], sizes = [2, 32], strides = [1, 1]} : vector<2x128xf32> to vector<2x32xf32>
    %cst_307 = arith.constant 0.000000e+00 : f32
    %935 = vector.broadcast %cst_307 : f32 to vector<2x32xf32>
    %936 = arith.subf %935, %934 : vector<2x32xf32>
    %937 = math.exp %936 : vector<2x32xf32>
    %cst_308 = arith.constant 1.000000e+00 : f32
    %938 = vector.broadcast %cst_308 : f32 to vector<2x32xf32>
    %939 = arith.addf %938, %937 : vector<2x32xf32>
    %cst_309 = arith.constant 1.000000e+00 : f32
    %940 = vector.broadcast %cst_309 : f32 to vector<2x32xf32>
    %941 = arith.divf %940, %939 : vector<2x32xf32>
    %942 = vector.extract_strided_slice %902 {offsets = [0, 32], sizes = [2, 32], strides = [1, 1]} : vector<2x128xf32> to vector<2x32xf32>
    %cst_310 = arith.constant 0.000000e+00 : f32
    %943 = vector.broadcast %cst_310 : f32 to vector<2x32xf32>
    %944 = arith.subf %943, %942 : vector<2x32xf32>
    %945 = math.exp %944 : vector<2x32xf32>
    %cst_311 = arith.constant 1.000000e+00 : f32
    %946 = vector.broadcast %cst_311 : f32 to vector<2x32xf32>
    %947 = arith.addf %946, %945 : vector<2x32xf32>
    %cst_312 = arith.constant 1.000000e+00 : f32
    %948 = vector.broadcast %cst_312 : f32 to vector<2x32xf32>
    %949 = arith.divf %948, %947 : vector<2x32xf32>
    %950 = vector.extract_strided_slice %902 {offsets = [0, 64], sizes = [2, 32], strides = [1, 1]} : vector<2x128xf32> to vector<2x32xf32>
    %951 = math.tanh %950 : vector<2x32xf32>
    %952 = vector.extract_strided_slice %902 {offsets = [0, 96], sizes = [2, 32], strides = [1, 1]} : vector<2x128xf32> to vector<2x32xf32>
    %cst_313 = arith.constant 0.000000e+00 : f32
    %953 = vector.broadcast %cst_313 : f32 to vector<2x32xf32>
    %954 = arith.subf %953, %952 : vector<2x32xf32>
    %955 = math.exp %954 : vector<2x32xf32>
    %cst_314 = arith.constant 1.000000e+00 : f32
    %956 = vector.broadcast %cst_314 : f32 to vector<2x32xf32>
    %957 = arith.addf %956, %955 : vector<2x32xf32>
    %cst_315 = arith.constant 1.000000e+00 : f32
    %958 = vector.broadcast %cst_315 : f32 to vector<2x32xf32>
    %959 = arith.divf %958, %957 : vector<2x32xf32>
    %960 = arith.mulf %949, %892 : vector<2x32xf32>
    %961 = arith.mulf %941, %951 : vector<2x32xf32>
    %962 = arith.addf %960, %961 : vector<2x32xf32>
    %963 = math.tanh %962 : vector<2x32xf32>
    %964 = arith.mulf %959, %963 : vector<2x32xf32>
    %965 = tpu.concatenate %933, %964 in 1 : vector<2x32xf32>, vector<2x32xf32> -> vector<2x64xf32>
    %cst_316 = arith.constant dense<0.000000e+00> : vector<2x256xf32>
    %966 = tpu.matmul %965, %615, %cst_316 {dimension_numbers = #tpu.dot_dimension_numbers<[1], [0], [0], [1], [0, 0, 1, 1], [], []>} : vector<2x64xf32>, vector<64x256xf32>, vector<2x256xf32> -> vector<2x256xf32>
    %967 = vector.extract_strided_slice %604 {offsets = [10, 0], sizes = [2, 128], strides = [1, 1]} : vector<16x256xf32> to vector<2x128xf32>
    %968 = vector.extract_strided_slice %966 {offsets = [0, 0], sizes = [2, 128], strides = [1, 1]} : vector<2x256xf32> to vector<2x128xf32>
    %969 = arith.addf %967, %968 : vector<2x128xf32>
    %970 = vector.extract_strided_slice %604 {offsets = [4, 128], sizes = [2, 128], strides = [1, 1]} : vector<16x256xf32> to vector<2x128xf32>
    %971 = vector.extract_strided_slice %966 {offsets = [0, 128], sizes = [2, 128], strides = [1, 1]} : vector<2x256xf32> to vector<2x128xf32>
    %972 = arith.addf %970, %971 : vector<2x128xf32>
    %973 = vector.extract_strided_slice %969 {offsets = [0, 0], sizes = [2, 32], strides = [1, 1]} : vector<2x128xf32> to vector<2x32xf32>
    %cst_317 = arith.constant 0.000000e+00 : f32
    %974 = vector.broadcast %cst_317 : f32 to vector<2x32xf32>
    %975 = arith.subf %974, %973 : vector<2x32xf32>
    %976 = math.exp %975 : vector<2x32xf32>
    %cst_318 = arith.constant 1.000000e+00 : f32
    %977 = vector.broadcast %cst_318 : f32 to vector<2x32xf32>
    %978 = arith.addf %977, %976 : vector<2x32xf32>
    %cst_319 = arith.constant 1.000000e+00 : f32
    %979 = vector.broadcast %cst_319 : f32 to vector<2x32xf32>
    %980 = arith.divf %979, %978 : vector<2x32xf32>
    %981 = vector.extract_strided_slice %969 {offsets = [0, 32], sizes = [2, 32], strides = [1, 1]} : vector<2x128xf32> to vector<2x32xf32>
    %cst_320 = arith.constant 0.000000e+00 : f32
    %982 = vector.broadcast %cst_320 : f32 to vector<2x32xf32>
    %983 = arith.subf %982, %981 : vector<2x32xf32>
    %984 = math.exp %983 : vector<2x32xf32>
    %cst_321 = arith.constant 1.000000e+00 : f32
    %985 = vector.broadcast %cst_321 : f32 to vector<2x32xf32>
    %986 = arith.addf %985, %984 : vector<2x32xf32>
    %cst_322 = arith.constant 1.000000e+00 : f32
    %987 = vector.broadcast %cst_322 : f32 to vector<2x32xf32>
    %988 = arith.divf %987, %986 : vector<2x32xf32>
    %989 = vector.extract_strided_slice %969 {offsets = [0, 64], sizes = [2, 32], strides = [1, 1]} : vector<2x128xf32> to vector<2x32xf32>
    %990 = math.tanh %989 : vector<2x32xf32>
    %991 = vector.extract_strided_slice %969 {offsets = [0, 96], sizes = [2, 32], strides = [1, 1]} : vector<2x128xf32> to vector<2x32xf32>
    %cst_323 = arith.constant 0.000000e+00 : f32
    %992 = vector.broadcast %cst_323 : f32 to vector<2x32xf32>
    %993 = arith.subf %992, %991 : vector<2x32xf32>
    %994 = math.exp %993 : vector<2x32xf32>
    %cst_324 = arith.constant 1.000000e+00 : f32
    %995 = vector.broadcast %cst_324 : f32 to vector<2x32xf32>
    %996 = arith.addf %995, %994 : vector<2x32xf32>
    %cst_325 = arith.constant 1.000000e+00 : f32
    %997 = vector.broadcast %cst_325 : f32 to vector<2x32xf32>
    %998 = arith.divf %997, %996 : vector<2x32xf32>
    %999 = arith.mulf %988, %931 : vector<2x32xf32>
    %1000 = arith.mulf %980, %990 : vector<2x32xf32>
    %1001 = arith.addf %999, %1000 : vector<2x32xf32>
    %1002 = math.tanh %1001 : vector<2x32xf32>
    %1003 = arith.mulf %998, %1002 : vector<2x32xf32>
    %1004 = vector.extract_strided_slice %972 {offsets = [0, 0], sizes = [2, 32], strides = [1, 1]} : vector<2x128xf32> to vector<2x32xf32>
    %cst_326 = arith.constant 0.000000e+00 : f32
    %1005 = vector.broadcast %cst_326 : f32 to vector<2x32xf32>
    %1006 = arith.subf %1005, %1004 : vector<2x32xf32>
    %1007 = math.exp %1006 : vector<2x32xf32>
    %cst_327 = arith.constant 1.000000e+00 : f32
    %1008 = vector.broadcast %cst_327 : f32 to vector<2x32xf32>
    %1009 = arith.addf %1008, %1007 : vector<2x32xf32>
    %cst_328 = arith.constant 1.000000e+00 : f32
    %1010 = vector.broadcast %cst_328 : f32 to vector<2x32xf32>
    %1011 = arith.divf %1010, %1009 : vector<2x32xf32>
    %1012 = vector.extract_strided_slice %972 {offsets = [0, 32], sizes = [2, 32], strides = [1, 1]} : vector<2x128xf32> to vector<2x32xf32>
    %cst_329 = arith.constant 0.000000e+00 : f32
    %1013 = vector.broadcast %cst_329 : f32 to vector<2x32xf32>
    %1014 = arith.subf %1013, %1012 : vector<2x32xf32>
    %1015 = math.exp %1014 : vector<2x32xf32>
    %cst_330 = arith.constant 1.000000e+00 : f32
    %1016 = vector.broadcast %cst_330 : f32 to vector<2x32xf32>
    %1017 = arith.addf %1016, %1015 : vector<2x32xf32>
    %cst_331 = arith.constant 1.000000e+00 : f32
    %1018 = vector.broadcast %cst_331 : f32 to vector<2x32xf32>
    %1019 = arith.divf %1018, %1017 : vector<2x32xf32>
    %1020 = vector.extract_strided_slice %972 {offsets = [0, 64], sizes = [2, 32], strides = [1, 1]} : vector<2x128xf32> to vector<2x32xf32>
    %1021 = math.tanh %1020 : vector<2x32xf32>
    %1022 = vector.extract_strided_slice %972 {offsets = [0, 96], sizes = [2, 32], strides = [1, 1]} : vector<2x128xf32> to vector<2x32xf32>
    %cst_332 = arith.constant 0.000000e+00 : f32
    %1023 = vector.broadcast %cst_332 : f32 to vector<2x32xf32>
    %1024 = arith.subf %1023, %1022 : vector<2x32xf32>
    %1025 = math.exp %1024 : vector<2x32xf32>
    %cst_333 = arith.constant 1.000000e+00 : f32
    %1026 = vector.broadcast %cst_333 : f32 to vector<2x32xf32>
    %1027 = arith.addf %1026, %1025 : vector<2x32xf32>
    %cst_334 = arith.constant 1.000000e+00 : f32
    %1028 = vector.broadcast %cst_334 : f32 to vector<2x32xf32>
    %1029 = arith.divf %1028, %1027 : vector<2x32xf32>
    %1030 = arith.mulf %1019, %962 : vector<2x32xf32>
    %1031 = arith.mulf %1011, %1021 : vector<2x32xf32>
    %1032 = arith.addf %1030, %1031 : vector<2x32xf32>
    %1033 = math.tanh %1032 : vector<2x32xf32>
    %1034 = arith.mulf %1029, %1033 : vector<2x32xf32>
    %1035 = tpu.concatenate %1003, %1034 in 1 : vector<2x32xf32>, vector<2x32xf32> -> vector<2x64xf32>
    %cst_335 = arith.constant dense<0.000000e+00> : vector<2x256xf32>
    %1036 = tpu.matmul %1035, %615, %cst_335 {dimension_numbers = #tpu.dot_dimension_numbers<[1], [0], [0], [1], [0, 0, 1, 1], [], []>} : vector<2x64xf32>, vector<64x256xf32>, vector<2x256xf32> -> vector<2x256xf32>
    %1037 = vector.extract_strided_slice %604 {offsets = [12, 0], sizes = [2, 128], strides = [1, 1]} : vector<16x256xf32> to vector<2x128xf32>
    %1038 = vector.extract_strided_slice %1036 {offsets = [0, 0], sizes = [2, 128], strides = [1, 1]} : vector<2x256xf32> to vector<2x128xf32>
    %1039 = arith.addf %1037, %1038 : vector<2x128xf32>
    %1040 = vector.extract_strided_slice %604 {offsets = [2, 128], sizes = [2, 128], strides = [1, 1]} : vector<16x256xf32> to vector<2x128xf32>
    %1041 = vector.extract_strided_slice %1036 {offsets = [0, 128], sizes = [2, 128], strides = [1, 1]} : vector<2x256xf32> to vector<2x128xf32>
    %1042 = arith.addf %1040, %1041 : vector<2x128xf32>
    %1043 = vector.extract_strided_slice %1039 {offsets = [0, 0], sizes = [2, 32], strides = [1, 1]} : vector<2x128xf32> to vector<2x32xf32>
    %cst_336 = arith.constant 0.000000e+00 : f32
    %1044 = vector.broadcast %cst_336 : f32 to vector<2x32xf32>
    %1045 = arith.subf %1044, %1043 : vector<2x32xf32>
    %1046 = math.exp %1045 : vector<2x32xf32>
    %cst_337 = arith.constant 1.000000e+00 : f32
    %1047 = vector.broadcast %cst_337 : f32 to vector<2x32xf32>
    %1048 = arith.addf %1047, %1046 : vector<2x32xf32>
    %cst_338 = arith.constant 1.000000e+00 : f32
    %1049 = vector.broadcast %cst_338 : f32 to vector<2x32xf32>
    %1050 = arith.divf %1049, %1048 : vector<2x32xf32>
    %1051 = vector.extract_strided_slice %1039 {offsets = [0, 32], sizes = [2, 32], strides = [1, 1]} : vector<2x128xf32> to vector<2x32xf32>
    %cst_339 = arith.constant 0.000000e+00 : f32
    %1052 = vector.broadcast %cst_339 : f32 to vector<2x32xf32>
    %1053 = arith.subf %1052, %1051 : vector<2x32xf32>
    %1054 = math.exp %1053 : vector<2x32xf32>
    %cst_340 = arith.constant 1.000000e+00 : f32
    %1055 = vector.broadcast %cst_340 : f32 to vector<2x32xf32>
    %1056 = arith.addf %1055, %1054 : vector<2x32xf32>
    %cst_341 = arith.constant 1.000000e+00 : f32
    %1057 = vector.broadcast %cst_341 : f32 to vector<2x32xf32>
    %1058 = arith.divf %1057, %1056 : vector<2x32xf32>
    %1059 = vector.extract_strided_slice %1039 {offsets = [0, 64], sizes = [2, 32], strides = [1, 1]} : vector<2x128xf32> to vector<2x32xf32>
    %1060 = math.tanh %1059 : vector<2x32xf32>
    %1061 = vector.extract_strided_slice %1039 {offsets = [0, 96], sizes = [2, 32], strides = [1, 1]} : vector<2x128xf32> to vector<2x32xf32>
    %cst_342 = arith.constant 0.000000e+00 : f32
    %1062 = vector.broadcast %cst_342 : f32 to vector<2x32xf32>
    %1063 = arith.subf %1062, %1061 : vector<2x32xf32>
    %1064 = math.exp %1063 : vector<2x32xf32>
    %cst_343 = arith.constant 1.000000e+00 : f32
    %1065 = vector.broadcast %cst_343 : f32 to vector<2x32xf32>
    %1066 = arith.addf %1065, %1064 : vector<2x32xf32>
    %cst_344 = arith.constant 1.000000e+00 : f32
    %1067 = vector.broadcast %cst_344 : f32 to vector<2x32xf32>
    %1068 = arith.divf %1067, %1066 : vector<2x32xf32>
    %1069 = arith.mulf %1058, %1001 : vector<2x32xf32>
    %1070 = arith.mulf %1050, %1060 : vector<2x32xf32>
    %1071 = arith.addf %1069, %1070 : vector<2x32xf32>
    %1072 = math.tanh %1071 : vector<2x32xf32>
    %1073 = arith.mulf %1068, %1072 : vector<2x32xf32>
    %1074 = vector.extract_strided_slice %1042 {offsets = [0, 0], sizes = [2, 32], strides = [1, 1]} : vector<2x128xf32> to vector<2x32xf32>
    %cst_345 = arith.constant 0.000000e+00 : f32
    %1075 = vector.broadcast %cst_345 : f32 to vector<2x32xf32>
    %1076 = arith.subf %1075, %1074 : vector<2x32xf32>
    %1077 = math.exp %1076 : vector<2x32xf32>
    %cst_346 = arith.constant 1.000000e+00 : f32
    %1078 = vector.broadcast %cst_346 : f32 to vector<2x32xf32>
    %1079 = arith.addf %1078, %1077 : vector<2x32xf32>
    %cst_347 = arith.constant 1.000000e+00 : f32
    %1080 = vector.broadcast %cst_347 : f32 to vector<2x32xf32>
    %1081 = arith.divf %1080, %1079 : vector<2x32xf32>
    %1082 = vector.extract_strided_slice %1042 {offsets = [0, 32], sizes = [2, 32], strides = [1, 1]} : vector<2x128xf32> to vector<2x32xf32>
    %cst_348 = arith.constant 0.000000e+00 : f32
    %1083 = vector.broadcast %cst_348 : f32 to vector<2x32xf32>
    %1084 = arith.subf %1083, %1082 : vector<2x32xf32>
    %1085 = math.exp %1084 : vector<2x32xf32>
    %cst_349 = arith.constant 1.000000e+00 : f32
    %1086 = vector.broadcast %cst_349 : f32 to vector<2x32xf32>
    %1087 = arith.addf %1086, %1085 : vector<2x32xf32>
    %cst_350 = arith.constant 1.000000e+00 : f32
    %1088 = vector.broadcast %cst_350 : f32 to vector<2x32xf32>
    %1089 = arith.divf %1088, %1087 : vector<2x32xf32>
    %1090 = vector.extract_strided_slice %1042 {offsets = [0, 64], sizes = [2, 32], strides = [1, 1]} : vector<2x128xf32> to vector<2x32xf32>
    %1091 = math.tanh %1090 : vector<2x32xf32>
    %1092 = vector.extract_strided_slice %1042 {offsets = [0, 96], sizes = [2, 32], strides = [1, 1]} : vector<2x128xf32> to vector<2x32xf32>
    %cst_351 = arith.constant 0.000000e+00 : f32
    %1093 = vector.broadcast %cst_351 : f32 to vector<2x32xf32>
    %1094 = arith.subf %1093, %1092 : vector<2x32xf32>
    %1095 = math.exp %1094 : vector<2x32xf32>
    %cst_352 = arith.constant 1.000000e+00 : f32
    %1096 = vector.broadcast %cst_352 : f32 to vector<2x32xf32>
    %1097 = arith.addf %1096, %1095 : vector<2x32xf32>
    %cst_353 = arith.constant 1.000000e+00 : f32
    %1098 = vector.broadcast %cst_353 : f32 to vector<2x32xf32>
    %1099 = arith.divf %1098, %1097 : vector<2x32xf32>
    %1100 = arith.mulf %1089, %1032 : vector<2x32xf32>
    %1101 = arith.mulf %1081, %1091 : vector<2x32xf32>
    %1102 = arith.addf %1100, %1101 : vector<2x32xf32>
    %1103 = math.tanh %1102 : vector<2x32xf32>
    %1104 = arith.mulf %1099, %1103 : vector<2x32xf32>
    %1105 = tpu.concatenate %1073, %1104 in 1 : vector<2x32xf32>, vector<2x32xf32> -> vector<2x64xf32>
    %cst_354 = arith.constant dense<0.000000e+00> : vector<2x256xf32>
    %1106 = tpu.matmul %1105, %615, %cst_354 {dimension_numbers = #tpu.dot_dimension_numbers<[1], [0], [0], [1], [0, 0, 1, 1], [], []>} : vector<2x64xf32>, vector<64x256xf32>, vector<2x256xf32> -> vector<2x256xf32>
    %1107 = vector.extract_strided_slice %604 {offsets = [14, 0], sizes = [2, 128], strides = [1, 1]} : vector<16x256xf32> to vector<2x128xf32>
    %1108 = vector.extract_strided_slice %1106 {offsets = [0, 0], sizes = [2, 128], strides = [1, 1]} : vector<2x256xf32> to vector<2x128xf32>
    %1109 = arith.addf %1107, %1108 : vector<2x128xf32>
    %1110 = vector.extract_strided_slice %604 {offsets = [0, 128], sizes = [2, 128], strides = [1, 1]} : vector<16x256xf32> to vector<2x128xf32>
    %1111 = vector.extract_strided_slice %1106 {offsets = [0, 128], sizes = [2, 128], strides = [1, 1]} : vector<2x256xf32> to vector<2x128xf32>
    %1112 = arith.addf %1110, %1111 : vector<2x128xf32>
    %1113 = vector.extract_strided_slice %1109 {offsets = [0, 0], sizes = [2, 32], strides = [1, 1]} : vector<2x128xf32> to vector<2x32xf32>
    %cst_355 = arith.constant 0.000000e+00 : f32
    %1114 = vector.broadcast %cst_355 : f32 to vector<2x32xf32>
    %1115 = arith.subf %1114, %1113 : vector<2x32xf32>
    %1116 = math.exp %1115 : vector<2x32xf32>
    %cst_356 = arith.constant 1.000000e+00 : f32
    %1117 = vector.broadcast %cst_356 : f32 to vector<2x32xf32>
    %1118 = arith.addf %1117, %1116 : vector<2x32xf32>
    %cst_357 = arith.constant 1.000000e+00 : f32
    %1119 = vector.broadcast %cst_357 : f32 to vector<2x32xf32>
    %1120 = arith.divf %1119, %1118 : vector<2x32xf32>
    %1121 = vector.extract_strided_slice %1109 {offsets = [0, 32], sizes = [2, 32], strides = [1, 1]} : vector<2x128xf32> to vector<2x32xf32>
    %cst_358 = arith.constant 0.000000e+00 : f32
    %1122 = vector.broadcast %cst_358 : f32 to vector<2x32xf32>
    %1123 = arith.subf %1122, %1121 : vector<2x32xf32>
    %1124 = math.exp %1123 : vector<2x32xf32>
    %cst_359 = arith.constant 1.000000e+00 : f32
    %1125 = vector.broadcast %cst_359 : f32 to vector<2x32xf32>
    %1126 = arith.addf %1125, %1124 : vector<2x32xf32>
    %cst_360 = arith.constant 1.000000e+00 : f32
    %1127 = vector.broadcast %cst_360 : f32 to vector<2x32xf32>
    %1128 = arith.divf %1127, %1126 : vector<2x32xf32>
    %1129 = vector.extract_strided_slice %1109 {offsets = [0, 64], sizes = [2, 32], strides = [1, 1]} : vector<2x128xf32> to vector<2x32xf32>
    %1130 = math.tanh %1129 : vector<2x32xf32>
    %1131 = vector.extract_strided_slice %1109 {offsets = [0, 96], sizes = [2, 32], strides = [1, 1]} : vector<2x128xf32> to vector<2x32xf32>
    %cst_361 = arith.constant 0.000000e+00 : f32
    %1132 = vector.broadcast %cst_361 : f32 to vector<2x32xf32>
    %1133 = arith.subf %1132, %1131 : vector<2x32xf32>
    %1134 = math.exp %1133 : vector<2x32xf32>
    %cst_362 = arith.constant 1.000000e+00 : f32
    %1135 = vector.broadcast %cst_362 : f32 to vector<2x32xf32>
    %1136 = arith.addf %1135, %1134 : vector<2x32xf32>
    %cst_363 = arith.constant 1.000000e+00 : f32
    %1137 = vector.broadcast %cst_363 : f32 to vector<2x32xf32>
    %1138 = arith.divf %1137, %1136 : vector<2x32xf32>
    %1139 = arith.mulf %1128, %1071 : vector<2x32xf32>
    %1140 = arith.mulf %1120, %1130 : vector<2x32xf32>
    %1141 = arith.addf %1139, %1140 : vector<2x32xf32>
    %1142 = math.tanh %1141 : vector<2x32xf32>
    %1143 = arith.mulf %1138, %1142 : vector<2x32xf32>
    %1144 = vector.extract_strided_slice %1112 {offsets = [0, 0], sizes = [2, 32], strides = [1, 1]} : vector<2x128xf32> to vector<2x32xf32>
    %cst_364 = arith.constant 0.000000e+00 : f32
    %1145 = vector.broadcast %cst_364 : f32 to vector<2x32xf32>
    %1146 = arith.subf %1145, %1144 : vector<2x32xf32>
    %1147 = math.exp %1146 : vector<2x32xf32>
    %cst_365 = arith.constant 1.000000e+00 : f32
    %1148 = vector.broadcast %cst_365 : f32 to vector<2x32xf32>
    %1149 = arith.addf %1148, %1147 : vector<2x32xf32>
    %cst_366 = arith.constant 1.000000e+00 : f32
    %1150 = vector.broadcast %cst_366 : f32 to vector<2x32xf32>
    %1151 = arith.divf %1150, %1149 : vector<2x32xf32>
    %1152 = vector.extract_strided_slice %1112 {offsets = [0, 32], sizes = [2, 32], strides = [1, 1]} : vector<2x128xf32> to vector<2x32xf32>
    %cst_367 = arith.constant 0.000000e+00 : f32
    %1153 = vector.broadcast %cst_367 : f32 to vector<2x32xf32>
    %1154 = arith.subf %1153, %1152 : vector<2x32xf32>
    %1155 = math.exp %1154 : vector<2x32xf32>
    %cst_368 = arith.constant 1.000000e+00 : f32
    %1156 = vector.broadcast %cst_368 : f32 to vector<2x32xf32>
    %1157 = arith.addf %1156, %1155 : vector<2x32xf32>
    %cst_369 = arith.constant 1.000000e+00 : f32
    %1158 = vector.broadcast %cst_369 : f32 to vector<2x32xf32>
    %1159 = arith.divf %1158, %1157 : vector<2x32xf32>
    %1160 = vector.extract_strided_slice %1112 {offsets = [0, 64], sizes = [2, 32], strides = [1, 1]} : vector<2x128xf32> to vector<2x32xf32>
    %1161 = math.tanh %1160 : vector<2x32xf32>
    %1162 = vector.extract_strided_slice %1112 {offsets = [0, 96], sizes = [2, 32], strides = [1, 1]} : vector<2x128xf32> to vector<2x32xf32>
    %cst_370 = arith.constant 0.000000e+00 : f32
    %1163 = vector.broadcast %cst_370 : f32 to vector<2x32xf32>
    %1164 = arith.subf %1163, %1162 : vector<2x32xf32>
    %1165 = math.exp %1164 : vector<2x32xf32>
    %cst_371 = arith.constant 1.000000e+00 : f32
    %1166 = vector.broadcast %cst_371 : f32 to vector<2x32xf32>
    %1167 = arith.addf %1166, %1165 : vector<2x32xf32>
    %cst_372 = arith.constant 1.000000e+00 : f32
    %1168 = vector.broadcast %cst_372 : f32 to vector<2x32xf32>
    %1169 = arith.divf %1168, %1167 : vector<2x32xf32>
    %1170 = arith.mulf %1159, %1102 : vector<2x32xf32>
    %1171 = arith.mulf %1151, %1161 : vector<2x32xf32>
    %1172 = arith.addf %1170, %1171 : vector<2x32xf32>
    %1173 = math.tanh %1172 : vector<2x32xf32>
    %1174 = arith.mulf %1169, %1173 : vector<2x32xf32>
    %1175 = arith.addf %596, %1143 : vector<2x32xf32>
    %1176 = arith.addf %1175, %1174 : vector<2x32xf32>
    %1177 = arith.addf %653, %1174 : vector<2x32xf32>
    %1178 = arith.addf %723, %1104 : vector<2x32xf32>
    %1179 = arith.addf %793, %1034 : vector<2x32xf32>
    %1180 = arith.addf %863, %964 : vector<2x32xf32>
    %1181 = arith.addf %933, %894 : vector<2x32xf32>
    %1182 = arith.addf %1003, %824 : vector<2x32xf32>
    %1183 = arith.addf %1073, %754 : vector<2x32xf32>
    %1184 = arith.addf %1143, %684 : vector<2x32xf32>
    %1185 = tpu.concatenate %1177, %1178, %1179, %1180, %1181, %1182, %1183, %1184 in 1 : vector<2x32xf32>, vector<2x32xf32>, vector<2x32xf32>, vector<2x32xf32>, vector<2x32xf32>, vector<2x32xf32>, vector<2x32xf32>, vector<2x32xf32> -> vector<2x256xf32>
    %c0_373 = arith.constant 0 : index
    %c0_374 = arith.constant 0 : index
    %1186 = vector.load %arg6[%c0_373, %c0_374] : memref<32x32xf32, #tpu.memory_space<vmem>>, vector<32x32xf32>
    %cst_375 = arith.constant dense<0.000000e+00> : vector<2x32xf32>
    %1187 = tpu.matmul %1176, %1186, %cst_375 {dimension_numbers = #tpu.dot_dimension_numbers<[1], [0], [0], [1], [0, 0, 1, 1], [], []>} : vector<2x32xf32>, vector<32x32xf32>, vector<2x32xf32> -> vector<2x32xf32>
    %c0_376 = arith.constant 0 : index
    %c0_377 = arith.constant 0 : index
    %1188 = vector.load %arg7[%c0_376, %c0_377] : memref<1x32xf32, #tpu.memory_space<vmem>>, vector<1x32xf32>
    %1189 = vector.broadcast %1188 : vector<1x32xf32> to vector<2x32xf32>
    %1190 = arith.addf %1187, %1189 : vector<2x32xf32>
    %cst_378 = arith.constant 0.000000e+00 : f32
    %1191 = vector.broadcast %cst_378 : f32 to vector<2x32xf32>
    %1192 = arith.maximumf %1190, %1191 : vector<2x32xf32>
    %1193 = tpu.concatenate %1192, %1192, %1192, %1192, %1192, %1192, %1192, %1192 in 1 : vector<2x32xf32>, vector<2x32xf32>, vector<2x32xf32>, vector<2x32xf32>, vector<2x32xf32>, vector<2x32xf32>, vector<2x32xf32>, vector<2x32xf32> -> vector<2x256xf32>
    %1194 = tpu.iota {dimensions = array<i32: 0>} : vector<256x8xi32>
    %1195 = tpu.iota {dimensions = array<i32: 1>} : vector<256x8xi32>
    %c32_i32 = arith.constant 32 : i32
    %1196 = vector.broadcast %c32_i32 : i32 to vector<256x8xi32>
    %1197 = arith.muli %1195, %1196 : vector<256x8xi32>
    %1198 = arith.cmpi sge, %1194, %1197 : vector<256x8xi32>
    %c1_i32 = arith.constant 1 : i32
    %1199 = vector.broadcast %c1_i32 : i32 to vector<256x8xi32>
    %1200 = arith.addi %1195, %1199 : vector<256x8xi32>
    %c32_i32_379 = arith.constant 32 : i32
    %1201 = vector.broadcast %c32_i32_379 : i32 to vector<256x8xi32>
    %1202 = arith.muli %1200, %1201 : vector<256x8xi32>
    %1203 = arith.cmpi slt, %1194, %1202 : vector<256x8xi32>
    %1204 = arith.andi %1198, %1203 : vector<256x8xi1>
    %1205 = arith.extui %1204 : vector<256x8xi1> to vector<256x8xi32>
    %1206 = arith.sitofp %1205 : vector<256x8xi32> to vector<256x8xf32>
    %1207 = arith.mulf %1185, %1193 : vector<2x256xf32>
    %cst_380 = arith.constant dense<0.000000e+00> : vector<2x8xf32>
    %1208 = tpu.matmul %1207, %1206, %cst_380 {dimension_numbers = #tpu.dot_dimension_numbers<[1], [0], [0], [1], [0, 0, 1, 1], [], []>} : vector<2x256xf32>, vector<256x8xf32>, vector<2x8xf32> -> vector<2x8xf32>
    %cst_381 = arith.constant dense<0xFF800000> : vector<2xf32>
    %1209 = vector.multi_reduction <maximumf>, %1208, %cst_381 [1] : vector<2x8xf32> to vector<2xf32>
    %1210 = vector.shape_cast %1209 : vector<2xf32> to vector<2x1xf32>
    %1211 = vector.broadcast %1210 : vector<2x1xf32> to vector<2x8xf32>
    %1212 = arith.subf %1208, %1211 : vector<2x8xf32>
    %1213 = math.exp %1212 : vector<2x8xf32>
    %cst_382 = arith.constant dense<0.000000e+00> : vector<2xf32>
    %1214 = vector.multi_reduction <add>, %1213, %cst_382 [1] : vector<2x8xf32> to vector<2xf32>
    %1215 = vector.shape_cast %1214 : vector<2xf32> to vector<2x1xf32>
    %1216 = vector.broadcast %1215 : vector<2x1xf32> to vector<2x8xf32>
    %1217 = arith.divf %1213, %1216 : vector<2x8xf32>
    %cst_383 = arith.constant 0.000000e+00 : f32
    %1218 = vector.broadcast %cst_383 : f32 to vector<2x32xf32>
    %1219 = vector.extract_strided_slice %1217 {offsets = [0, 0], sizes = [2, 1], strides = [1, 1]} : vector<2x8xf32> to vector<2x1xf32>
    %1220 = vector.broadcast %1219 : vector<2x1xf32> to vector<2x32xf32>
    %1221 = arith.mulf %1220, %1177 : vector<2x32xf32>
    %1222 = arith.addf %1218, %1221 : vector<2x32xf32>
    %1223 = vector.extract_strided_slice %1217 {offsets = [0, 1], sizes = [2, 1], strides = [1, 1]} : vector<2x8xf32> to vector<2x1xf32>
    %1224 = vector.broadcast %1223 : vector<2x1xf32> to vector<2x32xf32>
    %1225 = arith.mulf %1224, %1178 : vector<2x32xf32>
    %1226 = arith.addf %1222, %1225 : vector<2x32xf32>
    %1227 = vector.extract_strided_slice %1217 {offsets = [0, 2], sizes = [2, 1], strides = [1, 1]} : vector<2x8xf32> to vector<2x1xf32>
    %1228 = vector.broadcast %1227 : vector<2x1xf32> to vector<2x32xf32>
    %1229 = arith.mulf %1228, %1179 : vector<2x32xf32>
    %1230 = arith.addf %1226, %1229 : vector<2x32xf32>
    %1231 = vector.extract_strided_slice %1217 {offsets = [0, 3], sizes = [2, 1], strides = [1, 1]} : vector<2x8xf32> to vector<2x1xf32>
    %1232 = vector.broadcast %1231 : vector<2x1xf32> to vector<2x32xf32>
    %1233 = arith.mulf %1232, %1180 : vector<2x32xf32>
    %1234 = arith.addf %1230, %1233 : vector<2x32xf32>
    %1235 = vector.extract_strided_slice %1217 {offsets = [0, 4], sizes = [2, 1], strides = [1, 1]} : vector<2x8xf32> to vector<2x1xf32>
    %1236 = vector.broadcast %1235 : vector<2x1xf32> to vector<2x32xf32>
    %1237 = arith.mulf %1236, %1181 : vector<2x32xf32>
    %1238 = arith.addf %1234, %1237 : vector<2x32xf32>
    %1239 = vector.extract_strided_slice %1217 {offsets = [0, 5], sizes = [2, 1], strides = [1, 1]} : vector<2x8xf32> to vector<2x1xf32>
    %1240 = vector.broadcast %1239 : vector<2x1xf32> to vector<2x32xf32>
    %1241 = arith.mulf %1240, %1182 : vector<2x32xf32>
    %1242 = arith.addf %1238, %1241 : vector<2x32xf32>
    %1243 = vector.extract_strided_slice %1217 {offsets = [0, 6], sizes = [2, 1], strides = [1, 1]} : vector<2x8xf32> to vector<2x1xf32>
    %1244 = vector.broadcast %1243 : vector<2x1xf32> to vector<2x32xf32>
    %1245 = arith.mulf %1244, %1183 : vector<2x32xf32>
    %1246 = arith.addf %1242, %1245 : vector<2x32xf32>
    %1247 = vector.extract_strided_slice %1217 {offsets = [0, 7], sizes = [2, 1], strides = [1, 1]} : vector<2x8xf32> to vector<2x1xf32>
    %1248 = vector.broadcast %1247 : vector<2x1xf32> to vector<2x32xf32>
    %1249 = arith.mulf %1248, %1184 : vector<2x32xf32>
    %1250 = arith.addf %1246, %1249 : vector<2x32xf32>
    %c0_384 = arith.constant 0 : index
    %c0_385 = arith.constant 0 : index
    %1251 = vector.load %arg8[%c0_384, %c0_385] : memref<32x15xf32, #tpu.memory_space<vmem>>, vector<32x15xf32>
    %cst_386 = arith.constant dense<0.000000e+00> : vector<2x15xf32>
    %1252 = tpu.matmul %1250, %1251, %cst_386 {dimension_numbers = #tpu.dot_dimension_numbers<[1], [0], [0], [1], [0, 0, 1, 1], [], []>} : vector<2x32xf32>, vector<32x15xf32>, vector<2x15xf32> -> vector<2x15xf32>
    %c0_387 = arith.constant 0 : index
    %c0_388 = arith.constant 0 : index
    %1253 = vector.load %arg9[%c0_387, %c0_388] : memref<1x15xf32, #tpu.memory_space<vmem>>, vector<1x15xf32>
    %1254 = vector.broadcast %1253 : vector<1x15xf32> to vector<2x15xf32>
    %1255 = arith.addf %1252, %1254 : vector<2x15xf32>
    %cst_389 = arith.constant dense<0xFF800000> : vector<2xf32>
    %1256 = vector.multi_reduction <maximumf>, %1255, %cst_389 [1] : vector<2x15xf32> to vector<2xf32>
    %1257 = vector.shape_cast %1256 : vector<2xf32> to vector<2x1xf32>
    %1258 = vector.broadcast %1257 : vector<2x1xf32> to vector<2x15xf32>
    %1259 = arith.subf %1255, %1258 : vector<2x15xf32>
    %1260 = math.exp %1259 : vector<2x15xf32>
    %cst_390 = arith.constant dense<0.000000e+00> : vector<2xf32>
    %1261 = vector.multi_reduction <add>, %1260, %cst_390 [1] : vector<2x15xf32> to vector<2xf32>
    %1262 = vector.shape_cast %1261 : vector<2xf32> to vector<2x1xf32>
    %1263 = vector.broadcast %1262 : vector<2x1xf32> to vector<2x15xf32>
    %1264 = arith.divf %1260, %1263 : vector<2x15xf32>
    %c0_391 = arith.constant 0 : index
    %c0_392 = arith.constant 0 : index
    %1265 = vector.load %arg10[%c0_391, %c0_392] : memref<2x15xf32, #tpu.memory_space<vmem>>, vector<2x15xf32>
    tpu.vector_store %arg10[%c0_391, %c0_392], %1264 {strides = array<i32>} : memref<2x15xf32, #tpu.memory_space<vmem>>, vector<2x15xf32>,
    return
  }
}

</mosaic_0001>

<llo_original>
// kernel: bilstm_forward.1
$region0: #{bilstm_forward.1}
  #allocation0 [shape = 'u32[]', space=smem, size = 0x4, offset = 0x4, fixed_abs, tag = 'smem constant byte address 0x4 - core index']
  #allocation1 [shape = 'u32[72,128]{1,0:T(1,128)}', space=vmem, size = 0x9000, scoped, tag = 'internal scratch']
  #allocation2 [shape = 'f32[16,64]{1,0:T(8,128)}', space=vmem, size = 0x2000, scoped, tag = 'scratch operand']
  %s0 = inlined_call_operand.vmem [shape: f32[16,64], index: 0, kind: input, shape index: {}]
  %s1 = inlined_call_operand.hbm [shape: f32[2,64,256], index: 1, kind: input, shape index: {}]
  %s2 = inlined_call_operand.hbm [shape: f32[2,64,256], index: 2, kind: input, shape index: {}]
  %s3 = inlined_call_operand.vmem [shape: f32[2,1,256], index: 3, kind: input, shape index: {}]
  %s4 = inlined_call_operand.vmem [shape: f32[4,2,32], index: 4, kind: input, shape index: {}]
  %s5 = inlined_call_operand.vmem [shape: f32[4,2,32], index: 5, kind: input, shape index: {}]
  %s6 = inlined_call_operand.vmem [shape: f32[32,32], index: 6, kind: input, shape index: {}]
  %s7 = inlined_call_operand.vmem [shape: f32[1,32], index: 7, kind: input, shape index: {}]
  %s8 = inlined_call_operand.vmem [shape: f32[32,15], index: 8, kind: input, shape index: {}]
  %s9 = inlined_call_operand.vmem [shape: f32[1,15], index: 9, kind: input, shape index: {}]
  %s10 = inlined_call_operand.hbm [shape: f32[2,15], index: 10, kind: output, shape index: {}]
  %s11 = sld [smem:[#allocation0]]
  $region58: #{bilstm_forward.1} parent=0
    _
  %s13 = ssub.s32 1, %s11
  %s14 = scalar_select 0, %s13, %s11
  $region1: #{bilstm_forward.1} parent=0
    #allocation3 [shape = 'u8[131072]{0}', space=vmem, size = 0x20000, scoped, tag = 'input window, operand 1, single buffered']
    #allocation4 [shape = 's32[1]{0}', space=sflag, size = 0x4, scoped, tag = 'scoped memory for bilstm_forward.1']
    #allocation5 [shape = 's32[1]{0}', space=sflag, size = 0x4, scoped, tag = 'scoped memory for bilstm_forward.1']
    #allocation6 [shape = 'u8[131072]{0}', space=vmem, size = 0x20000, scoped, tag = 'input window, operand 2, single buffered']
    #allocation7 [shape = 's32[1]{0}', space=sflag, size = 0x4, scoped, tag = 'scoped memory for bilstm_forward.1']
    #allocation8 [shape = 'u8[1024]{0}', space=vmem, size = 0x400, scoped, tag = 'output window, operand 0, single buffered']
    %15 = vsyncpa [#allocation4], 0
    %16 = vsyncpa [#allocation7], 0
    %17 = vsyncpa [#allocation5], 0
    // Predicated region
    $region2: #{bilstm_forward.1} parent=1 // pred_check
      _
    $region3: #{bilstm_forward.1} parent=1 // pred_check_branch
      %19 = sbr.rel (0) target = $region5
    $region4: #{bilstm_forward.1} parent=1 // pred_region
      _
    $region5: #{bilstm_forward.1} parent=1 // pred_fallthru
      _
    // Predicated region
    $region6: #{bilstm_forward.1} parent=1 // pred_check
      _
    $region7: #{bilstm_forward.1} parent=1 // pred_check_branch
      %21 = sbr.rel (0) target = $region9
    $region8: #{bilstm_forward.1} parent=1 // pred_region
      %23 = vsyncadd [#allocation4], 0
      %s24 = sshll.u32 %s1, 4
      %s25 = int_to_ptr.hbm [resolvable:$true] %s24
      %s26 = sshll.u32 [#allocation3], 4
      %s27 = int_to_ptr.vmem [resolvable:$true] %s26
      %32 = dma.hbm_to_vmem [thread:$0]  %s25, 4096, %s27, [#allocation4], 256, 256, 16
    $region9: #{bilstm_forward.1} parent=1 // pred_fallthru
      _
    // Predicated region
    $region10: #{bilstm_forward.1} parent=1 // pred_check
      _
    $region11: #{bilstm_forward.1} parent=1 // pred_check_branch
      %34 = sbr.rel (0) target = $region13
    $region12: #{bilstm_forward.1} parent=1 // pred_region
      %36 = vsyncadd [#allocation7], 0
      %s37 = sshll.u32 %s2, 4
      %s38 = int_to_ptr.hbm [resolvable:$true] %s37
      %s39 = sshll.u32 [#allocation6], 4
      %s40 = int_to_ptr.vmem [resolvable:$true] %s39
      %45 = dma.hbm_to_vmem [thread:$0]  %s38, 4096, %s40, [#allocation7], 256, 256, 16
    $region13: #{bilstm_forward.1} parent=1 // pred_fallthru
      _
    // Predicated region
    $region14: #{bilstm_forward.1} parent=1 // pred_check
      _
    $region15: #{bilstm_forward.1} parent=1 // pred_check_branch
      %47 = sbr.rel (0) target = $region17
    $region16: #{bilstm_forward.1} parent=1 // pred_region
      _
    $region17: #{bilstm_forward.1} parent=1 // pred_fallthru
      _
    // Predicated region
    $region18: #{bilstm_forward.1} parent=1 // pred_check
      _
    $region19: #{bilstm_forward.1} parent=1 // pred_check_branch
      %49 = sbr.rel (0) target = $region21
    $region20: #{bilstm_forward.1} parent=1 // pred_region
      _
    $region21: #{bilstm_forward.1} parent=1 // pred_fallthru
      _
    // Predicated region
    $region22: #{bilstm_forward.1} parent=1 // pred_check
      _
    $region23: #{bilstm_forward.1} parent=1 // pred_check_branch
      %51 = sbr.rel (0) target = $region25
    $region24: #{bilstm_forward.1} parent=1 // pred_region
      _
    $region25: #{bilstm_forward.1} parent=1 // pred_fallthru
      _
    // Predicated region
    $region26: #{bilstm_forward.1} parent=1 // pred_check
      _
    $region27: #{bilstm_forward.1} parent=1 // pred_check_branch
      %53 = sbr.rel (0) target = $region29
    $region28: #{bilstm_forward.1} parent=1 // pred_region
      _
    $region29: #{bilstm_forward.1} parent=1 // pred_fallthru
      _
    // Predicated region
    $region30: #{bilstm_forward.1} parent=1 // pred_check
      _
    $region31: #{bilstm_forward.1} parent=1 // pred_check_branch
      %55 = sbr.rel (0) target = $region33
    $region32: #{bilstm_forward.1} parent=1 // pred_region
      _
    $region33: #{bilstm_forward.1} parent=1 // pred_fallthru
      _
    // Predicated region
    $region34: #{bilstm_forward.1} parent=1 // pred_check
      _
    $region35: #{bilstm_forward.1} parent=1 // pred_check_branch
      %57 = sbr.rel (0) target = $region37
    $region36: #{bilstm_forward.1} parent=1 // pred_region
      _
    $region37: #{bilstm_forward.1} parent=1 // pred_fallthru
      _
    // Predicated region
    $region38: #{bilstm_forward.1} parent=1 // pred_check
      _
    $region39: #{bilstm_forward.1} parent=1 // pred_check_branch
      %59 = sbr.rel (0) target = $region41
    $region40: #{bilstm_forward.1} parent=1 // pred_region
      _
    $region41: #{bilstm_forward.1} parent=1 // pred_fallthru
      _
    // Predicated region
    $region42: #{bilstm_forward.1} parent=1 // pred_check
      _
    $region43: #{bilstm_forward.1} parent=1 // pred_check_branch
      %61 = sbr.rel (0) target = $region45
    $region44: #{bilstm_forward.1} parent=1 // pred_region
      %63 = dma.done [#allocation4], 4096
    $region45: #{bilstm_forward.1} parent=1 // pred_fallthru
      _
    // Predicated region
    $region46: #{bilstm_forward.1} parent=1 // pred_check
      _
    $region47: #{bilstm_forward.1} parent=1 // pred_check_branch
      %65 = sbr.rel (0) target = $region49
    $region48: #{bilstm_forward.1} parent=1 // pred_region
      %67 = dma.done [#allocation7], 4096
    $region49: #{bilstm_forward.1} parent=1 // pred_fallthru
      _
    %v68 = vld [vmem:[%s0] sm:$0xff]
    %v69 = vld [vmem:[%s0 + $0x8] sm:$0xff]
    %v70 = vld [vmem:[#allocation3] sm:$0xff]
    %v71 = vld [vmem:[#allocation3 + $0x8] sm:$0xff]
    %v72 = vld [vmem:[#allocation3 + $0x10] sm:$0xff]
    %v73 = vld [vmem:[#allocation3 + $0x18] sm:$0xff]
    %v74 = vld [vmem:[#allocation3 + $0x20] sm:$0xff]
    %v75 = vld [vmem:[#allocation3 + $0x28] sm:$0xff]
    %v76 = vld [vmem:[#allocation3 + $0x30] sm:$0xff]
    %v77 = vld [vmem:[#allocation3 + $0x38] sm:$0xff]
    %v78 = vld [vmem:[#allocation3 + $0x40] sm:$0xff]
    %v79 = vld [vmem:[#allocation3 + $0x48] sm:$0xff]
    %v80 = vld [vmem:[#allocation3 + $0x50] sm:$0xff]
    %v81 = vld [vmem:[#allocation3 + $0x58] sm:$0xff]
    %v82 = vld [vmem:[#allocation3 + $0x60] sm:$0xff]
    %v83 = vld [vmem:[#allocation3 + $0x68] sm:$0xff]
    %v84 = vld [vmem:[#allocation3 + $0x70] sm:$0xff]
    %v85 = vld [vmem:[#allocation3 + $0x78] sm:$0xff]
    %v86 = vld [vmem:[%s3] sm:$0x3]
    %v88 = vperm.slane %v86, 0
    %v89 = vperm.slane %v86, 1
    %vm92 = vcmask 523264
    %v94 = vsel %vm92, %v68, 0
    %v97 = vsel %vm92, %v69, 0
    %99 = vmatpush.msra.mxu0 0.0
    %100 = vmatpush.msra.mxu0 0.0
    %101 = vmatpush.msra.mxu0 0.0
    %102 = vmatpush.msra.mxu0 0.0
    %103 = vmatpush.msra.mxu0 0.0
    %104 = vmatpush.msra.mxu0 0.0
    %105 = vmatpush.msra.mxu0 0.0
    %106 = vmatpush.msra.mxu0 0.0
    %107 = vmatpush.msra.mxu0 %v84
    %108 = vmatpush.msra.mxu0 %v82
    %109 = vmatpush.msra.mxu0 %v80
    %110 = vmatpush.msra.mxu0 %v78
    %111 = vmatpush.msra.mxu0 %v76
    %112 = vmatpush.msra.mxu0 %v74
    %113 = vmatpush.msra.mxu0 %v72
    %114 = vmatpush.msra.mxu0 %v70
    %115 = vmatmul.f32.gmra.mxu0 %v94
    %v116 = vpop.f32.mrf.mxu0
    %v117 = vadd.f32 %v88, %v116
    %118 = vmatmul.f32.gmra.mxu0 %v97
    %v119 = vpop.f32.mrf.mxu0
    %v120 = vadd.f32 %v88, %v119
    %121 = vdwg.mxu0
    %122 = vmatpush.msra.mxu0 0.0
    %123 = vmatpush.msra.mxu0 0.0
    %124 = vmatpush.msra.mxu0 0.0
    %125 = vmatpush.msra.mxu0 0.0
    %126 = vmatpush.msra.mxu0 0.0
    %127 = vmatpush.msra.mxu0 0.0
    %128 = vmatpush.msra.mxu0 0.0
    %129 = vmatpush.msra.mxu0 0.0
    %130 = vmatpush.msra.mxu0 %v85
    %131 = vmatpush.msra.mxu0 %v83
    %132 = vmatpush.msra.mxu0 %v81
    %133 = vmatpush.msra.mxu0 %v79
    %134 = vmatpush.msra.mxu0 %v77
    %135 = vmatpush.msra.mxu0 %v75
    %136 = vmatpush.msra.mxu0 %v73
    %137 = vmatpush.msra.mxu0 %v71
    %138 = vmatmul.f32.gmra.mxu0 %v94
    %v139 = vpop.f32.mrf.mxu0
    %v140 = vadd.f32 %v89, %v139
    %141 = vmatmul.f32.gmra.mxu0 %v97
    %v142 = vpop.f32.mrf.mxu0
    %v143 = vadd.f32 %v89, %v142
    %144 = vdwg.mxu0
    %v145 = vld [vmem:[%s4] sm:$0x3]
    %s146 = scalar_lea.vmem %s4, 2
    %v147 = vld [vmem:[%s146] sm:$0x3]
    %v148 = vld [vmem:[%s5] sm:$0x3]
    %s149 = scalar_lea.vmem %s5, 2
    %v150 = vld [vmem:[%s149] sm:$0x3]
    %152 = vrot.lane.b32.xlu0 %v147, 32
    %v153 = vpop.permute.xlu0 %152
    %vm155 = vcmask 261120
    %v156 = vsel %vm155, %v145, %v153
    %v157 = vld [vmem:[#allocation6] sm:$0xff]
    %v158 = vld [vmem:[#allocation6 + $0x8] sm:$0xff]
    %v159 = vld [vmem:[#allocation6 + $0x10] sm:$0xff]
    %v160 = vld [vmem:[#allocation6 + $0x18] sm:$0xff]
    %v161 = vld [vmem:[#allocation6 + $0x20] sm:$0xff]
    %v162 = vld [vmem:[#allocation6 + $0x28] sm:$0xff]
    %v163 = vld [vmem:[#allocation6 + $0x30] sm:$0xff]
    %v164 = vld [vmem:[#allocation6 + $0x38] sm:$0xff]
    %v165 = vld [vmem:[#allocation6 + $0x40] sm:$0xff]
    %v166 = vld [vmem:[#allocation6 + $0x48] sm:$0xff]
    %v167 = vld [vmem:[#allocation6 + $0x50] sm:$0xff]
    %v168 = vld [vmem:[#allocation6 + $0x58] sm:$0xff]
    %v169 = vld [vmem:[#allocation6 + $0x60] sm:$0xff]
    %v170 = vld [vmem:[#allocation6 + $0x68] sm:$0xff]
    %v171 = vld [vmem:[#allocation6 + $0x70] sm:$0xff]
    %v172 = vld [vmem:[#allocation6 + $0x78] sm:$0xff]
    %v174 = vsel %vm92, %v156, 0
    %176 = vmatpush.msra.mxu0 0.0
    %177 = vmatpush.msra.mxu0 0.0
    %178 = vmatpush.msra.mxu0 0.0
    %179 = vmatpush.msra.mxu0 0.0
    %180 = vmatpush.msra.mxu0 0.0
    %181 = vmatpush.msra.mxu0 0.0
    %182 = vmatpush.msra.mxu0 0.0
    %183 = vmatpush.msra.mxu0 0.0
    %184 = vmatpush.msra.mxu0 %v171
    %185 = vmatpush.msra.mxu0 %v169
    %186 = vmatpush.msra.mxu0 %v167
    %187 = vmatpush.msra.mxu0 %v165
    %188 = vmatpush.msra.mxu0 %v163
    %189 = vmatpush.msra.mxu0 %v161
    %190 = vmatpush.msra.mxu0 %v159
    %191 = vmatpush.msra.mxu0 %v157
    %192 = vmatmul.f32.gmra.mxu0 %v174
    %v193 = vpop.f32.mrf.mxu0
    %v194 = vadd.f32 0.0, %v193
    %195 = vdwg.mxu0
    %196 = vmatpush.msra.mxu0 0.0
    %197 = vmatpush.msra.mxu0 0.0
    %198 = vmatpush.msra.mxu0 0.0
    %199 = vmatpush.msra.mxu0 0.0
    %200 = vmatpush.msra.mxu0 0.0
    %201 = vmatpush.msra.mxu0 0.0
    %202 = vmatpush.msra.mxu0 0.0
    %203 = vmatpush.msra.mxu0 0.0
    %204 = vmatpush.msra.mxu0 %v172
    %205 = vmatpush.msra.mxu0 %v170
    %206 = vmatpush.msra.mxu0 %v168
    %207 = vmatpush.msra.mxu0 %v166
    %208 = vmatpush.msra.mxu0 %v164
    %209 = vmatpush.msra.mxu0 %v162
    %210 = vmatpush.msra.mxu0 %v160
    %211 = vmatpush.msra.mxu0 %v158
    %212 = vmatmul.f32.gmra.mxu0 %v174
    %v213 = vpop.f32.mrf.mxu0
    %v214 = vadd.f32 0.0, %v213
    %215 = vdwg.mxu0
    %v216 = vadd.f32 %v117, %v194
    %v218 = vrot.slane %v214, 2
    %v220 = vadd.f32 %v143, %v218
    %v221 = vsub.f32 0.0, %v216
    %v222 = vmul.f32 %v221, 1.442695
    %v223 = vpow.pop %v222
    %v224 = vadd.f32 %v223, 1.0
    %v225 = vrcp.pop %v224
    %v226 = vmul.f32 %v224, %v225
    %v227 = vsub.f32 1.0, %v226
    %v228 = vmul.f32 %v225, %v227
    %v229 = vadd.f32 %v225, %v228
    %vm230 = vweird.f32 %v224
    %vm231 = vweird.f32 %v225
    %vm232 = vmor %vm230, %vm231
    %v233 = vsel %vm232, %v225, %v229
    %v234 = vand.u32 2147483647, %v224
    %vm235 = vcmp.eq.f32.partialorder %v234, 8.507059e+37
    %v236 = vand.u32 %v224, 2147483648
    %v237 = vor.u32 1.1754944e-38, %v236
    %v238 = vsel %vm235, %v237, %v233
    %v239 = vmul.f32 1.0, %v238
    %v240 = vtanh.pop %v216
    %242 = vrot.lane.b32.xlu0 %v148, 32
    %v243 = vpop.permute.xlu0 %242
    %v245 = vmul.f32 %v239, %v243
    %247 = vrot.lane.b32.xlu0 %v240, 64
    %v248 = vpop.permute.xlu0 %247
    %v250 = vmul.f32 %v239, %v248
    %252 = vrot.lane.b32.xlu0 %v250, 32
    %v253 = vpop.permute.xlu0 %252
    %v255 = vadd.f32 %v245, %v253
    %v256 = vtanh.pop %v255
    %258 = vrot.lane.b32.xlu0 %v256, 64
    %v259 = vpop.permute.xlu0 %258
    %v261 = vmul.f32 %v239, %v259
    %v262 = vsub.f32 0.0, %v220
    %v263 = vmul.f32 %v262, 1.442695
    %v264 = vpow.pop %v263
    %v265 = vadd.f32 %v264, 1.0
    %v266 = vrcp.pop %v265
    %v267 = vmul.f32 %v265, %v266
    %v268 = vsub.f32 1.0, %v267
    %v269 = vmul.f32 %v266, %v268
    %v270 = vadd.f32 %v266, %v269
    %vm271 = vweird.f32 %v265
    %vm272 = vweird.f32 %v266
    %vm273 = vmor %vm271, %vm272
    %v274 = vsel %vm273, %v266, %v270
    %v275 = vand.u32 2147483647, %v265
    %vm276 = vcmp.eq.f32.partialorder %v275, 8.507059e+37
    %v277 = vand.u32 %v265, 2147483648
    %v278 = vor.u32 1.1754944e-38, %v277
    %v279 = vsel %vm276, %v278, %v274
    %v280 = vmul.f32 1.0, %v279
    %v281 = vtanh.pop %v220
    %v283 = vrot.slane %v150, 2
    %284 = vrot.lane.b32.xlu0 %v283, 32
    %v285 = vpop.permute.xlu0 %284
    %v287 = vmul.f32 %v280, %v285
    %289 = vrot.lane.b32.xlu0 %v281, 64
    %v290 = vpop.permute.xlu0 %289
    %v292 = vmul.f32 %v280, %v290
    %294 = vrot.lane.b32.xlu0 %v292, 32
    %v295 = vpop.permute.xlu0 %294
    %v297 = vadd.f32 %v287, %v295
    %v298 = vtanh.pop %v297
    %300 = vrot.lane.b32.xlu0 %v298, 64
    %v301 = vpop.permute.xlu0 %300
    %v303 = vmul.f32 %v280, %v301
    %305 = vrot.lane.b32.xlu0 %v261, 32
    %v306 = vpop.permute.xlu0 %305
    %v309 = vrot.slane %v303, 6
    %310 = vrot.lane.b32.xlu0 %v309, 64
    %v311 = vpop.permute.xlu0 %310
    %v313 = vsel %vm155, %v306, %v311
    %vm314 = vcmask 254976
    %315 = vst.msk [vmem:[#allocation2] sm:$0x3] %vm314, %v306
    %316 = vrot.lane.b32.xlu0 %v303, 64
    %v317 = vpop.permute.xlu0 %316
    %vm319 = vcmask 523526
    %320 = vst.msk [vmem:[#allocation2 + $0x8] sm:$0xc0] %vm319, %v317
    %v322 = vsel %vm92, %v313, 0
    %324 = vmatpush.msra.mxu0 0.0
    %325 = vmatpush.msra.mxu0 0.0
    %326 = vmatpush.msra.mxu0 0.0
    %327 = vmatpush.msra.mxu0 0.0
    %328 = vmatpush.msra.mxu0 0.0
    %329 = vmatpush.msra.mxu0 0.0
    %330 = vmatpush.msra.mxu0 0.0
    %331 = vmatpush.msra.mxu0 0.0
    %332 = vmatpush.msra.mxu0 %v171
    %333 = vmatpush.msra.mxu0 %v169
    %334 = vmatpush.msra.mxu0 %v167
    %335 = vmatpush.msra.mxu0 %v165
    %336 = vmatpush.msra.mxu0 %v163
    %337 = vmatpush.msra.mxu0 %v161
    %338 = vmatpush.msra.mxu0 %v159
    %339 = vmatpush.msra.mxu0 %v157
    %340 = vmatmul.f32.gmra.mxu0 %v322
    %v341 = vpop.f32.mrf.mxu0
    %v342 = vadd.f32 0.0, %v341
    %343 = vdwg.mxu0
    %344 = vmatpush.msra.mxu0 0.0
    %345 = vmatpush.msra.mxu0 0.0
    %346 = vmatpush.msra.mxu0 0.0
    %347 = vmatpush.msra.mxu0 0.0
    %348 = vmatpush.msra.mxu0 0.0
    %349 = vmatpush.msra.mxu0 0.0
    %350 = vmatpush.msra.mxu0 0.0
    %351 = vmatpush.msra.mxu0 0.0
    %352 = vmatpush.msra.mxu0 %v172
    %353 = vmatpush.msra.mxu0 %v170
    %354 = vmatpush.msra.mxu0 %v168
    %355 = vmatpush.msra.mxu0 %v166
    %356 = vmatpush.msra.mxu0 %v164
    %357 = vmatpush.msra.mxu0 %v162
    %358 = vmatpush.msra.mxu0 %v160
    %359 = vmatpush.msra.mxu0 %v158
    %360 = vmatmul.f32.gmra.mxu0 %v322
    %v361 = vpop.f32.mrf.mxu0
    %v362 = vadd.f32 0.0, %v361
    %363 = vdwg.mxu0
    %v365 = vrot.slane %v342, 6
    %v367 = vadd.f32 %v117, %v365
    %v369 = vrot.slane %v362, 4
    %v371 = vadd.f32 %v143, %v369
    %v372 = vsub.f32 0.0, %v367
    %v373 = vmul.f32 %v372, 1.442695
    %v374 = vpow.pop %v373
    %v375 = vadd.f32 %v374, 1.0
    %v376 = vrcp.pop %v375
    %v377 = vmul.f32 %v375, %v376
    %v378 = vsub.f32 1.0, %v377
    %v379 = vmul.f32 %v376, %v378
    %v380 = vadd.f32 %v376, %v379
    %vm381 = vweird.f32 %v375
    %vm382 = vweird.f32 %v376
    %vm383 = vmor %vm381, %vm382
    %v384 = vsel %vm383, %v376, %v380
    %v385 = vand.u32 2147483647, %v375
    %vm386 = vcmp.eq.f32.partialorder %v385, 8.507059e+37
    %v387 = vand.u32 %v375, 2147483648
    %v388 = vor.u32 1.1754944e-38, %v387
    %v389 = vsel %vm386, %v388, %v384
    %v390 = vmul.f32 1.0, %v389
    %v391 = vtanh.pop %v367
    %v393 = vrot.slane %v255, 6
    %v395 = vmul.f32 %v390, %v393
    %397 = vrot.lane.b32.xlu0 %v391, 64
    %v398 = vpop.permute.xlu0 %397
    %v400 = vmul.f32 %v390, %v398
    %402 = vrot.lane.b32.xlu0 %v400, 32
    %v403 = vpop.permute.xlu0 %402
    %v405 = vadd.f32 %v395, %v403
    %v406 = vtanh.pop %v405
    %408 = vrot.lane.b32.xlu0 %v406, 64
    %v409 = vpop.permute.xlu0 %408
    %v411 = vmul.f32 %v390, %v409
    %v412 = vsub.f32 0.0, %v371
    %v413 = vmul.f32 %v412, 1.442695
    %v414 = vpow.pop %v413
    %v415 = vadd.f32 %v414, 1.0
    %v416 = vrcp.pop %v415
    %v417 = vmul.f32 %v415, %v416
    %v418 = vsub.f32 1.0, %v417
    %v419 = vmul.f32 %v416, %v418
    %v420 = vadd.f32 %v416, %v419
    %vm421 = vweird.f32 %v415
    %vm422 = vweird.f32 %v416
    %vm423 = vmor %vm421, %vm422
    %v424 = vsel %vm423, %v416, %v420
    %v425 = vand.u32 2147483647, %v415
    %vm426 = vcmp.eq.f32.partialorder %v425, 8.507059e+37
    %v427 = vand.u32 %v415, 2147483648
    %v428 = vor.u32 1.1754944e-38, %v427
    %v429 = vsel %vm426, %v428, %v424
    %v430 = vmul.f32 1.0, %v429
    %v431 = vtanh.pop %v371
    %v433 = vrot.slane %v297, 2
    %v435 = vmul.f32 %v430, %v433
    %437 = vrot.lane.b32.xlu0 %v431, 64
    %v438 = vpop.permute.xlu0 %437
    %v440 = vmul.f32 %v430, %v438
    %442 = vrot.lane.b32.xlu0 %v440, 32
    %v443 = vpop.permute.xlu0 %442
    %v445 = vadd.f32 %v435, %v443
    %v446 = vtanh.pop %v445
    %448 = vrot.lane.b32.xlu0 %v446, 64
    %v449 = vpop.permute.xlu0 %448
    %v451 = vmul.f32 %v430, %v449
    %453 = vrot.lane.b32.xlu0 %v411, 32
    %v454 = vpop.permute.xlu0 %453
    %v457 = vrot.slane %v451, 2
    %458 = vrot.lane.b32.xlu0 %v457, 64
    %v459 = vpop.permute.xlu0 %458
    %v461 = vsel %vm155, %v454, %v459
    %vm462 = vcmask 257026
    %463 = vst.msk [vmem:[#allocation2] sm:$0xc] %vm462, %v454
    %464 = vrot.lane.b32.xlu0 %v451, 64
    %v465 = vpop.permute.xlu0 %464
    %vm467 = vcmask 521476
    %468 = vst.msk [vmem:[#allocation2 + $0x8] sm:$0x30] %vm467, %v465
    %v470 = vrot.slane %v461, 2
    %v471 = vsel %vm92, %v470, 0
    %473 = vmatpush.msra.mxu0 0.0
    %474 = vmatpush.msra.mxu0 0.0
    %475 = vmatpush.msra.mxu0 0.0
    %476 = vmatpush.msra.mxu0 0.0
    %477 = vmatpush.msra.mxu0 0.0
    %478 = vmatpush.msra.mxu0 0.0
    %479 = vmatpush.msra.mxu0 0.0
    %480 = vmatpush.msra.mxu0 0.0
    %481 = vmatpush.msra.mxu0 %v171
    %482 = vmatpush.msra.mxu0 %v169
    %483 = vmatpush.msra.mxu0 %v167
    %484 = vmatpush.msra.mxu0 %v165
    %485 = vmatpush.msra.mxu0 %v163
    %486 = vmatpush.msra.mxu0 %v161
    %487 = vmatpush.msra.mxu0 %v159
    %488 = vmatpush.msra.mxu0 %v157
    %489 = vmatmul.f32.gmra.mxu0 %v471
    %v490 = vpop.f32.mrf.mxu0
    %v491 = vadd.f32 0.0, %v490
    %492 = vdwg.mxu0
    %493 = vmatpush.msra.mxu0 0.0
    %494 = vmatpush.msra.mxu0 0.0
    %495 = vmatpush.msra.mxu0 0.0
    %496 = vmatpush.msra.mxu0 0.0
    %497 = vmatpush.msra.mxu0 0.0
    %498 = vmatpush.msra.mxu0 0.0
    %499 = vmatpush.msra.mxu0 0.0
    %500 = vmatpush.msra.mxu0 0.0
    %501 = vmatpush.msra.mxu0 %v172
    %502 = vmatpush.msra.mxu0 %v170
    %503 = vmatpush.msra.mxu0 %v168
    %504 = vmatpush.msra.mxu0 %v166
    %505 = vmatpush.msra.mxu0 %v164
    %506 = vmatpush.msra.mxu0 %v162
    %507 = vmatpush.msra.mxu0 %v160
    %508 = vmatpush.msra.mxu0 %v158
    %509 = vmatmul.f32.gmra.mxu0 %v471
    %v510 = vpop.f32.mrf.mxu0
    %v511 = vadd.f32 0.0, %v510
    %512 = vdwg.mxu0
    %v514 = vrot.slane %v491, 4
    %v516 = vadd.f32 %v117, %v514
    %v518 = vrot.slane %v511, 6
    %v520 = vadd.f32 %v143, %v518
    %v521 = vsub.f32 0.0, %v516
    %v522 = vmul.f32 %v521, 1.442695
    %v523 = vpow.pop %v522
    %v524 = vadd.f32 %v523, 1.0
    %v525 = vrcp.pop %v524
    %v526 = vmul.f32 %v524, %v525
    %v527 = vsub.f32 1.0, %v526
    %v528 = vmul.f32 %v525, %v527
    %v529 = vadd.f32 %v525, %v528
    %vm530 = vweird.f32 %v524
    %vm531 = vweird.f32 %v525
    %vm532 = vmor %vm530, %vm531
    %v533 = vsel %vm532, %v525, %v529
    %v534 = vand.u32 2147483647, %v524
    %vm535 = vcmp.eq.f32.partialorder %v534, 8.507059e+37
    %v536 = vand.u32 %v524, 2147483648
    %v537 = vor.u32 1.1754944e-38, %v536
    %v538 = vsel %vm535, %v537, %v533
    %v539 = vmul.f32 1.0, %v538
    %v540 = vtanh.pop %v516
    %v542 = vrot.slane %v405, 6
    %v544 = vmul.f32 %v539, %v542
    %546 = vrot.lane.b32.xlu0 %v540, 64
    %v547 = vpop.permute.xlu0 %546
    %v549 = vmul.f32 %v539, %v547
    %551 = vrot.lane.b32.xlu0 %v549, 32
    %v552 = vpop.permute.xlu0 %551
    %v554 = vadd.f32 %v544, %v552
    %v555 = vtanh.pop %v554
    %557 = vrot.lane.b32.xlu0 %v555, 64
    %v558 = vpop.permute.xlu0 %557
    %v560 = vmul.f32 %v539, %v558
    %v561 = vsub.f32 0.0, %v520
    %v562 = vmul.f32 %v561, 1.442695
    %v563 = vpow.pop %v562
    %v564 = vadd.f32 %v563, 1.0
    %v565 = vrcp.pop %v564
    %v566 = vmul.f32 %v564, %v565
    %v567 = vsub.f32 1.0, %v566
    %v568 = vmul.f32 %v565, %v567
    %v569 = vadd.f32 %v565, %v568
    %vm570 = vweird.f32 %v564
    %vm571 = vweird.f32 %v565
    %vm572 = vmor %vm570, %vm571
    %v573 = vsel %vm572, %v565, %v569
    %v574 = vand.u32 2147483647, %v564
    %vm575 = vcmp.eq.f32.partialorder %v574, 8.507059e+37
    %v576 = vand.u32 %v564, 2147483648
    %v577 = vor.u32 1.1754944e-38, %v576
    %v578 = vsel %vm575, %v577, %v573
    %v579 = vmul.f32 1.0, %v578
    %v580 = vtanh.pop %v520
    %v582 = vrot.slane %v445, 2
    %v584 = vmul.f32 %v579, %v582
    %586 = vrot.lane.b32.xlu0 %v580, 64
    %v587 = vpop.permute.xlu0 %586
    %v589 = vmul.f32 %v579, %v587
    %591 = vrot.lane.b32.xlu0 %v589, 32
    %v592 = vpop.permute.xlu0 %591
    %v594 = vadd.f32 %v584, %v592
    %v595 = vtanh.pop %v594
    %597 = vrot.lane.b32.xlu0 %v595, 64
    %v598 = vpop.permute.xlu0 %597
    %v600 = vmul.f32 %v579, %v598
    %602 = vrot.lane.b32.xlu0 %v560, 32
    %v603 = vpop.permute.xlu0 %602
    %v606 = vrot.slane %v600, 6
    %607 = vrot.lane.b32.xlu0 %v606, 64
    %v608 = vpop.permute.xlu0 %607
    %v610 = vsel %vm155, %v603, %v608
    %vm611 = vcmask 259076
    %612 = vst.msk [vmem:[#allocation2] sm:$0x30] %vm611, %v603
    %613 = vrot.lane.b32.xlu0 %v600, 64
    %v614 = vpop.permute.xlu0 %613
    %vm616 = vcmask 519426
    %617 = vst.msk [vmem:[#allocation2 + $0x8] sm:$0xc] %vm616, %v614
    %v619 = vrot.slane %v610, 4
    %v620 = vsel %vm92, %v619, 0
    %622 = vmatpush.msra.mxu0 0.0
    %623 = vmatpush.msra.mxu0 0.0
    %624 = vmatpush.msra.mxu0 0.0
    %625 = vmatpush.msra.mxu0 0.0
    %626 = vmatpush.msra.mxu0 0.0
    %627 = vmatpush.msra.mxu0 0.0
    %628 = vmatpush.msra.mxu0 0.0
    %629 = vmatpush.msra.mxu0 0.0
    %630 = vmatpush.msra.mxu0 %v171
    %631 = vmatpush.msra.mxu0 %v169
    %632 = vmatpush.msra.mxu0 %v167
    %633 = vmatpush.msra.mxu0 %v165
    %634 = vmatpush.msra.mxu0 %v163
    %635 = vmatpush.msra.mxu0 %v161
    %636 = vmatpush.msra.mxu0 %v159
    %637 = vmatpush.msra.mxu0 %v157
    %638 = vmatmul.f32.gmra.mxu0 %v620
    %v639 = vpop.f32.mrf.mxu0
    %v640 = vadd.f32 0.0, %v639
    %641 = vdwg.mxu0
    %642 = vmatpush.msra.mxu0 0.0
    %643 = vmatpush.msra.mxu0 0.0
    %644 = vmatpush.msra.mxu0 0.0
    %645 = vmatpush.msra.mxu0 0.0
    %646 = vmatpush.msra.mxu0 0.0
    %647 = vmatpush.msra.mxu0 0.0
    %648 = vmatpush.msra.mxu0 0.0
    %649 = vmatpush.msra.mxu0 0.0
    %650 = vmatpush.msra.mxu0 %v172
    %651 = vmatpush.msra.mxu0 %v170
    %652 = vmatpush.msra.mxu0 %v168
    %653 = vmatpush.msra.mxu0 %v166
    %654 = vmatpush.msra.mxu0 %v164
    %655 = vmatpush.msra.mxu0 %v162
    %656 = vmatpush.msra.mxu0 %v160
    %657 = vmatpush.msra.mxu0 %v158
    %658 = vmatmul.f32.gmra.mxu0 %v620
    %v659 = vpop.f32.mrf.mxu0
    %v660 = vadd.f32 0.0, %v659
    %661 = vdwg.mxu0
    %v663 = vrot.slane %v640, 2
    %v665 = vadd.f32 %v117, %v663
    %v666 = vadd.f32 %v143, %v660
    %v667 = vsub.f32 0.0, %v665
    %v668 = vmul.f32 %v667, 1.442695
    %v669 = vpow.pop %v668
    %v670 = vadd.f32 %v669, 1.0
    %v671 = vrcp.pop %v670
    %v672 = vmul.f32 %v670, %v671
    %v673 = vsub.f32 1.0, %v672
    %v674 = vmul.f32 %v671, %v673
    %v675 = vadd.f32 %v671, %v674
    %vm676 = vweird.f32 %v670
    %vm677 = vweird.f32 %v671
    %vm678 = vmor %vm676, %vm677
    %v679 = vsel %vm678, %v671, %v675
    %v680 = vand.u32 2147483647, %v670
    %vm681 = vcmp.eq.f32.partialorder %v680, 8.507059e+37
    %v682 = vand.u32 %v670, 2147483648
    %v683 = vor.u32 1.1754944e-38, %v682
    %v684 = vsel %vm681, %v683, %v679
    %v685 = vmul.f32 1.0, %v684
    %v686 = vtanh.pop %v665
    %v688 = vrot.slane %v554, 6
    %v690 = vmul.f32 %v685, %v688
    %692 = vrot.lane.b32.xlu0 %v686, 64
    %v693 = vpop.permute.xlu0 %692
    %v695 = vmul.f32 %v685, %v693
    %697 = vrot.lane.b32.xlu0 %v695, 32
    %v698 = vpop.permute.xlu0 %697
    %v700 = vadd.f32 %v690, %v698
    %v701 = vtanh.pop %v700
    %703 = vrot.lane.b32.xlu0 %v701, 64
    %v704 = vpop.permute.xlu0 %703
    %v706 = vmul.f32 %v685, %v704
    %v707 = vsub.f32 0.0, %v666
    %v708 = vmul.f32 %v707, 1.442695
    %v709 = vpow.pop %v708
    %v710 = vadd.f32 %v709, 1.0
    %v711 = vrcp.pop %v710
    %v712 = vmul.f32 %v710, %v711
    %v713 = vsub.f32 1.0, %v712
    %v714 = vmul.f32 %v711, %v713
    %v715 = vadd.f32 %v711, %v714
    %vm716 = vweird.f32 %v710
    %vm717 = vweird.f32 %v711
    %vm718 = vmor %vm716, %vm717
    %v719 = vsel %vm718, %v711, %v715
    %v720 = vand.u32 2147483647, %v710
    %vm721 = vcmp.eq.f32.partialorder %v720, 8.507059e+37
    %v722 = vand.u32 %v710, 2147483648
    %v723 = vor.u32 1.1754944e-38, %v722
    %v724 = vsel %vm721, %v723, %v719
    %v725 = vmul.f32 1.0, %v724
    %v726 = vtanh.pop %v666
    %v728 = vrot.slane %v594, 2
    %v730 = vmul.f32 %v725, %v728
    %732 = vrot.lane.b32.xlu0 %v726, 64
    %v733 = vpop.permute.xlu0 %732
    %v735 = vmul.f32 %v725, %v733
    %737 = vrot.lane.b32.xlu0 %v735, 32
    %v738 = vpop.permute.xlu0 %737
    %v740 = vadd.f32 %v730, %v738
    %v741 = vtanh.pop %v740
    %743 = vrot.lane.b32.xlu0 %v741, 64
    %v744 = vpop.permute.xlu0 %743
    %v746 = vmul.f32 %v725, %v744
    %748 = vrot.lane.b32.xlu0 %v706, 32
    %v749 = vpop.permute.xlu0 %748
    %v752 = vrot.slane %v746, 2
    %753 = vrot.lane.b32.xlu0 %v752, 64
    %v754 = vpop.permute.xlu0 %753
    %v756 = vsel %vm155, %v749, %v754
    %vm757 = vcmask 261126
    %758 = vst.msk [vmem:[#allocation2] sm:$0xc0] %vm757, %v749
    %759 = vrot.lane.b32.xlu0 %v746, 64
    %v760 = vpop.permute.xlu0 %759
    %vm762 = vcmask 517376
    %763 = vst.msk [vmem:[#allocation2 + $0x8] sm:$0x3] %vm762, %v760
    %v765 = vrot.slane %v756, 6
    %v766 = vsel %vm92, %v765, 0
    %768 = vmatpush.msra.mxu0 0.0
    %769 = vmatpush.msra.mxu0 0.0
    %770 = vmatpush.msra.mxu0 0.0
    %771 = vmatpush.msra.mxu0 0.0
    %772 = vmatpush.msra.mxu0 0.0
    %773 = vmatpush.msra.mxu0 0.0
    %774 = vmatpush.msra.mxu0 0.0
    %775 = vmatpush.msra.mxu0 0.0
    %776 = vmatpush.msra.mxu0 %v171
    %777 = vmatpush.msra.mxu0 %v169
    %778 = vmatpush.msra.mxu0 %v167
    %779 = vmatpush.msra.mxu0 %v165
    %780 = vmatpush.msra.mxu0 %v163
    %781 = vmatpush.msra.mxu0 %v161
    %782 = vmatpush.msra.mxu0 %v159
    %783 = vmatpush.msra.mxu0 %v157
    %784 = vmatmul.f32.gmra.mxu0 %v766
    %v785 = vpop.f32.mrf.mxu0
    %v786 = vadd.f32 0.0, %v785
    %787 = vdwg.mxu0
    %788 = vmatpush.msra.mxu0 0.0
    %789 = vmatpush.msra.mxu0 0.0
    %790 = vmatpush.msra.mxu0 0.0
    %791 = vmatpush.msra.mxu0 0.0
    %792 = vmatpush.msra.mxu0 0.0
    %793 = vmatpush.msra.mxu0 0.0
    %794 = vmatpush.msra.mxu0 0.0
    %795 = vmatpush.msra.mxu0 0.0
    %796 = vmatpush.msra.mxu0 %v172
    %797 = vmatpush.msra.mxu0 %v170
    %798 = vmatpush.msra.mxu0 %v168
    %799 = vmatpush.msra.mxu0 %v166
    %800 = vmatpush.msra.mxu0 %v164
    %801 = vmatpush.msra.mxu0 %v162
    %802 = vmatpush.msra.mxu0 %v160
    %803 = vmatpush.msra.mxu0 %v158
    %804 = vmatmul.f32.gmra.mxu0 %v766
    %v805 = vpop.f32.mrf.mxu0
    %v806 = vadd.f32 0.0, %v805
    %807 = vdwg.mxu0
    %v808 = vadd.f32 %v120, %v786
    %v810 = vrot.slane %v806, 2
    %v812 = vadd.f32 %v140, %v810
    %v813 = vsub.f32 0.0, %v808
    %v814 = vmul.f32 %v813, 1.442695
    %v815 = vpow.pop %v814
    %v816 = vadd.f32 %v815, 1.0
    %v817 = vrcp.pop %v816
    %v818 = vmul.f32 %v816, %v817
    %v819 = vsub.f32 1.0, %v818
    %v820 = vmul.f32 %v817, %v819
    %v821 = vadd.f32 %v817, %v820
    %vm822 = vweird.f32 %v816
    %vm823 = vweird.f32 %v817
    %vm824 = vmor %vm822, %vm823
    %v825 = vsel %vm824, %v817, %v821
    %v826 = vand.u32 2147483647, %v816
    %vm827 = vcmp.eq.f32.partialorder %v826, 8.507059e+37
    %v828 = vand.u32 %v816, 2147483648
    %v829 = vor.u32 1.1754944e-38, %v828
    %v830 = vsel %vm827, %v829, %v825
    %v831 = vmul.f32 1.0, %v830
    %v832 = vtanh.pop %v808
    %v834 = vrot.slane %v700, 6
    %v836 = vmul.f32 %v831, %v834
    %838 = vrot.lane.b32.xlu0 %v832, 64
    %v839 = vpop.permute.xlu0 %838
    %v841 = vmul.f32 %v831, %v839
    %843 = vrot.lane.b32.xlu0 %v841, 32
    %v844 = vpop.permute.xlu0 %843
    %v846 = vadd.f32 %v836, %v844
    %v847 = vtanh.pop %v846
    %849 = vrot.lane.b32.xlu0 %v847, 64
    %v850 = vpop.permute.xlu0 %849
    %v852 = vmul.f32 %v831, %v850
    %v853 = vsub.f32 0.0, %v812
    %v854 = vmul.f32 %v853, 1.442695
    %v855 = vpow.pop %v854
    %v856 = vadd.f32 %v855, 1.0
    %v857 = vrcp.pop %v856
    %v858 = vmul.f32 %v856, %v857
    %v859 = vsub.f32 1.0, %v858
    %v860 = vmul.f32 %v857, %v859
    %v861 = vadd.f32 %v857, %v860
    %vm862 = vweird.f32 %v856
    %vm863 = vweird.f32 %v857
    %vm864 = vmor %vm862, %vm863
    %v865 = vsel %vm864, %v857, %v861
    %v866 = vand.u32 2147483647, %v856
    %vm867 = vcmp.eq.f32.partialorder %v866, 8.507059e+37
    %v868 = vand.u32 %v856, 2147483648
    %v869 = vor.u32 1.1754944e-38, %v868
    %v870 = vsel %vm867, %v869, %v865
    %v871 = vmul.f32 1.0, %v870
    %v872 = vtanh.pop %v812
    %v874 = vrot.slane %v740, 2
    %v876 = vmul.f32 %v871, %v874
    %878 = vrot.lane.b32.xlu0 %v872, 64
    %v879 = vpop.permute.xlu0 %878
    %v881 = vmul.f32 %v871, %v879
    %883 = vrot.lane.b32.xlu0 %v881, 32
    %v884 = vpop.permute.xlu0 %883
    %v886 = vadd.f32 %v876, %v884
    %v887 = vtanh.pop %v886
    %889 = vrot.lane.b32.xlu0 %v887, 64
    %v890 = vpop.permute.xlu0 %889
    %v892 = vmul.f32 %v871, %v890
    %894 = vrot.lane.b32.xlu0 %v852, 32
    %v895 = vpop.permute.xlu0 %894
    %v898 = vrot.slane %v892, 6
    %899 = vrot.lane.b32.xlu0 %v898, 64
    %v900 = vpop.permute.xlu0 %899
    %v902 = vsel %vm155, %v895, %v900
    %903 = vst.msk [vmem:[#allocation2 + $0x8] sm:$0x3] %vm314, %v895
    %904 = vrot.lane.b32.xlu0 %v892, 64
    %v905 = vpop.permute.xlu0 %904
    %907 = vst.msk [vmem:[#allocation2] sm:$0xc0] %vm319, %v905
    %v909 = vsel %vm92, %v902, 0
    %911 = vmatpush.msra.mxu0 0.0
    %912 = vmatpush.msra.mxu0 0.0
    %913 = vmatpush.msra.mxu0 0.0
    %914 = vmatpush.msra.mxu0 0.0
    %915 = vmatpush.msra.mxu0 0.0
    %916 = vmatpush.msra.mxu0 0.0
    %917 = vmatpush.msra.mxu0 0.0
    %918 = vmatpush.msra.mxu0 0.0
    %919 = vmatpush.msra.mxu0 %v171
    %920 = vmatpush.msra.mxu0 %v169
    %921 = vmatpush.msra.mxu0 %v167
    %922 = vmatpush.msra.mxu0 %v165
    %923 = vmatpush.msra.mxu0 %v163
    %924 = vmatpush.msra.mxu0 %v161
    %925 = vmatpush.msra.mxu0 %v159
    %926 = vmatpush.msra.mxu0 %v157
    %927 = vmatmul.f32.gmra.mxu0 %v909
    %v928 = vpop.f32.mrf.mxu0
    %v929 = vadd.f32 0.0, %v928
    %930 = vdwg.mxu0
    %931 = vmatpush.msra.mxu0 0.0
    %932 = vmatpush.msra.mxu0 0.0
    %933 = vmatpush.msra.mxu0 0.0
    %934 = vmatpush.msra.mxu0 0.0
    %935 = vmatpush.msra.mxu0 0.0
    %936 = vmatpush.msra.mxu0 0.0
    %937 = vmatpush.msra.mxu0 0.0
    %938 = vmatpush.msra.mxu0 0.0
    %939 = vmatpush.msra.mxu0 %v172
    %940 = vmatpush.msra.mxu0 %v170
    %941 = vmatpush.msra.mxu0 %v168
    %942 = vmatpush.msra.mxu0 %v166
    %943 = vmatpush.msra.mxu0 %v164
    %944 = vmatpush.msra.mxu0 %v162
    %945 = vmatpush.msra.mxu0 %v160
    %946 = vmatpush.msra.mxu0 %v158
    %947 = vmatmul.f32.gmra.mxu0 %v909
    %v948 = vpop.f32.mrf.mxu0
    %v949 = vadd.f32 0.0, %v948
    %950 = vdwg.mxu0
    %v952 = vrot.slane %v929, 6
    %v954 = vadd.f32 %v120, %v952
    %v956 = vrot.slane %v949, 4
    %v958 = vadd.f32 %v140, %v956
    %v959 = vsub.f32 0.0, %v954
    %v960 = vmul.f32 %v959, 1.442695
    %v961 = vpow.pop %v960
    %v962 = vadd.f32 %v961, 1.0
    %v963 = vrcp.pop %v962
    %v964 = vmul.f32 %v962, %v963
    %v965 = vsub.f32 1.0, %v964
    %v966 = vmul.f32 %v963, %v965
    %v967 = vadd.f32 %v963, %v966
    %vm968 = vweird.f32 %v962
    %vm969 = vweird.f32 %v963
    %vm970 = vmor %vm968, %vm969
    %v971 = vsel %vm970, %v963, %v967
    %v972 = vand.u32 2147483647, %v962
    %vm973 = vcmp.eq.f32.partialorder %v972, 8.507059e+37
    %v974 = vand.u32 %v962, 2147483648
    %v975 = vor.u32 1.1754944e-38, %v974
    %v976 = vsel %vm973, %v975, %v971
    %v977 = vmul.f32 1.0, %v976
    %v978 = vtanh.pop %v954
    %v980 = vrot.slane %v846, 6
    %v982 = vmul.f32 %v977, %v980
    %984 = vrot.lane.b32.xlu0 %v978, 64
    %v985 = vpop.permute.xlu0 %984
    %v987 = vmul.f32 %v977, %v985
    %989 = vrot.lane.b32.xlu0 %v987, 32
    %v990 = vpop.permute.xlu0 %989
    %v992 = vadd.f32 %v982, %v990
    %v993 = vtanh.pop %v992
    %995 = vrot.lane.b32.xlu0 %v993, 64
    %v996 = vpop.permute.xlu0 %995
    %v998 = vmul.f32 %v977, %v996
    %v999 = vsub.f32 0.0, %v958
    %v1000 = vmul.f32 %v999, 1.442695
    %v1001 = vpow.pop %v1000
    %v1002 = vadd.f32 %v1001, 1.0
    %v1003 = vrcp.pop %v1002
    %v1004 = vmul.f32 %v1002, %v1003
    %v1005 = vsub.f32 1.0, %v1004
    %v1006 = vmul.f32 %v1003, %v1005
    %v1007 = vadd.f32 %v1003, %v1006
    %vm1008 = vweird.f32 %v1002
    %vm1009 = vweird.f32 %v1003
    %vm1010 = vmor %vm1008, %vm1009
    %v1011 = vsel %vm1010, %v1003, %v1007
    %v1012 = vand.u32 2147483647, %v1002
    %vm1013 = vcmp.eq.f32.partialorder %v1012, 8.507059e+37
    %v1014 = vand.u32 %v1002, 2147483648
    %v1015 = vor.u32 1.1754944e-38, %v1014
    %v1016 = vsel %vm1013, %v1015, %v1011
    %v1017 = vmul.f32 1.0, %v1016
    %v1018 = vtanh.pop %v958
    %v1020 = vrot.slane %v886, 2
    %v1022 = vmul.f32 %v1017, %v1020
    %1024 = vrot.lane.b32.xlu0 %v1018, 64
    %v1025 = vpop.permute.xlu0 %1024
    %v1027 = vmul.f32 %v1017, %v1025
    %1029 = vrot.lane.b32.xlu0 %v1027, 32
    %v1030 = vpop.permute.xlu0 %1029
    %v1032 = vadd.f32 %v1022, %v1030
    %v1033 = vtanh.pop %v1032
    %1035 = vrot.lane.b32.xlu0 %v1033, 64
    %v1036 = vpop.permute.xlu0 %1035
    %v1038 = vmul.f32 %v1017, %v1036
    %1040 = vrot.lane.b32.xlu0 %v998, 32
    %v1041 = vpop.permute.xlu0 %1040
    %v1044 = vrot.slane %v1038, 2
    %1045 = vrot.lane.b32.xlu0 %v1044, 64
    %v1046 = vpop.permute.xlu0 %1045
    %v1048 = vsel %vm155, %v1041, %v1046
    %1049 = vst.msk [vmem:[#allocation2 + $0x8] sm:$0xc] %vm462, %v1041
    %1050 = vrot.lane.b32.xlu0 %v1038, 64
    %v1051 = vpop.permute.xlu0 %1050
    %1053 = vst.msk [vmem:[#allocation2] sm:$0x30] %vm467, %v1051
    %v1055 = vrot.slane %v1048, 2
    %v1056 = vsel %vm92, %v1055, 0
    %1058 = vmatpush.msra.mxu0 0.0
    %1059 = vmatpush.msra.mxu0 0.0
    %1060 = vmatpush.msra.mxu0 0.0
    %1061 = vmatpush.msra.mxu0 0.0
    %1062 = vmatpush.msra.mxu0 0.0
    %1063 = vmatpush.msra.mxu0 0.0
    %1064 = vmatpush.msra.mxu0 0.0
    %1065 = vmatpush.msra.mxu0 0.0
    %1066 = vmatpush.msra.mxu0 %v171
    %1067 = vmatpush.msra.mxu0 %v169
    %1068 = vmatpush.msra.mxu0 %v167
    %1069 = vmatpush.msra.mxu0 %v165
    %1070 = vmatpush.msra.mxu0 %v163
    %1071 = vmatpush.msra.mxu0 %v161
    %1072 = vmatpush.msra.mxu0 %v159
    %1073 = vmatpush.msra.mxu0 %v157
    %1074 = vmatmul.f32.gmra.mxu0 %v1056
    %v1075 = vpop.f32.mrf.mxu0
    %v1076 = vadd.f32 0.0, %v1075
    %1077 = vdwg.mxu0
    %1078 = vmatpush.msra.mxu0 0.0
    %1079 = vmatpush.msra.mxu0 0.0
    %1080 = vmatpush.msra.mxu0 0.0
    %1081 = vmatpush.msra.mxu0 0.0
    %1082 = vmatpush.msra.mxu0 0.0
    %1083 = vmatpush.msra.mxu0 0.0
    %1084 = vmatpush.msra.mxu0 0.0
    %1085 = vmatpush.msra.mxu0 0.0
    %1086 = vmatpush.msra.mxu0 %v172
    %1087 = vmatpush.msra.mxu0 %v170
    %1088 = vmatpush.msra.mxu0 %v168
    %1089 = vmatpush.msra.mxu0 %v166
    %1090 = vmatpush.msra.mxu0 %v164
    %1091 = vmatpush.msra.mxu0 %v162
    %1092 = vmatpush.msra.mxu0 %v160
    %1093 = vmatpush.msra.mxu0 %v158
    %1094 = vmatmul.f32.gmra.mxu0 %v1056
    %v1095 = vpop.f32.mrf.mxu0
    %v1096 = vadd.f32 0.0, %v1095
    %1097 = vdwg.mxu0
    %v1099 = vrot.slane %v1076, 4
    %v1101 = vadd.f32 %v120, %v1099
    %v1103 = vrot.slane %v1096, 6
    %v1105 = vadd.f32 %v140, %v1103
    %v1106 = vsub.f32 0.0, %v1101
    %v1107 = vmul.f32 %v1106, 1.442695
    %v1108 = vpow.pop %v1107
    %v1109 = vadd.f32 %v1108, 1.0
    %v1110 = vrcp.pop %v1109
    %v1111 = vmul.f32 %v1109, %v1110
    %v1112 = vsub.f32 1.0, %v1111
    %v1113 = vmul.f32 %v1110, %v1112
    %v1114 = vadd.f32 %v1110, %v1113
    %vm1115 = vweird.f32 %v1109
    %vm1116 = vweird.f32 %v1110
    %vm1117 = vmor %vm1115, %vm1116
    %v1118 = vsel %vm1117, %v1110, %v1114
    %v1119 = vand.u32 2147483647, %v1109
    %vm1120 = vcmp.eq.f32.partialorder %v1119, 8.507059e+37
    %v1121 = vand.u32 %v1109, 2147483648
    %v1122 = vor.u32 1.1754944e-38, %v1121
    %v1123 = vsel %vm1120, %v1122, %v1118
    %v1124 = vmul.f32 1.0, %v1123
    %v1125 = vtanh.pop %v1101
    %v1127 = vrot.slane %v992, 6
    %v1129 = vmul.f32 %v1124, %v1127
    %1131 = vrot.lane.b32.xlu0 %v1125, 64
    %v1132 = vpop.permute.xlu0 %1131
    %v1134 = vmul.f32 %v1124, %v1132
    %1136 = vrot.lane.b32.xlu0 %v1134, 32
    %v1137 = vpop.permute.xlu0 %1136
    %v1139 = vadd.f32 %v1129, %v1137
    %v1140 = vtanh.pop %v1139
    %1142 = vrot.lane.b32.xlu0 %v1140, 64
    %v1143 = vpop.permute.xlu0 %1142
    %v1145 = vmul.f32 %v1124, %v1143
    %v1146 = vsub.f32 0.0, %v1105
    %v1147 = vmul.f32 %v1146, 1.442695
    %v1148 = vpow.pop %v1147
    %v1149 = vadd.f32 %v1148, 1.0
    %v1150 = vrcp.pop %v1149
    %v1151 = vmul.f32 %v1149, %v1150
    %v1152 = vsub.f32 1.0, %v1151
    %v1153 = vmul.f32 %v1150, %v1152
    %v1154 = vadd.f32 %v1150, %v1153
    %vm1155 = vweird.f32 %v1149
    %vm1156 = vweird.f32 %v1150
    %vm1157 = vmor %vm1155, %vm1156
    %v1158 = vsel %vm1157, %v1150, %v1154
    %v1159 = vand.u32 2147483647, %v1149
    %vm1160 = vcmp.eq.f32.partialorder %v1159, 8.507059e+37
    %v1161 = vand.u32 %v1149, 2147483648
    %v1162 = vor.u32 1.1754944e-38, %v1161
    %v1163 = vsel %vm1160, %v1162, %v1158
    %v1164 = vmul.f32 1.0, %v1163
    %v1165 = vtanh.pop %v1105
    %v1167 = vrot.slane %v1032, 2
    %v1169 = vmul.f32 %v1164, %v1167
    %1171 = vrot.lane.b32.xlu0 %v1165, 64
    %v1172 = vpop.permute.xlu0 %1171
    %v1174 = vmul.f32 %v1164, %v1172
    %1176 = vrot.lane.b32.xlu0 %v1174, 32
    %v1177 = vpop.permute.xlu0 %1176
    %v1179 = vadd.f32 %v1169, %v1177
    %v1180 = vtanh.pop %v1179
    %1182 = vrot.lane.b32.xlu0 %v1180, 64
    %v1183 = vpop.permute.xlu0 %1182
    %v1185 = vmul.f32 %v1164, %v1183
    %1187 = vrot.lane.b32.xlu0 %v1145, 32
    %v1188 = vpop.permute.xlu0 %1187
    %v1191 = vrot.slane %v1185, 6
    %1192 = vrot.lane.b32.xlu0 %v1191, 64
    %v1193 = vpop.permute.xlu0 %1192
    %v1195 = vsel %vm155, %v1188, %v1193
    %1196 = vst.msk [vmem:[#allocation2 + $0x8] sm:$0x30] %vm611, %v1188
    %1197 = vrot.lane.b32.xlu0 %v1185, 64
    %v1198 = vpop.permute.xlu0 %1197
    %1200 = vst.msk [vmem:[#allocation2] sm:$0xc] %vm616, %v1198
    %v1202 = vrot.slane %v1195, 4
    %v1203 = vsel %vm92, %v1202, 0
    %1205 = vmatpush.msra.mxu0 0.0
    %1206 = vmatpush.msra.mxu0 0.0
    %1207 = vmatpush.msra.mxu0 0.0
    %1208 = vmatpush.msra.mxu0 0.0
    %1209 = vmatpush.msra.mxu0 0.0
    %1210 = vmatpush.msra.mxu0 0.0
    %1211 = vmatpush.msra.mxu0 0.0
    %1212 = vmatpush.msra.mxu0 0.0
    %1213 = vmatpush.msra.mxu0 %v171
    %1214 = vmatpush.msra.mxu0 %v169
    %1215 = vmatpush.msra.mxu0 %v167
    %1216 = vmatpush.msra.mxu0 %v165
    %1217 = vmatpush.msra.mxu0 %v163
    %1218 = vmatpush.msra.mxu0 %v161
    %1219 = vmatpush.msra.mxu0 %v159
    %1220 = vmatpush.msra.mxu0 %v157
    %1221 = vmatmul.f32.gmra.mxu0 %v1203
    %v1222 = vpop.f32.mrf.mxu0
    %v1223 = vadd.f32 0.0, %v1222
    %1224 = vdwg.mxu0
    %1225 = vmatpush.msra.mxu0 0.0
    %1226 = vmatpush.msra.mxu0 0.0
    %1227 = vmatpush.msra.mxu0 0.0
    %1228 = vmatpush.msra.mxu0 0.0
    %1229 = vmatpush.msra.mxu0 0.0
    %1230 = vmatpush.msra.mxu0 0.0
    %1231 = vmatpush.msra.mxu0 0.0
    %1232 = vmatpush.msra.mxu0 0.0
    %1233 = vmatpush.msra.mxu0 %v172
    %1234 = vmatpush.msra.mxu0 %v170
    %1235 = vmatpush.msra.mxu0 %v168
    %1236 = vmatpush.msra.mxu0 %v166
    %1237 = vmatpush.msra.mxu0 %v164
    %1238 = vmatpush.msra.mxu0 %v162
    %1239 = vmatpush.msra.mxu0 %v160
    %1240 = vmatpush.msra.mxu0 %v158
    %1241 = vmatmul.f32.gmra.mxu0 %v1203
    %v1242 = vpop.f32.mrf.mxu0
    %v1243 = vadd.f32 0.0, %v1242
    %1244 = vdwg.mxu0
    %v1246 = vrot.slane %v1223, 2
    %v1248 = vadd.f32 %v120, %v1246
    %v1249 = vadd.f32 %v140, %v1243
    %v1250 = vsub.f32 0.0, %v1248
    %v1251 = vmul.f32 %v1250, 1.442695
    %v1252 = vpow.pop %v1251
    %v1253 = vadd.f32 %v1252, 1.0
    %v1254 = vrcp.pop %v1253
    %v1255 = vmul.f32 %v1253, %v1254
    %v1256 = vsub.f32 1.0, %v1255
    %v1257 = vmul.f32 %v1254, %v1256
    %v1258 = vadd.f32 %v1254, %v1257
    %vm1259 = vweird.f32 %v1253
    %vm1260 = vweird.f32 %v1254
    %vm1261 = vmor %vm1259, %vm1260
    %v1262 = vsel %vm1261, %v1254, %v1258
    %v1263 = vand.u32 2147483647, %v1253
    %vm1264 = vcmp.eq.f32.partialorder %v1263, 8.507059e+37
    %v1265 = vand.u32 %v1253, 2147483648
    %v1266 = vor.u32 1.1754944e-38, %v1265
    %v1267 = vsel %vm1264, %v1266, %v1262
    %v1268 = vmul.f32 1.0, %v1267
    %v1269 = vtanh.pop %v1248
    %v1271 = vrot.slane %v1139, 6
    %v1273 = vmul.f32 %v1268, %v1271
    %1275 = vrot.lane.b32.xlu0 %v1269, 64
    %v1276 = vpop.permute.xlu0 %1275
    %v1278 = vmul.f32 %v1268, %v1276
    %1280 = vrot.lane.b32.xlu0 %v1278, 32
    %v1281 = vpop.permute.xlu0 %1280
    %v1283 = vadd.f32 %v1273, %v1281
    %v1284 = vtanh.pop %v1283
    %1286 = vrot.lane.b32.xlu0 %v1284, 64
    %v1287 = vpop.permute.xlu0 %1286
    %v1289 = vmul.f32 %v1268, %v1287
    %v1290 = vsub.f32 0.0, %v1249
    %v1291 = vmul.f32 %v1290, 1.442695
    %v1292 = vpow.pop %v1291
    %v1293 = vadd.f32 %v1292, 1.0
    %v1294 = vrcp.pop %v1293
    %v1295 = vmul.f32 %v1293, %v1294
    %v1296 = vsub.f32 1.0, %v1295
    %v1297 = vmul.f32 %v1294, %v1296
    %v1298 = vadd.f32 %v1294, %v1297
    %vm1299 = vweird.f32 %v1293
    %vm1300 = vweird.f32 %v1294
    %vm1301 = vmor %vm1299, %vm1300
    %v1302 = vsel %vm1301, %v1294, %v1298
    %v1303 = vand.u32 2147483647, %v1293
    %vm1304 = vcmp.eq.f32.partialorder %v1303, 8.507059e+37
    %v1305 = vand.u32 %v1293, 2147483648
    %v1306 = vor.u32 1.1754944e-38, %v1305
    %v1307 = vsel %vm1304, %v1306, %v1302
    %v1308 = vmul.f32 1.0, %v1307
    %v1309 = vtanh.pop %v1249
    %v1311 = vrot.slane %v1179, 2
    %v1313 = vmul.f32 %v1308, %v1311
    %1315 = vrot.lane.b32.xlu0 %v1309, 64
    %v1316 = vpop.permute.xlu0 %1315
    %v1318 = vmul.f32 %v1308, %v1316
    %1320 = vrot.lane.b32.xlu0 %v1318, 32
    %v1321 = vpop.permute.xlu0 %1320
    %v1323 = vadd.f32 %v1313, %v1321
    %v1324 = vtanh.pop %v1323
    %1326 = vrot.lane.b32.xlu0 %v1324, 64
    %v1327 = vpop.permute.xlu0 %1326
    %v1329 = vmul.f32 %v1308, %v1327
    %1331 = vrot.lane.b32.xlu0 %v1289, 32
    %v1332 = vpop.permute.xlu0 %1331
    %1334 = vst.msk [vmem:[#allocation2 + $0x8] sm:$0xc0] %vm757, %v1332
    %1336 = vrot.lane.b32.xlu0 %v1329, 64
    %v1337 = vpop.permute.xlu0 %1336
    %1339 = vst.msk [vmem:[#allocation2] sm:$0x3] %vm762, %v1337
    %v1340 = vadd.f32 %v1289, 0.0
    %v1341 = vrot.slane %v1329, 2
    %v1343 = vadd.f32 %v1340, %v1341
    %v1344 = vld [vmem:[#allocation2] sm:$0xff]
    %v1345 = vld [vmem:[#allocation2 + $0x8] sm:$0xff]
    %s1346 = scalar_lea.vmem [#allocation3], 128
    %v1347 = vld [vmem:[%s1346] sm:$0xff]
    %v1348 = vld [vmem:[%s1346 + $0x8] sm:$0xff]
    %v1349 = vld [vmem:[%s1346 + $0x10] sm:$0xff]
    %v1350 = vld [vmem:[%s1346 + $0x18] sm:$0xff]
    %v1351 = vld [vmem:[%s1346 + $0x20] sm:$0xff]
    %v1352 = vld [vmem:[%s1346 + $0x28] sm:$0xff]
    %v1353 = vld [vmem:[%s1346 + $0x30] sm:$0xff]
    %v1354 = vld [vmem:[%s1346 + $0x38] sm:$0xff]
    %v1355 = vld [vmem:[%s1346 + $0x40] sm:$0xff]
    %v1356 = vld [vmem:[%s1346 + $0x48] sm:$0xff]
    %v1357 = vld [vmem:[%s1346 + $0x50] sm:$0xff]
    %v1358 = vld [vmem:[%s1346 + $0x58] sm:$0xff]
    %v1359 = vld [vmem:[%s1346 + $0x60] sm:$0xff]
    %v1360 = vld [vmem:[%s1346 + $0x68] sm:$0xff]
    %v1361 = vld [vmem:[%s1346 + $0x70] sm:$0xff]
    %v1362 = vld [vmem:[%s1346 + $0x78] sm:$0xff]
    %s1363 = scalar_lea.vmem %s3, 2
    %v1364 = vld [vmem:[%s1363] sm:$0x3]
    %v1366 = vperm.slane %v1364, 0
    %v1367 = vperm.slane %v1364, 1
    %v1371 = vsel %vm92, %v1344, 0
    %v1374 = vsel %vm92, %v1345, 0
    %1376 = vmatpush.msra.mxu0 0.0
    %1377 = vmatpush.msra.mxu0 0.0
    %1378 = vmatpush.msra.mxu0 0.0
    %1379 = vmatpush.msra.mxu0 0.0
    %1380 = vmatpush.msra.mxu0 0.0
    %1381 = vmatpush.msra.mxu0 0.0
    %1382 = vmatpush.msra.mxu0 0.0
    %1383 = vmatpush.msra.mxu0 0.0
    %1384 = vmatpush.msra.mxu0 %v1361
    %1385 = vmatpush.msra.mxu0 %v1359
    %1386 = vmatpush.msra.mxu0 %v1357
    %1387 = vmatpush.msra.mxu0 %v1355
    %1388 = vmatpush.msra.mxu0 %v1353
    %1389 = vmatpush.msra.mxu0 %v1351
    %1390 = vmatpush.msra.mxu0 %v1349
    %1391 = vmatpush.msra.mxu0 %v1347
    %1392 = vmatmul.f32.gmra.mxu0 %v1371
    %v1393 = vpop.f32.mrf.mxu0
    %v1394 = vadd.f32 %v1366, %v1393
    %1395 = vmatmul.f32.gmra.mxu0 %v1374
    %v1396 = vpop.f32.mrf.mxu0
    %v1397 = vadd.f32 %v1366, %v1396
    %1398 = vdwg.mxu0
    %1399 = vmatpush.msra.mxu0 0.0
    %1400 = vmatpush.msra.mxu0 0.0
    %1401 = vmatpush.msra.mxu0 0.0
    %1402 = vmatpush.msra.mxu0 0.0
    %1403 = vmatpush.msra.mxu0 0.0
    %1404 = vmatpush.msra.mxu0 0.0
    %1405 = vmatpush.msra.mxu0 0.0
    %1406 = vmatpush.msra.mxu0 0.0
    %1407 = vmatpush.msra.mxu0 %v1362
    %1408 = vmatpush.msra.mxu0 %v1360
    %1409 = vmatpush.msra.mxu0 %v1358
    %1410 = vmatpush.msra.mxu0 %v1356
    %1411 = vmatpush.msra.mxu0 %v1354
    %1412 = vmatpush.msra.mxu0 %v1352
    %1413 = vmatpush.msra.mxu0 %v1350
    %1414 = vmatpush.msra.mxu0 %v1348
    %1415 = vmatmul.f32.gmra.mxu0 %v1371
    %v1416 = vpop.f32.mrf.mxu0
    %v1417 = vadd.f32 %v1367, %v1416
    %1418 = vmatmul.f32.gmra.mxu0 %v1374
    %v1419 = vpop.f32.mrf.mxu0
    %v1420 = vadd.f32 %v1367, %v1419
    %1421 = vdwg.mxu0
    %s1422 = scalar_lea.vmem %s4, 4
    %v1423 = vld [vmem:[%s1422] sm:$0x3]
    %s1424 = scalar_lea.vmem %s4, 6
    %v1425 = vld [vmem:[%s1424] sm:$0x3]
    %s1426 = scalar_lea.vmem %s5, 4
    %v1427 = vld [vmem:[%s1426] sm:$0x3]
    %s1428 = scalar_lea.vmem %s5, 6
    %v1429 = vld [vmem:[%s1428] sm:$0x3]
    %1431 = vrot.lane.b32.xlu0 %v1425, 32
    %v1432 = vpop.permute.xlu0 %1431
    %v1434 = vsel %vm155, %v1423, %v1432
    %s1435 = scalar_lea.vmem [#allocation6], 128
    %v1436 = vld [vmem:[%s1435] sm:$0xff]
    %v1437 = vld [vmem:[%s1435 + $0x8] sm:$0xff]
    %v1438 = vld [vmem:[%s1435 + $0x10] sm:$0xff]
    %v1439 = vld [vmem:[%s1435 + $0x18] sm:$0xff]
    %v1440 = vld [vmem:[%s1435 + $0x20] sm:$0xff]
    %v1441 = vld [vmem:[%s1435 + $0x28] sm:$0xff]
    %v1442 = vld [vmem:[%s1435 + $0x30] sm:$0xff]
    %v1443 = vld [vmem:[%s1435 + $0x38] sm:$0xff]
    %v1444 = vld [vmem:[%s1435 + $0x40] sm:$0xff]
    %v1445 = vld [vmem:[%s1435 + $0x48] sm:$0xff]
    %v1446 = vld [vmem:[%s1435 + $0x50] sm:$0xff]
    %v1447 = vld [vmem:[%s1435 + $0x58] sm:$0xff]
    %v1448 = vld [vmem:[%s1435 + $0x60] sm:$0xff]
    %v1449 = vld [vmem:[%s1435 + $0x68] sm:$0xff]
    %v1450 = vld [vmem:[%s1435 + $0x70] sm:$0xff]
    %v1451 = vld [vmem:[%s1435 + $0x78] sm:$0xff]
    %v1453 = vsel %vm92, %v1434, 0
    %1455 = vmatpush.msra.mxu0 0.0
    %1456 = vmatpush.msra.mxu0 0.0
    %1457 = vmatpush.msra.mxu0 0.0
    %1458 = vmatpush.msra.mxu0 0.0
    %1459 = vmatpush.msra.mxu0 0.0
    %1460 = vmatpush.msra.mxu0 0.0
    %1461 = vmatpush.msra.mxu0 0.0
    %1462 = vmatpush.msra.mxu0 0.0
    %1463 = vmatpush.msra.mxu0 %v1450
    %1464 = vmatpush.msra.mxu0 %v1448
    %1465 = vmatpush.msra.mxu0 %v1446
    %1466 = vmatpush.msra.mxu0 %v1444
    %1467 = vmatpush.msra.mxu0 %v1442
    %1468 = vmatpush.msra.mxu0 %v1440
    %1469 = vmatpush.msra.mxu0 %v1438
    %1470 = vmatpush.msra.mxu0 %v1436
    %1471 = vmatmul.f32.gmra.mxu0 %v1453
    %v1472 = vpop.f32.mrf.mxu0
    %v1473 = vadd.f32 0.0, %v1472
    %1474 = vdwg.mxu0
    %1475 = vmatpush.msra.mxu0 0.0
    %1476 = vmatpush.msra.mxu0 0.0
    %1477 = vmatpush.msra.mxu0 0.0
    %1478 = vmatpush.msra.mxu0 0.0
    %1479 = vmatpush.msra.mxu0 0.0
    %1480 = vmatpush.msra.mxu0 0.0
    %1481 = vmatpush.msra.mxu0 0.0
    %1482 = vmatpush.msra.mxu0 0.0
    %1483 = vmatpush.msra.mxu0 %v1451
    %1484 = vmatpush.msra.mxu0 %v1449
    %1485 = vmatpush.msra.mxu0 %v1447
    %1486 = vmatpush.msra.mxu0 %v1445
    %1487 = vmatpush.msra.mxu0 %v1443
    %1488 = vmatpush.msra.mxu0 %v1441
    %1489 = vmatpush.msra.mxu0 %v1439
    %1490 = vmatpush.msra.mxu0 %v1437
    %1491 = vmatmul.f32.gmra.mxu0 %v1453
    %v1492 = vpop.f32.mrf.mxu0
    %v1493 = vadd.f32 0.0, %v1492
    %1494 = vdwg.mxu0
    %v1495 = vadd.f32 %v1394, %v1473
    %v1497 = vrot.slane %v1493, 2
    %v1499 = vadd.f32 %v1420, %v1497
    %v1500 = vsub.f32 0.0, %v1495
    %v1501 = vmul.f32 %v1500, 1.442695
    %v1502 = vpow.pop %v1501
    %v1503 = vadd.f32 %v1502, 1.0
    %v1504 = vrcp.pop %v1503
    %v1505 = vmul.f32 %v1503, %v1504
    %v1506 = vsub.f32 1.0, %v1505
    %v1507 = vmul.f32 %v1504, %v1506
    %v1508 = vadd.f32 %v1504, %v1507
    %vm1509 = vweird.f32 %v1503
    %vm1510 = vweird.f32 %v1504
    %vm1511 = vmor %vm1509, %vm1510
    %v1512 = vsel %vm1511, %v1504, %v1508
    %v1513 = vand.u32 2147483647, %v1503
    %vm1514 = vcmp.eq.f32.partialorder %v1513, 8.507059e+37
    %v1515 = vand.u32 %v1503, 2147483648
    %v1516 = vor.u32 1.1754944e-38, %v1515
    %v1517 = vsel %vm1514, %v1516, %v1512
    %v1518 = vmul.f32 1.0, %v1517
    %v1519 = vtanh.pop %v1495
    %1521 = vrot.lane.b32.xlu0 %v1427, 32
    %v1522 = vpop.permute.xlu0 %1521
    %v1524 = vmul.f32 %v1518, %v1522
    %1526 = vrot.lane.b32.xlu0 %v1519, 64
    %v1527 = vpop.permute.xlu0 %1526
    %v1529 = vmul.f32 %v1518, %v1527
    %1531 = vrot.lane.b32.xlu0 %v1529, 32
    %v1532 = vpop.permute.xlu0 %1531
    %v1534 = vadd.f32 %v1524, %v1532
    %v1535 = vtanh.pop %v1534
    %1537 = vrot.lane.b32.xlu0 %v1535, 64
    %v1538 = vpop.permute.xlu0 %1537
    %v1540 = vmul.f32 %v1518, %v1538
    %v1541 = vsub.f32 0.0, %v1499
    %v1542 = vmul.f32 %v1541, 1.442695
    %v1543 = vpow.pop %v1542
    %v1544 = vadd.f32 %v1543, 1.0
    %v1545 = vrcp.pop %v1544
    %v1546 = vmul.f32 %v1544, %v1545
    %v1547 = vsub.f32 1.0, %v1546
    %v1548 = vmul.f32 %v1545, %v1547
    %v1549 = vadd.f32 %v1545, %v1548
    %vm1550 = vweird.f32 %v1544
    %vm1551 = vweird.f32 %v1545
    %vm1552 = vmor %vm1550, %vm1551
    %v1553 = vsel %vm1552, %v1545, %v1549
    %v1554 = vand.u32 2147483647, %v1544
    %vm1555 = vcmp.eq.f32.partialorder %v1554, 8.507059e+37
    %v1556 = vand.u32 %v1544, 2147483648
    %v1557 = vor.u32 1.1754944e-38, %v1556
    %v1558 = vsel %vm1555, %v1557, %v1553
    %v1559 = vmul.f32 1.0, %v1558
    %v1560 = vtanh.pop %v1499
    %v1562 = vrot.slane %v1429, 2
    %1563 = vrot.lane.b32.xlu0 %v1562, 32
    %v1564 = vpop.permute.xlu0 %1563
    %v1566 = vmul.f32 %v1559, %v1564
    %1568 = vrot.lane.b32.xlu0 %v1560, 64
    %v1569 = vpop.permute.xlu0 %1568
    %v1571 = vmul.f32 %v1559, %v1569
    %1573 = vrot.lane.b32.xlu0 %v1571, 32
    %v1574 = vpop.permute.xlu0 %1573
    %v1576 = vadd.f32 %v1566, %v1574
    %v1577 = vtanh.pop %v1576
    %1579 = vrot.lane.b32.xlu0 %v1577, 64
    %v1580 = vpop.permute.xlu0 %1579
    %v1582 = vmul.f32 %v1559, %v1580
    %1584 = vrot.lane.b32.xlu0 %v1540, 32
    %v1585 = vpop.permute.xlu0 %1584
    %v1588 = vrot.slane %v1582, 6
    %1589 = vrot.lane.b32.xlu0 %v1588, 64
    %v1590 = vpop.permute.xlu0 %1589
    %v1592 = vsel %vm155, %v1585, %v1590
    %v1594 = vsel %vm92, %v1592, 0
    %1596 = vmatpush.msra.mxu0 0.0
    %1597 = vmatpush.msra.mxu0 0.0
    %1598 = vmatpush.msra.mxu0 0.0
    %1599 = vmatpush.msra.mxu0 0.0
    %1600 = vmatpush.msra.mxu0 0.0
    %1601 = vmatpush.msra.mxu0 0.0
    %1602 = vmatpush.msra.mxu0 0.0
    %1603 = vmatpush.msra.mxu0 0.0
    %1604 = vmatpush.msra.mxu0 %v1450
    %1605 = vmatpush.msra.mxu0 %v1448
    %1606 = vmatpush.msra.mxu0 %v1446
    %1607 = vmatpush.msra.mxu0 %v1444
    %1608 = vmatpush.msra.mxu0 %v1442
    %1609 = vmatpush.msra.mxu0 %v1440
    %1610 = vmatpush.msra.mxu0 %v1438
    %1611 = vmatpush.msra.mxu0 %v1436
    %1612 = vmatmul.f32.gmra.mxu0 %v1594
    %v1613 = vpop.f32.mrf.mxu0
    %v1614 = vadd.f32 0.0, %v1613
    %1615 = vdwg.mxu0
    %1616 = vmatpush.msra.mxu0 0.0
    %1617 = vmatpush.msra.mxu0 0.0
    %1618 = vmatpush.msra.mxu0 0.0
    %1619 = vmatpush.msra.mxu0 0.0
    %1620 = vmatpush.msra.mxu0 0.0
    %1621 = vmatpush.msra.mxu0 0.0
    %1622 = vmatpush.msra.mxu0 0.0
    %1623 = vmatpush.msra.mxu0 0.0
    %1624 = vmatpush.msra.mxu0 %v1451
    %1625 = vmatpush.msra.mxu0 %v1449
    %1626 = vmatpush.msra.mxu0 %v1447
    %1627 = vmatpush.msra.mxu0 %v1445
    %1628 = vmatpush.msra.mxu0 %v1443
    %1629 = vmatpush.msra.mxu0 %v1441
    %1630 = vmatpush.msra.mxu0 %v1439
    %1631 = vmatpush.msra.mxu0 %v1437
    %1632 = vmatmul.f32.gmra.mxu0 %v1594
    %v1633 = vpop.f32.mrf.mxu0
    %v1634 = vadd.f32 0.0, %v1633
    %1635 = vdwg.mxu0
    %v1637 = vrot.slane %v1614, 6
    %v1639 = vadd.f32 %v1394, %v1637
    %v1641 = vrot.slane %v1634, 4
    %v1643 = vadd.f32 %v1420, %v1641
    %v1644 = vsub.f32 0.0, %v1639
    %v1645 = vmul.f32 %v1644, 1.442695
    %v1646 = vpow.pop %v1645
    %v1647 = vadd.f32 %v1646, 1.0
    %v1648 = vrcp.pop %v1647
    %v1649 = vmul.f32 %v1647, %v1648
    %v1650 = vsub.f32 1.0, %v1649
    %v1651 = vmul.f32 %v1648, %v1650
    %v1652 = vadd.f32 %v1648, %v1651
    %vm1653 = vweird.f32 %v1647
    %vm1654 = vweird.f32 %v1648
    %vm1655 = vmor %vm1653, %vm1654
    %v1656 = vsel %vm1655, %v1648, %v1652
    %v1657 = vand.u32 2147483647, %v1647
    %vm1658 = vcmp.eq.f32.partialorder %v1657, 8.507059e+37
    %v1659 = vand.u32 %v1647, 2147483648
    %v1660 = vor.u32 1.1754944e-38, %v1659
    %v1661 = vsel %vm1658, %v1660, %v1656
    %v1662 = vmul.f32 1.0, %v1661
    %v1663 = vtanh.pop %v1639
    %v1665 = vrot.slane %v1534, 6
    %v1667 = vmul.f32 %v1662, %v1665
    %1669 = vrot.lane.b32.xlu0 %v1663, 64
    %v1670 = vpop.permute.xlu0 %1669
    %v1672 = vmul.f32 %v1662, %v1670
    %1674 = vrot.lane.b32.xlu0 %v1672, 32
    %v1675 = vpop.permute.xlu0 %1674
    %v1677 = vadd.f32 %v1667, %v1675
    %v1678 = vtanh.pop %v1677
    %1680 = vrot.lane.b32.xlu0 %v1678, 64
    %v1681 = vpop.permute.xlu0 %1680
    %v1683 = vmul.f32 %v1662, %v1681
    %v1684 = vsub.f32 0.0, %v1643
    %v1685 = vmul.f32 %v1684, 1.442695
    %v1686 = vpow.pop %v1685
    %v1687 = vadd.f32 %v1686, 1.0
    %v1688 = vrcp.pop %v1687
    %v1689 = vmul.f32 %v1687, %v1688
    %v1690 = vsub.f32 1.0, %v1689
    %v1691 = vmul.f32 %v1688, %v1690
    %v1692 = vadd.f32 %v1688, %v1691
    %vm1693 = vweird.f32 %v1687
    %vm1694 = vweird.f32 %v1688
    %vm1695 = vmor %vm1693, %vm1694
    %v1696 = vsel %vm1695, %v1688, %v1692
    %v1697 = vand.u32 2147483647, %v1687
    %vm1698 = vcmp.eq.f32.partialorder %v1697, 8.507059e+37
    %v1699 = vand.u32 %v1687, 2147483648
    %v1700 = vor.u32 1.1754944e-38, %v1699
    %v1701 = vsel %vm1698, %v1700, %v1696
    %v1702 = vmul.f32 1.0, %v1701
    %v1703 = vtanh.pop %v1643
    %v1705 = vrot.slane %v1576, 2
    %v1707 = vmul.f32 %v1702, %v1705
    %1709 = vrot.lane.b32.xlu0 %v1703, 64
    %v1710 = vpop.permute.xlu0 %1709
    %v1712 = vmul.f32 %v1702, %v1710
    %1714 = vrot.lane.b32.xlu0 %v1712, 32
    %v1715 = vpop.permute.xlu0 %1714
    %v1717 = vadd.f32 %v1707, %v1715
    %v1718 = vtanh.pop %v1717
    %1720 = vrot.lane.b32.xlu0 %v1718, 64
    %v1721 = vpop.permute.xlu0 %1720
    %v1723 = vmul.f32 %v1702, %v1721
    %1725 = vrot.lane.b32.xlu0 %v1683, 32
    %v1726 = vpop.permute.xlu0 %1725
    %v1729 = vrot.slane %v1723, 2
    %1730 = vrot.lane.b32.xlu0 %v1729, 64
    %v1731 = vpop.permute.xlu0 %1730
    %v1733 = vsel %vm155, %v1726, %v1731
    %v1735 = vrot.slane %v1733, 2
    %v1736 = vsel %vm92, %v1735, 0
    %1738 = vmatpush.msra.mxu0 0.0
    %1739 = vmatpush.msra.mxu0 0.0
    %1740 = vmatpush.msra.mxu0 0.0
    %1741 = vmatpush.msra.mxu0 0.0
    %1742 = vmatpush.msra.mxu0 0.0
    %1743 = vmatpush.msra.mxu0 0.0
    %1744 = vmatpush.msra.mxu0 0.0
    %1745 = vmatpush.msra.mxu0 0.0
    %1746 = vmatpush.msra.mxu0 %v1450
    %1747 = vmatpush.msra.mxu0 %v1448
    %1748 = vmatpush.msra.mxu0 %v1446
    %1749 = vmatpush.msra.mxu0 %v1444
    %1750 = vmatpush.msra.mxu0 %v1442
    %1751 = vmatpush.msra.mxu0 %v1440
    %1752 = vmatpush.msra.mxu0 %v1438
    %1753 = vmatpush.msra.mxu0 %v1436
    %1754 = vmatmul.f32.gmra.mxu0 %v1736
    %v1755 = vpop.f32.mrf.mxu0
    %v1756 = vadd.f32 0.0, %v1755
    %1757 = vdwg.mxu0
    %1758 = vmatpush.msra.mxu0 0.0
    %1759 = vmatpush.msra.mxu0 0.0
    %1760 = vmatpush.msra.mxu0 0.0
    %1761 = vmatpush.msra.mxu0 0.0
    %1762 = vmatpush.msra.mxu0 0.0
    %1763 = vmatpush.msra.mxu0 0.0
    %1764 = vmatpush.msra.mxu0 0.0
    %1765 = vmatpush.msra.mxu0 0.0
    %1766 = vmatpush.msra.mxu0 %v1451
    %1767 = vmatpush.msra.mxu0 %v1449
    %1768 = vmatpush.msra.mxu0 %v1447
    %1769 = vmatpush.msra.mxu0 %v1445
    %1770 = vmatpush.msra.mxu0 %v1443
    %1771 = vmatpush.msra.mxu0 %v1441
    %1772 = vmatpush.msra.mxu0 %v1439
    %1773 = vmatpush.msra.mxu0 %v1437
    %1774 = vmatmul.f32.gmra.mxu0 %v1736
    %v1775 = vpop.f32.mrf.mxu0
    %v1776 = vadd.f32 0.0, %v1775
    %1777 = vdwg.mxu0
    %v1779 = vrot.slane %v1756, 4
    %v1781 = vadd.f32 %v1394, %v1779
    %v1783 = vrot.slane %v1776, 6
    %v1785 = vadd.f32 %v1420, %v1783
    %v1786 = vsub.f32 0.0, %v1781
    %v1787 = vmul.f32 %v1786, 1.442695
    %v1788 = vpow.pop %v1787
    %v1789 = vadd.f32 %v1788, 1.0
    %v1790 = vrcp.pop %v1789
    %v1791 = vmul.f32 %v1789, %v1790
    %v1792 = vsub.f32 1.0, %v1791
    %v1793 = vmul.f32 %v1790, %v1792
    %v1794 = vadd.f32 %v1790, %v1793
    %vm1795 = vweird.f32 %v1789
    %vm1796 = vweird.f32 %v1790
    %vm1797 = vmor %vm1795, %vm1796
    %v1798 = vsel %vm1797, %v1790, %v1794
    %v1799 = vand.u32 2147483647, %v1789
    %vm1800 = vcmp.eq.f32.partialorder %v1799, 8.507059e+37
    %v1801 = vand.u32 %v1789, 2147483648
    %v1802 = vor.u32 1.1754944e-38, %v1801
    %v1803 = vsel %vm1800, %v1802, %v1798
    %v1804 = vmul.f32 1.0, %v1803
    %v1805 = vtanh.pop %v1781
    %v1807 = vrot.slane %v1677, 6
    %v1809 = vmul.f32 %v1804, %v1807
    %1811 = vrot.lane.b32.xlu0 %v1805, 64
    %v1812 = vpop.permute.xlu0 %1811
    %v1814 = vmul.f32 %v1804, %v1812
    %1816 = vrot.lane.b32.xlu0 %v1814, 32
    %v1817 = vpop.permute.xlu0 %1816
    %v1819 = vadd.f32 %v1809, %v1817
    %v1820 = vtanh.pop %v1819
    %1822 = vrot.lane.b32.xlu0 %v1820, 64
    %v1823 = vpop.permute.xlu0 %1822
    %v1825 = vmul.f32 %v1804, %v1823
    %v1826 = vsub.f32 0.0, %v1785
    %v1827 = vmul.f32 %v1826, 1.442695
    %v1828 = vpow.pop %v1827
    %v1829 = vadd.f32 %v1828, 1.0
    %v1830 = vrcp.pop %v1829
    %v1831 = vmul.f32 %v1829, %v1830
    %v1832 = vsub.f32 1.0, %v1831
    %v1833 = vmul.f32 %v1830, %v1832
    %v1834 = vadd.f32 %v1830, %v1833
    %vm1835 = vweird.f32 %v1829
    %vm1836 = vweird.f32 %v1830
    %vm1837 = vmor %vm1835, %vm1836
    %v1838 = vsel %vm1837, %v1830, %v1834
    %v1839 = vand.u32 2147483647, %v1829
    %vm1840 = vcmp.eq.f32.partialorder %v1839, 8.507059e+37
    %v1841 = vand.u32 %v1829, 2147483648
    %v1842 = vor.u32 1.1754944e-38, %v1841
    %v1843 = vsel %vm1840, %v1842, %v1838
    %v1844 = vmul.f32 1.0, %v1843
    %v1845 = vtanh.pop %v1785
    %v1847 = vrot.slane %v1717, 2
    %v1849 = vmul.f32 %v1844, %v1847
    %1851 = vrot.lane.b32.xlu0 %v1845, 64
    %v1852 = vpop.permute.xlu0 %1851
    %v1854 = vmul.f32 %v1844, %v1852
    %1856 = vrot.lane.b32.xlu0 %v1854, 32
    %v1857 = vpop.permute.xlu0 %1856
    %v1859 = vadd.f32 %v1849, %v1857
    %v1860 = vtanh.pop %v1859
    %1862 = vrot.lane.b32.xlu0 %v1860, 64
    %v1863 = vpop.permute.xlu0 %1862
    %v1865 = vmul.f32 %v1844, %v1863
    %1867 = vrot.lane.b32.xlu0 %v1825, 32
    %v1868 = vpop.permute.xlu0 %1867
    %v1871 = vrot.slane %v1865, 6
    %1872 = vrot.lane.b32.xlu0 %v1871, 64
    %v1873 = vpop.permute.xlu0 %1872
    %v1875 = vsel %vm155, %v1868, %v1873
    %v1877 = vrot.slane %v1875, 4
    %v1878 = vsel %vm92, %v1877, 0
    %1880 = vmatpush.msra.mxu0 0.0
    %1881 = vmatpush.msra.mxu0 0.0
    %1882 = vmatpush.msra.mxu0 0.0
    %1883 = vmatpush.msra.mxu0 0.0
    %1884 = vmatpush.msra.mxu0 0.0
    %1885 = vmatpush.msra.mxu0 0.0
    %1886 = vmatpush.msra.mxu0 0.0
    %1887 = vmatpush.msra.mxu0 0.0
    %1888 = vmatpush.msra.mxu0 %v1450
    %1889 = vmatpush.msra.mxu0 %v1448
    %1890 = vmatpush.msra.mxu0 %v1446
    %1891 = vmatpush.msra.mxu0 %v1444
    %1892 = vmatpush.msra.mxu0 %v1442
    %1893 = vmatpush.msra.mxu0 %v1440
    %1894 = vmatpush.msra.mxu0 %v1438
    %1895 = vmatpush.msra.mxu0 %v1436
    %1896 = vmatmul.f32.gmra.mxu0 %v1878
    %v1897 = vpop.f32.mrf.mxu0
    %v1898 = vadd.f32 0.0, %v1897
    %1899 = vdwg.mxu0
    %1900 = vmatpush.msra.mxu0 0.0
    %1901 = vmatpush.msra.mxu0 0.0
    %1902 = vmatpush.msra.mxu0 0.0
    %1903 = vmatpush.msra.mxu0 0.0
    %1904 = vmatpush.msra.mxu0 0.0
    %1905 = vmatpush.msra.mxu0 0.0
    %1906 = vmatpush.msra.mxu0 0.0
    %1907 = vmatpush.msra.mxu0 0.0
    %1908 = vmatpush.msra.mxu0 %v1451
    %1909 = vmatpush.msra.mxu0 %v1449
    %1910 = vmatpush.msra.mxu0 %v1447
    %1911 = vmatpush.msra.mxu0 %v1445
    %1912 = vmatpush.msra.mxu0 %v1443
    %1913 = vmatpush.msra.mxu0 %v1441
    %1914 = vmatpush.msra.mxu0 %v1439
    %1915 = vmatpush.msra.mxu0 %v1437
    %1916 = vmatmul.f32.gmra.mxu0 %v1878
    %v1917 = vpop.f32.mrf.mxu0
    %v1918 = vadd.f32 0.0, %v1917
    %1919 = vdwg.mxu0
    %v1921 = vrot.slane %v1898, 2
    %v1923 = vadd.f32 %v1394, %v1921
    %v1924 = vadd.f32 %v1420, %v1918
    %v1925 = vsub.f32 0.0, %v1923
    %v1926 = vmul.f32 %v1925, 1.442695
    %v1927 = vpow.pop %v1926
    %v1928 = vadd.f32 %v1927, 1.0
    %v1929 = vrcp.pop %v1928
    %v1930 = vmul.f32 %v1928, %v1929
    %v1931 = vsub.f32 1.0, %v1930
    %v1932 = vmul.f32 %v1929, %v1931
    %v1933 = vadd.f32 %v1929, %v1932
    %vm1934 = vweird.f32 %v1928
    %vm1935 = vweird.f32 %v1929
    %vm1936 = vmor %vm1934, %vm1935
    %v1937 = vsel %vm1936, %v1929, %v1933
    %v1938 = vand.u32 2147483647, %v1928
    %vm1939 = vcmp.eq.f32.partialorder %v1938, 8.507059e+37
    %v1940 = vand.u32 %v1928, 2147483648
    %v1941 = vor.u32 1.1754944e-38, %v1940
    %v1942 = vsel %vm1939, %v1941, %v1937
    %v1943 = vmul.f32 1.0, %v1942
    %v1944 = vtanh.pop %v1923
    %v1946 = vrot.slane %v1819, 6
    %v1948 = vmul.f32 %v1943, %v1946
    %1950 = vrot.lane.b32.xlu0 %v1944, 64
    %v1951 = vpop.permute.xlu0 %1950
    %v1953 = vmul.f32 %v1943, %v1951
    %1955 = vrot.lane.b32.xlu0 %v1953, 32
    %v1956 = vpop.permute.xlu0 %1955
    %v1958 = vadd.f32 %v1948, %v1956
    %v1959 = vtanh.pop %v1958
    %1961 = vrot.lane.b32.xlu0 %v1959, 64
    %v1962 = vpop.permute.xlu0 %1961
    %v1964 = vmul.f32 %v1943, %v1962
    %v1965 = vsub.f32 0.0, %v1924
    %v1966 = vmul.f32 %v1965, 1.442695
    %v1967 = vpow.pop %v1966
    %v1968 = vadd.f32 %v1967, 1.0
    %v1969 = vrcp.pop %v1968
    %v1970 = vmul.f32 %v1968, %v1969
    %v1971 = vsub.f32 1.0, %v1970
    %v1972 = vmul.f32 %v1969, %v1971
    %v1973 = vadd.f32 %v1969, %v1972
    %vm1974 = vweird.f32 %v1968
    %vm1975 = vweird.f32 %v1969
    %vm1976 = vmor %vm1974, %vm1975
    %v1977 = vsel %vm1976, %v1969, %v1973
    %v1978 = vand.u32 2147483647, %v1968
    %vm1979 = vcmp.eq.f32.partialorder %v1978, 8.507059e+37
    %v1980 = vand.u32 %v1968, 2147483648
    %v1981 = vor.u32 1.1754944e-38, %v1980
    %v1982 = vsel %vm1979, %v1981, %v1977
    %v1983 = vmul.f32 1.0, %v1982
    %v1984 = vtanh.pop %v1924
    %v1986 = vrot.slane %v1859, 2
    %v1988 = vmul.f32 %v1983, %v1986
    %1990 = vrot.lane.b32.xlu0 %v1984, 64
    %v1991 = vpop.permute.xlu0 %1990
    %v1993 = vmul.f32 %v1983, %v1991
    %1995 = vrot.lane.b32.xlu0 %v1993, 32
    %v1996 = vpop.permute.xlu0 %1995
    %v1998 = vadd.f32 %v1988, %v1996
    %v1999 = vtanh.pop %v1998
    %2001 = vrot.lane.b32.xlu0 %v1999, 64
    %v2002 = vpop.permute.xlu0 %2001
    %v2004 = vmul.f32 %v1983, %v2002
    %2006 = vrot.lane.b32.xlu0 %v1964, 32
    %v2007 = vpop.permute.xlu0 %2006
    %v2010 = vrot.slane %v2004, 2
    %2011 = vrot.lane.b32.xlu0 %v2010, 64
    %v2012 = vpop.permute.xlu0 %2011
    %v2014 = vsel %vm155, %v2007, %v2012
    %v2016 = vrot.slane %v2014, 6
    %v2017 = vsel %vm92, %v2016, 0
    %2019 = vmatpush.msra.mxu0 0.0
    %2020 = vmatpush.msra.mxu0 0.0
    %2021 = vmatpush.msra.mxu0 0.0
    %2022 = vmatpush.msra.mxu0 0.0
    %2023 = vmatpush.msra.mxu0 0.0
    %2024 = vmatpush.msra.mxu0 0.0
    %2025 = vmatpush.msra.mxu0 0.0
    %2026 = vmatpush.msra.mxu0 0.0
    %2027 = vmatpush.msra.mxu0 %v1450
    %2028 = vmatpush.msra.mxu0 %v1448
    %2029 = vmatpush.msra.mxu0 %v1446
    %2030 = vmatpush.msra.mxu0 %v1444
    %2031 = vmatpush.msra.mxu0 %v1442
    %2032 = vmatpush.msra.mxu0 %v1440
    %2033 = vmatpush.msra.mxu0 %v1438
    %2034 = vmatpush.msra.mxu0 %v1436
    %2035 = vmatmul.f32.gmra.mxu0 %v2017
    %v2036 = vpop.f32.mrf.mxu0
    %v2037 = vadd.f32 0.0, %v2036
    %2038 = vdwg.mxu0
    %2039 = vmatpush.msra.mxu0 0.0
    %2040 = vmatpush.msra.mxu0 0.0
    %2041 = vmatpush.msra.mxu0 0.0
    %2042 = vmatpush.msra.mxu0 0.0
    %2043 = vmatpush.msra.mxu0 0.0
    %2044 = vmatpush.msra.mxu0 0.0
    %2045 = vmatpush.msra.mxu0 0.0
    %2046 = vmatpush.msra.mxu0 0.0
    %2047 = vmatpush.msra.mxu0 %v1451
    %2048 = vmatpush.msra.mxu0 %v1449
    %2049 = vmatpush.msra.mxu0 %v1447
    %2050 = vmatpush.msra.mxu0 %v1445
    %2051 = vmatpush.msra.mxu0 %v1443
    %2052 = vmatpush.msra.mxu0 %v1441
    %2053 = vmatpush.msra.mxu0 %v1439
    %2054 = vmatpush.msra.mxu0 %v1437
    %2055 = vmatmul.f32.gmra.mxu0 %v2017
    %v2056 = vpop.f32.mrf.mxu0
    %v2057 = vadd.f32 0.0, %v2056
    %2058 = vdwg.mxu0
    %v2059 = vadd.f32 %v1397, %v2037
    %v2061 = vrot.slane %v2057, 2
    %v2063 = vadd.f32 %v1417, %v2061
    %v2064 = vsub.f32 0.0, %v2059
    %v2065 = vmul.f32 %v2064, 1.442695
    %v2066 = vpow.pop %v2065
    %v2067 = vadd.f32 %v2066, 1.0
    %v2068 = vrcp.pop %v2067
    %v2069 = vmul.f32 %v2067, %v2068
    %v2070 = vsub.f32 1.0, %v2069
    %v2071 = vmul.f32 %v2068, %v2070
    %v2072 = vadd.f32 %v2068, %v2071
    %vm2073 = vweird.f32 %v2067
    %vm2074 = vweird.f32 %v2068
    %vm2075 = vmor %vm2073, %vm2074
    %v2076 = vsel %vm2075, %v2068, %v2072
    %v2077 = vand.u32 2147483647, %v2067
    %vm2078 = vcmp.eq.f32.partialorder %v2077, 8.507059e+37
    %v2079 = vand.u32 %v2067, 2147483648
    %v2080 = vor.u32 1.1754944e-38, %v2079
    %v2081 = vsel %vm2078, %v2080, %v2076
    %v2082 = vmul.f32 1.0, %v2081
    %v2083 = vtanh.pop %v2059
    %v2085 = vrot.slane %v1958, 6
    %v2087 = vmul.f32 %v2082, %v2085
    %2089 = vrot.lane.b32.xlu0 %v2083, 64
    %v2090 = vpop.permute.xlu0 %2089
    %v2092 = vmul.f32 %v2082, %v2090
    %2094 = vrot.lane.b32.xlu0 %v2092, 32
    %v2095 = vpop.permute.xlu0 %2094
    %v2097 = vadd.f32 %v2087, %v2095
    %v2098 = vtanh.pop %v2097
    %2100 = vrot.lane.b32.xlu0 %v2098, 64
    %v2101 = vpop.permute.xlu0 %2100
    %v2103 = vmul.f32 %v2082, %v2101
    %v2104 = vsub.f32 0.0, %v2063
    %v2105 = vmul.f32 %v2104, 1.442695
    %v2106 = vpow.pop %v2105
    %v2107 = vadd.f32 %v2106, 1.0
    %v2108 = vrcp.pop %v2107
    %v2109 = vmul.f32 %v2107, %v2108
    %v2110 = vsub.f32 1.0, %v2109
    %v2111 = vmul.f32 %v2108, %v2110
    %v2112 = vadd.f32 %v2108, %v2111
    %vm2113 = vweird.f32 %v2107
    %vm2114 = vweird.f32 %v2108
    %vm2115 = vmor %vm2113, %vm2114
    %v2116 = vsel %vm2115, %v2108, %v2112
    %v2117 = vand.u32 2147483647, %v2107
    %vm2118 = vcmp.eq.f32.partialorder %v2117, 8.507059e+37
    %v2119 = vand.u32 %v2107, 2147483648
    %v2120 = vor.u32 1.1754944e-38, %v2119
    %v2121 = vsel %vm2118, %v2120, %v2116
    %v2122 = vmul.f32 1.0, %v2121
    %v2123 = vtanh.pop %v2063
    %v2125 = vrot.slane %v1998, 2
    %v2127 = vmul.f32 %v2122, %v2125
    %2129 = vrot.lane.b32.xlu0 %v2123, 64
    %v2130 = vpop.permute.xlu0 %2129
    %v2132 = vmul.f32 %v2122, %v2130
    %2134 = vrot.lane.b32.xlu0 %v2132, 32
    %v2135 = vpop.permute.xlu0 %2134
    %v2137 = vadd.f32 %v2127, %v2135
    %v2138 = vtanh.pop %v2137
    %2140 = vrot.lane.b32.xlu0 %v2138, 64
    %v2141 = vpop.permute.xlu0 %2140
    %v2143 = vmul.f32 %v2122, %v2141
    %2145 = vrot.lane.b32.xlu0 %v2103, 32
    %v2146 = vpop.permute.xlu0 %2145
    %v2149 = vrot.slane %v2143, 6
    %2150 = vrot.lane.b32.xlu0 %v2149, 64
    %v2151 = vpop.permute.xlu0 %2150
    %v2153 = vsel %vm155, %v2146, %v2151
    %v2155 = vsel %vm92, %v2153, 0
    %2157 = vmatpush.msra.mxu0 0.0
    %2158 = vmatpush.msra.mxu0 0.0
    %2159 = vmatpush.msra.mxu0 0.0
    %2160 = vmatpush.msra.mxu0 0.0
    %2161 = vmatpush.msra.mxu0 0.0
    %2162 = vmatpush.msra.mxu0 0.0
    %2163 = vmatpush.msra.mxu0 0.0
    %2164 = vmatpush.msra.mxu0 0.0
    %2165 = vmatpush.msra.mxu0 %v1450
    %2166 = vmatpush.msra.mxu0 %v1448
    %2167 = vmatpush.msra.mxu0 %v1446
    %2168 = vmatpush.msra.mxu0 %v1444
    %2169 = vmatpush.msra.mxu0 %v1442
    %2170 = vmatpush.msra.mxu0 %v1440
    %2171 = vmatpush.msra.mxu0 %v1438
    %2172 = vmatpush.msra.mxu0 %v1436
    %2173 = vmatmul.f32.gmra.mxu0 %v2155
    %v2174 = vpop.f32.mrf.mxu0
    %v2175 = vadd.f32 0.0, %v2174
    %2176 = vdwg.mxu0
    %2177 = vmatpush.msra.mxu0 0.0
    %2178 = vmatpush.msra.mxu0 0.0
    %2179 = vmatpush.msra.mxu0 0.0
    %2180 = vmatpush.msra.mxu0 0.0
    %2181 = vmatpush.msra.mxu0 0.0
    %2182 = vmatpush.msra.mxu0 0.0
    %2183 = vmatpush.msra.mxu0 0.0
    %2184 = vmatpush.msra.mxu0 0.0
    %2185 = vmatpush.msra.mxu0 %v1451
    %2186 = vmatpush.msra.mxu0 %v1449
    %2187 = vmatpush.msra.mxu0 %v1447
    %2188 = vmatpush.msra.mxu0 %v1445
    %2189 = vmatpush.msra.mxu0 %v1443
    %2190 = vmatpush.msra.mxu0 %v1441
    %2191 = vmatpush.msra.mxu0 %v1439
    %2192 = vmatpush.msra.mxu0 %v1437
    %2193 = vmatmul.f32.gmra.mxu0 %v2155
    %v2194 = vpop.f32.mrf.mxu0
    %v2195 = vadd.f32 0.0, %v2194
    %2196 = vdwg.mxu0
    %v2198 = vrot.slane %v2175, 6
    %v2200 = vadd.f32 %v1397, %v2198
    %v2202 = vrot.slane %v2195, 4
    %v2204 = vadd.f32 %v1417, %v2202
    %v2205 = vsub.f32 0.0, %v2200
    %v2206 = vmul.f32 %v2205, 1.442695
    %v2207 = vpow.pop %v2206
    %v2208 = vadd.f32 %v2207, 1.0
    %v2209 = vrcp.pop %v2208
    %v2210 = vmul.f32 %v2208, %v2209
    %v2211 = vsub.f32 1.0, %v2210
    %v2212 = vmul.f32 %v2209, %v2211
    %v2213 = vadd.f32 %v2209, %v2212
    %vm2214 = vweird.f32 %v2208
    %vm2215 = vweird.f32 %v2209
    %vm2216 = vmor %vm2214, %vm2215
    %v2217 = vsel %vm2216, %v2209, %v2213
    %v2218 = vand.u32 2147483647, %v2208
    %vm2219 = vcmp.eq.f32.partialorder %v2218, 8.507059e+37
    %v2220 = vand.u32 %v2208, 2147483648
    %v2221 = vor.u32 1.1754944e-38, %v2220
    %v2222 = vsel %vm2219, %v2221, %v2217
    %v2223 = vmul.f32 1.0, %v2222
    %v2224 = vtanh.pop %v2200
    %v2226 = vrot.slane %v2097, 6
    %v2228 = vmul.f32 %v2223, %v2226
    %2230 = vrot.lane.b32.xlu0 %v2224, 64
    %v2231 = vpop.permute.xlu0 %2230
    %v2233 = vmul.f32 %v2223, %v2231
    %2235 = vrot.lane.b32.xlu0 %v2233, 32
    %v2236 = vpop.permute.xlu0 %2235
    %v2238 = vadd.f32 %v2228, %v2236
    %v2239 = vtanh.pop %v2238
    %2241 = vrot.lane.b32.xlu0 %v2239, 64
    %v2242 = vpop.permute.xlu0 %2241
    %v2244 = vmul.f32 %v2223, %v2242
    %v2245 = vsub.f32 0.0, %v2204
    %v2246 = vmul.f32 %v2245, 1.442695
    %v2247 = vpow.pop %v2246
    %v2248 = vadd.f32 %v2247, 1.0
    %v2249 = vrcp.pop %v2248
    %v2250 = vmul.f32 %v2248, %v2249
    %v2251 = vsub.f32 1.0, %v2250
    %v2252 = vmul.f32 %v2249, %v2251
    %v2253 = vadd.f32 %v2249, %v2252
    %vm2254 = vweird.f32 %v2248
    %vm2255 = vweird.f32 %v2249
    %vm2256 = vmor %vm2254, %vm2255
    %v2257 = vsel %vm2256, %v2249, %v2253
    %v2258 = vand.u32 2147483647, %v2248
    %vm2259 = vcmp.eq.f32.partialorder %v2258, 8.507059e+37
    %v2260 = vand.u32 %v2248, 2147483648
    %v2261 = vor.u32 1.1754944e-38, %v2260
    %v2262 = vsel %vm2259, %v2261, %v2257
    %v2263 = vmul.f32 1.0, %v2262
    %v2264 = vtanh.pop %v2204
    %v2266 = vrot.slane %v2137, 2
    %v2268 = vmul.f32 %v2263, %v2266
    %2270 = vrot.lane.b32.xlu0 %v2264, 64
    %v2271 = vpop.permute.xlu0 %2270
    %v2273 = vmul.f32 %v2263, %v2271
    %2275 = vrot.lane.b32.xlu0 %v2273, 32
    %v2276 = vpop.permute.xlu0 %2275
    %v2278 = vadd.f32 %v2268, %v2276
    %v2279 = vtanh.pop %v2278
    %2281 = vrot.lane.b32.xlu0 %v2279, 64
    %v2282 = vpop.permute.xlu0 %2281
    %v2284 = vmul.f32 %v2263, %v2282
    %2286 = vrot.lane.b32.xlu0 %v2244, 32
    %v2287 = vpop.permute.xlu0 %2286
    %v2290 = vrot.slane %v2284, 2
    %2291 = vrot.lane.b32.xlu0 %v2290, 64
    %v2292 = vpop.permute.xlu0 %2291
    %v2294 = vsel %vm155, %v2287, %v2292
    %v2296 = vrot.slane %v2294, 2
    %v2297 = vsel %vm92, %v2296, 0
    %2299 = vmatpush.msra.mxu0 0.0
    %2300 = vmatpush.msra.mxu0 0.0
    %2301 = vmatpush.msra.mxu0 0.0
    %2302 = vmatpush.msra.mxu0 0.0
    %2303 = vmatpush.msra.mxu0 0.0
    %2304 = vmatpush.msra.mxu0 0.0
    %2305 = vmatpush.msra.mxu0 0.0
    %2306 = vmatpush.msra.mxu0 0.0
    %2307 = vmatpush.msra.mxu0 %v1450
    %2308 = vmatpush.msra.mxu0 %v1448
    %2309 = vmatpush.msra.mxu0 %v1446
    %2310 = vmatpush.msra.mxu0 %v1444
    %2311 = vmatpush.msra.mxu0 %v1442
    %2312 = vmatpush.msra.mxu0 %v1440
    %2313 = vmatpush.msra.mxu0 %v1438
    %2314 = vmatpush.msra.mxu0 %v1436
    %2315 = vmatmul.f32.gmra.mxu0 %v2297
    %v2316 = vpop.f32.mrf.mxu0
    %v2317 = vadd.f32 0.0, %v2316
    %2318 = vdwg.mxu0
    %2319 = vmatpush.msra.mxu0 0.0
    %2320 = vmatpush.msra.mxu0 0.0
    %2321 = vmatpush.msra.mxu0 0.0
    %2322 = vmatpush.msra.mxu0 0.0
    %2323 = vmatpush.msra.mxu0 0.0
    %2324 = vmatpush.msra.mxu0 0.0
    %2325 = vmatpush.msra.mxu0 0.0
    %2326 = vmatpush.msra.mxu0 0.0
    %2327 = vmatpush.msra.mxu0 %v1451
    %2328 = vmatpush.msra.mxu0 %v1449
    %2329 = vmatpush.msra.mxu0 %v1447
    %2330 = vmatpush.msra.mxu0 %v1445
    %2331 = vmatpush.msra.mxu0 %v1443
    %2332 = vmatpush.msra.mxu0 %v1441
    %2333 = vmatpush.msra.mxu0 %v1439
    %2334 = vmatpush.msra.mxu0 %v1437
    %2335 = vmatmul.f32.gmra.mxu0 %v2297
    %v2336 = vpop.f32.mrf.mxu0
    %v2337 = vadd.f32 0.0, %v2336
    %2338 = vdwg.mxu0
    %v2340 = vrot.slane %v2317, 4
    %v2342 = vadd.f32 %v1397, %v2340
    %v2344 = vrot.slane %v2337, 6
    %v2346 = vadd.f32 %v1417, %v2344
    %v2347 = vsub.f32 0.0, %v2342
    %v2348 = vmul.f32 %v2347, 1.442695
    %v2349 = vpow.pop %v2348
    %v2350 = vadd.f32 %v2349, 1.0
    %v2351 = vrcp.pop %v2350
    %v2352 = vmul.f32 %v2350, %v2351
    %v2353 = vsub.f32 1.0, %v2352
    %v2354 = vmul.f32 %v2351, %v2353
    %v2355 = vadd.f32 %v2351, %v2354
    %vm2356 = vweird.f32 %v2350
    %vm2357 = vweird.f32 %v2351
    %vm2358 = vmor %vm2356, %vm2357
    %v2359 = vsel %vm2358, %v2351, %v2355
    %v2360 = vand.u32 2147483647, %v2350
    %vm2361 = vcmp.eq.f32.partialorder %v2360, 8.507059e+37
    %v2362 = vand.u32 %v2350, 2147483648
    %v2363 = vor.u32 1.1754944e-38, %v2362
    %v2364 = vsel %vm2361, %v2363, %v2359
    %v2365 = vmul.f32 1.0, %v2364
    %v2366 = vtanh.pop %v2342
    %v2368 = vrot.slane %v2238, 6
    %v2370 = vmul.f32 %v2365, %v2368
    %2372 = vrot.lane.b32.xlu0 %v2366, 64
    %v2373 = vpop.permute.xlu0 %2372
    %v2375 = vmul.f32 %v2365, %v2373
    %2377 = vrot.lane.b32.xlu0 %v2375, 32
    %v2378 = vpop.permute.xlu0 %2377
    %v2380 = vadd.f32 %v2370, %v2378
    %v2381 = vtanh.pop %v2380
    %2383 = vrot.lane.b32.xlu0 %v2381, 64
    %v2384 = vpop.permute.xlu0 %2383
    %v2386 = vmul.f32 %v2365, %v2384
    %v2387 = vsub.f32 0.0, %v2346
    %v2388 = vmul.f32 %v2387, 1.442695
    %v2389 = vpow.pop %v2388
    %v2390 = vadd.f32 %v2389, 1.0
    %v2391 = vrcp.pop %v2390
    %v2392 = vmul.f32 %v2390, %v2391
    %v2393 = vsub.f32 1.0, %v2392
    %v2394 = vmul.f32 %v2391, %v2393
    %v2395 = vadd.f32 %v2391, %v2394
    %vm2396 = vweird.f32 %v2390
    %vm2397 = vweird.f32 %v2391
    %vm2398 = vmor %vm2396, %vm2397
    %v2399 = vsel %vm2398, %v2391, %v2395
    %v2400 = vand.u32 2147483647, %v2390
    %vm2401 = vcmp.eq.f32.partialorder %v2400, 8.507059e+37
    %v2402 = vand.u32 %v2390, 2147483648
    %v2403 = vor.u32 1.1754944e-38, %v2402
    %v2404 = vsel %vm2401, %v2403, %v2399
    %v2405 = vmul.f32 1.0, %v2404
    %v2406 = vtanh.pop %v2346
    %v2408 = vrot.slane %v2278, 2
    %v2410 = vmul.f32 %v2405, %v2408
    %2412 = vrot.lane.b32.xlu0 %v2406, 64
    %v2413 = vpop.permute.xlu0 %2412
    %v2415 = vmul.f32 %v2405, %v2413
    %2417 = vrot.lane.b32.xlu0 %v2415, 32
    %v2418 = vpop.permute.xlu0 %2417
    %v2420 = vadd.f32 %v2410, %v2418
    %v2421 = vtanh.pop %v2420
    %2423 = vrot.lane.b32.xlu0 %v2421, 64
    %v2424 = vpop.permute.xlu0 %2423
    %v2426 = vmul.f32 %v2405, %v2424
    %2428 = vrot.lane.b32.xlu0 %v2386, 32
    %v2429 = vpop.permute.xlu0 %2428
    %v2432 = vrot.slane %v2426, 6
    %2433 = vrot.lane.b32.xlu0 %v2432, 64
    %v2434 = vpop.permute.xlu0 %2433
    %v2436 = vsel %vm155, %v2429, %v2434
    %v2438 = vrot.slane %v2436, 4
    %v2439 = vsel %vm92, %v2438, 0
    %2441 = vmatpush.msra.mxu0 0.0
    %2442 = vmatpush.msra.mxu0 0.0
    %2443 = vmatpush.msra.mxu0 0.0
    %2444 = vmatpush.msra.mxu0 0.0
    %2445 = vmatpush.msra.mxu0 0.0
    %2446 = vmatpush.msra.mxu0 0.0
    %2447 = vmatpush.msra.mxu0 0.0
    %2448 = vmatpush.msra.mxu0 0.0
    %2449 = vmatpush.msra.mxu0 %v1450
    %2450 = vmatpush.msra.mxu0 %v1448
    %2451 = vmatpush.msra.mxu0 %v1446
    %2452 = vmatpush.msra.mxu0 %v1444
    %2453 = vmatpush.msra.mxu0 %v1442
    %2454 = vmatpush.msra.mxu0 %v1440
    %2455 = vmatpush.msra.mxu0 %v1438
    %2456 = vmatpush.msra.mxu0 %v1436
    %2457 = vmatmul.f32.gmra.mxu0 %v2439
    %v2458 = vpop.f32.mrf.mxu0
    %v2459 = vadd.f32 0.0, %v2458
    %2460 = vdwg.mxu0
    %2461 = vmatpush.msra.mxu0 0.0
    %2462 = vmatpush.msra.mxu0 0.0
    %2463 = vmatpush.msra.mxu0 0.0
    %2464 = vmatpush.msra.mxu0 0.0
    %2465 = vmatpush.msra.mxu0 0.0
    %2466 = vmatpush.msra.mxu0 0.0
    %2467 = vmatpush.msra.mxu0 0.0
    %2468 = vmatpush.msra.mxu0 0.0
    %2469 = vmatpush.msra.mxu0 %v1451
    %2470 = vmatpush.msra.mxu0 %v1449
    %2471 = vmatpush.msra.mxu0 %v1447
    %2472 = vmatpush.msra.mxu0 %v1445
    %2473 = vmatpush.msra.mxu0 %v1443
    %2474 = vmatpush.msra.mxu0 %v1441
    %2475 = vmatpush.msra.mxu0 %v1439
    %2476 = vmatpush.msra.mxu0 %v1437
    %2477 = vmatmul.f32.gmra.mxu0 %v2439
    %v2478 = vpop.f32.mrf.mxu0
    %v2479 = vadd.f32 0.0, %v2478
    %2480 = vdwg.mxu0
    %v2482 = vrot.slane %v2459, 2
    %v2484 = vadd.f32 %v1397, %v2482
    %v2485 = vadd.f32 %v1417, %v2479
    %v2486 = vsub.f32 0.0, %v2484
    %v2487 = vmul.f32 %v2486, 1.442695
    %v2488 = vpow.pop %v2487
    %v2489 = vadd.f32 %v2488, 1.0
    %v2490 = vrcp.pop %v2489
    %v2491 = vmul.f32 %v2489, %v2490
    %v2492 = vsub.f32 1.0, %v2491
    %v2493 = vmul.f32 %v2490, %v2492
    %v2494 = vadd.f32 %v2490, %v2493
    %vm2495 = vweird.f32 %v2489
    %vm2496 = vweird.f32 %v2490
    %vm2497 = vmor %vm2495, %vm2496
    %v2498 = vsel %vm2497, %v2490, %v2494
    %v2499 = vand.u32 2147483647, %v2489
    %vm2500 = vcmp.eq.f32.partialorder %v2499, 8.507059e+37
    %v2501 = vand.u32 %v2489, 2147483648
    %v2502 = vor.u32 1.1754944e-38, %v2501
    %v2503 = vsel %vm2500, %v2502, %v2498
    %v2504 = vmul.f32 1.0, %v2503
    %v2505 = vtanh.pop %v2484
    %v2507 = vrot.slane %v2380, 6
    %v2509 = vmul.f32 %v2504, %v2507
    %2511 = vrot.lane.b32.xlu0 %v2505, 64
    %v2512 = vpop.permute.xlu0 %2511
    %v2514 = vmul.f32 %v2504, %v2512
    %2516 = vrot.lane.b32.xlu0 %v2514, 32
    %v2517 = vpop.permute.xlu0 %2516
    %v2519 = vadd.f32 %v2509, %v2517
    %v2520 = vtanh.pop %v2519
    %2522 = vrot.lane.b32.xlu0 %v2520, 64
    %v2523 = vpop.permute.xlu0 %2522
    %v2525 = vmul.f32 %v2504, %v2523
    %v2526 = vsub.f32 0.0, %v2485
    %v2527 = vmul.f32 %v2526, 1.442695
    %v2528 = vpow.pop %v2527
    %v2529 = vadd.f32 %v2528, 1.0
    %v2530 = vrcp.pop %v2529
    %v2531 = vmul.f32 %v2529, %v2530
    %v2532 = vsub.f32 1.0, %v2531
    %v2533 = vmul.f32 %v2530, %v2532
    %v2534 = vadd.f32 %v2530, %v2533
    %vm2535 = vweird.f32 %v2529
    %vm2536 = vweird.f32 %v2530
    %vm2537 = vmor %vm2535, %vm2536
    %v2538 = vsel %vm2537, %v2530, %v2534
    %v2539 = vand.u32 2147483647, %v2529
    %vm2540 = vcmp.eq.f32.partialorder %v2539, 8.507059e+37
    %v2541 = vand.u32 %v2529, 2147483648
    %v2542 = vor.u32 1.1754944e-38, %v2541
    %v2543 = vsel %vm2540, %v2542, %v2538
    %v2544 = vmul.f32 1.0, %v2543
    %v2545 = vtanh.pop %v2485
    %v2547 = vrot.slane %v2420, 2
    %v2549 = vmul.f32 %v2544, %v2547
    %2551 = vrot.lane.b32.xlu0 %v2545, 64
    %v2552 = vpop.permute.xlu0 %2551
    %v2554 = vmul.f32 %v2544, %v2552
    %2556 = vrot.lane.b32.xlu0 %v2554, 32
    %v2557 = vpop.permute.xlu0 %2556
    %v2559 = vadd.f32 %v2549, %v2557
    %v2560 = vtanh.pop %v2559
    %2562 = vrot.lane.b32.xlu0 %v2560, 64
    %v2563 = vpop.permute.xlu0 %2562
    %v2565 = vmul.f32 %v2544, %v2563
    %v2566 = vadd.f32 %v1343, %v2525
    %v2568 = vrot.slane %v2565, 2
    %v2570 = vadd.f32 %v2566, %v2568
    %v2571 = vadd.f32 %v1540, %v2565
    %v2572 = vadd.f32 %v1683, %v2426
    %v2573 = vadd.f32 %v1825, %v2284
    %v2574 = vadd.f32 %v1964, %v2143
    %v2575 = vadd.f32 %v2103, %v2004
    %v2576 = vadd.f32 %v2244, %v1865
    %v2577 = vadd.f32 %v2386, %v1723
    %v2578 = vadd.f32 %v2525, %v1582
    %2580 = vrot.lane.b32.xlu0 %v2571, 32
    %v2581 = vpop.permute.xlu0 %2580
    %v2584 = vrot.slane %v2572, 2
    %2585 = vrot.lane.b32.xlu0 %v2584, 64
    %v2586 = vpop.permute.xlu0 %2585
    %v2589 = vrot.slane %v2573, 4
    %2590 = vrot.lane.b32.xlu0 %v2589, 96
    %v2591 = vpop.permute.xlu0 %2590
    %v2594 = vrot.slane %v2574, 6
    %2597 = vrot.lane.b32.xlu0 %v2575, 32
    %v2598 = vpop.permute.xlu0 %2597
    %v2601 = vrot.slane %v2576, 2
    %2602 = vrot.lane.b32.xlu0 %v2601, 64
    %v2603 = vpop.permute.xlu0 %2602
    %v2606 = vrot.slane %v2577, 4
    %2607 = vrot.lane.b32.xlu0 %v2606, 96
    %v2608 = vpop.permute.xlu0 %2607
    %v2611 = vrot.slane %v2578, 6
    %v2613 = vsel %vm155, %v2581, %v2586
    %v2614 = vsel %vm92, %v2613, %v2591
    %vm2615 = vcmask 785408
    %v2616 = vsel %vm2615, %v2614, %v2594
    %v2617 = vsel %vm155, %v2598, %v2603
    %v2618 = vsel %vm92, %v2617, %v2608
    %v2619 = vsel %vm2615, %v2618, %v2611
    %v2620 = vld [vmem:[%s6] sm:$0xff]
    %v2621 = vld [vmem:[%s6 + $0x8] sm:$0xff]
    %v2622 = vld [vmem:[%s6 + $0x10] sm:$0xff]
    %v2623 = vld [vmem:[%s6 + $0x18] sm:$0xff]
    %v2624 = vld [vmem:[%s7] sm:$0x1]
    %v2626 = vperm.slane %v2624, 0
    %v2629 = vrot.slane %v2570, 6
    %2630 = vrot.lane.b32.xlu0 %v2629, 32
    %v2631 = vpop.permute.xlu0 %2630
    %v2632 = vsel %vm155, %v2631, 0
    %2634 = vmatpush.msra.mxu0 0.0
    %2635 = vmatpush.msra.mxu0 0.0
    %2636 = vmatpush.msra.mxu0 0.0
    %2637 = vmatpush.msra.mxu0 0.0
    %2638 = vmatpush.msra.mxu0 0.0
    %2639 = vmatpush.msra.mxu0 0.0
    %2640 = vmatpush.msra.mxu0 0.0
    %2641 = vmatpush.msra.mxu0 0.0
    %2642 = vmatpush.msra.mxu0 0.0
    %2643 = vmatpush.msra.mxu0 0.0
    %2644 = vmatpush.msra.mxu0 0.0
    %2645 = vmatpush.msra.mxu0 0.0
    %2646 = vmatpush.msra.mxu0 %v2623
    %2647 = vmatpush.msra.mxu0 %v2622
    %2648 = vmatpush.msra.mxu0 %v2621
    %2649 = vmatpush.msra.mxu0 %v2620
    %2650 = vmatmul.f32.gmra.mxu0 %v2632
    %v2651 = vpop.f32.mrf.mxu0
    %v2652 = vadd.f32 %v2626, %v2651
    %2653 = vdwg.mxu0
    %v2654 = vmax.f32 %v2652, 0.0
    %2656 = vrot.lane.b32.xlu0 %v2654, 32
    %v2657 = vpop.permute.xlu0 %2656
    %2659 = vrot.lane.b32.xlu0 %v2654, 64
    %v2660 = vpop.permute.xlu0 %2659
    %2662 = vrot.lane.b32.xlu0 %v2654, 96
    %v2663 = vpop.permute.xlu0 %2662
    %v2665 = vsel %vm155, %v2654, %v2657
    %v2666 = vsel %vm92, %v2665, %v2660
    %v2667 = vsel %vm2615, %v2666, %v2663
    %v2668 = vlaneseq
    %v2669 = vshrl.u32 %v2668, 7
    %v2670 = vadd.s32 %v2669, 8
    %v2671 = vadd.s32 %v2669, 16
    %v2672 = vadd.s32 %v2669, 24
    %v2673 = vadd.s32 %v2669, 32
    %v2674 = vadd.s32 %v2669, 40
    %v2675 = vadd.s32 %v2669, 48
    %v2676 = vadd.s32 %v2669, 56
    %v2677 = vadd.s32 %v2669, 64
    %v2678 = vadd.s32 %v2669, 72
    %v2679 = vadd.s32 %v2669, 80
    %v2680 = vadd.s32 %v2669, 88
    %v2681 = vadd.s32 %v2669, 96
    %v2682 = vadd.s32 %v2669, 104
    %v2683 = vadd.s32 %v2669, 112
    %v2684 = vadd.s32 %v2669, 120
    %v2685 = vadd.s32 %v2669, 128
    %v2686 = vadd.s32 %v2669, 136
    %v2687 = vadd.s32 %v2669, 144
    %v2688 = vadd.s32 %v2669, 152
    %v2689 = vadd.s32 %v2669, 160
    %v2690 = vadd.s32 %v2669, 168
    %v2691 = vadd.s32 %v2669, 176
    %v2692 = vadd.s32 %v2669, 184
    %v2693 = vadd.s32 %v2669, 192
    %v2694 = vadd.s32 %v2669, 200
    %v2695 = vadd.s32 %v2669, 208
    %v2696 = vadd.s32 %v2669, 216
    %v2697 = vadd.s32 %v2669, 224
    %v2698 = vadd.s32 %v2669, 232
    %v2699 = vadd.s32 %v2669, 240
    %v2700 = vadd.s32 %v2669, 248
    %v2701 = vlaneseq
    %v2702 = vand.u32 %v2701, 127
    %v2703 = vmul.u32 %v2702, 32
    %vm2704 = vcmp.ge.s32.totalorder %v2669, %v2703
    %vm2705 = vcmp.ge.s32.totalorder %v2670, %v2703
    %vm2706 = vcmp.ge.s32.totalorder %v2671, %v2703
    %vm2707 = vcmp.ge.s32.totalorder %v2672, %v2703
    %vm2708 = vcmp.ge.s32.totalorder %v2673, %v2703
    %vm2709 = vcmp.ge.s32.totalorder %v2674, %v2703
    %vm2710 = vcmp.ge.s32.totalorder %v2675, %v2703
    %vm2711 = vcmp.ge.s32.totalorder %v2676, %v2703
    %vm2712 = vcmp.ge.s32.totalorder %v2677, %v2703
    %vm2713 = vcmp.ge.s32.totalorder %v2678, %v2703
    %vm2714 = vcmp.ge.s32.totalorder %v2679, %v2703
    %vm2715 = vcmp.ge.s32.totalorder %v2680, %v2703
    %vm2716 = vcmp.ge.s32.totalorder %v2681, %v2703
    %vm2717 = vcmp.ge.s32.totalorder %v2682, %v2703
    %vm2718 = vcmp.ge.s32.totalorder %v2683, %v2703
    %vm2719 = vcmp.ge.s32.totalorder %v2684, %v2703
    %vm2720 = vcmp.ge.s32.totalorder %v2685, %v2703
    %vm2721 = vcmp.ge.s32.totalorder %v2686, %v2703
    %vm2722 = vcmp.ge.s32.totalorder %v2687, %v2703
    %vm2723 = vcmp.ge.s32.totalorder %v2688, %v2703
    %vm2724 = vcmp.ge.s32.totalorder %v2689, %v2703
    %vm2725 = vcmp.ge.s32.totalorder %v2690, %v2703
    %vm2726 = vcmp.ge.s32.totalorder %v2691, %v2703
    %vm2727 = vcmp.ge.s32.totalorder %v2692, %v2703
    %vm2728 = vcmp.ge.s32.totalorder %v2693, %v2703
    %vm2729 = vcmp.ge.s32.totalorder %v2694, %v2703
    %vm2730 = vcmp.ge.s32.totalorder %v2695, %v2703
    %vm2731 = vcmp.ge.s32.totalorder %v2696, %v2703
    %vm2732 = vcmp.ge.s32.totalorder %v2697, %v2703
    %vm2733 = vcmp.ge.s32.totalorder %v2698, %v2703
    %vm2734 = vcmp.ge.s32.totalorder %v2699, %v2703
    %vm2735 = vcmp.ge.s32.totalorder %v2700, %v2703
    %v2736 = vadd.s32 %v2702, 1
    %v2737 = vmul.u32 %v2736, 32
    %vm2738 = vcmp.lt.s32.totalorder %v2669, %v2737
    %vm2739 = vcmp.lt.s32.totalorder %v2670, %v2737
    %vm2740 = vcmp.lt.s32.totalorder %v2671, %v2737
    %vm2741 = vcmp.lt.s32.totalorder %v2672, %v2737
    %vm2742 = vcmp.lt.s32.totalorder %v2673, %v2737
    %vm2743 = vcmp.lt.s32.totalorder %v2674, %v2737
    %vm2744 = vcmp.lt.s32.totalorder %v2675, %v2737
    %vm2745 = vcmp.lt.s32.totalorder %v2676, %v2737
    %vm2746 = vcmp.lt.s32.totalorder %v2677, %v2737
    %vm2747 = vcmp.lt.s32.totalorder %v2678, %v2737
    %vm2748 = vcmp.lt.s32.totalorder %v2679, %v2737
    %vm2749 = vcmp.lt.s32.totalorder %v2680, %v2737
    %vm2750 = vcmp.lt.s32.totalorder %v2681, %v2737
    %vm2751 = vcmp.lt.s32.totalorder %v2682, %v2737
    %vm2752 = vcmp.lt.s32.totalorder %v2683, %v2737
    %vm2753 = vcmp.lt.s32.totalorder %v2684, %v2737
    %vm2754 = vcmp.lt.s32.totalorder %v2685, %v2737
    %vm2755 = vcmp.lt.s32.totalorder %v2686, %v2737
    %vm2756 = vcmp.lt.s32.totalorder %v2687, %v2737
    %vm2757 = vcmp.lt.s32.totalorder %v2688, %v2737
    %vm2758 = vcmp.lt.s32.totalorder %v2689, %v2737
    %vm2759 = vcmp.lt.s32.totalorder %v2690, %v2737
    %vm2760 = vcmp.lt.s32.totalorder %v2691, %v2737
    %vm2761 = vcmp.lt.s32.totalorder %v2692, %v2737
    %vm2762 = vcmp.lt.s32.totalorder %v2693, %v2737
    %vm2763 = vcmp.lt.s32.totalorder %v2694, %v2737
    %vm2764 = vcmp.lt.s32.totalorder %v2695, %v2737
    %vm2765 = vcmp.lt.s32.totalorder %v2696, %v2737
    %vm2766 = vcmp.lt.s32.totalorder %v2697, %v2737
    %vm2767 = vcmp.lt.s32.totalorder %v2698, %v2737
    %vm2768 = vcmp.lt.s32.totalorder %v2699, %v2737
    %vm2769 = vcmp.lt.s32.totalorder %v2700, %v2737
    %vm2770 = vmand %vm2704, %vm2738
    %vm2771 = vmand %vm2705, %vm2739
    %vm2772 = vmand %vm2706, %vm2740
    %vm2773 = vmand %vm2707, %vm2741
    %vm2774 = vmand %vm2708, %vm2742
    %vm2775 = vmand %vm2709, %vm2743
    %vm2776 = vmand %vm2710, %vm2744
    %vm2777 = vmand %vm2711, %vm2745
    %vm2778 = vmand %vm2712, %vm2746
    %vm2779 = vmand %vm2713, %vm2747
    %vm2780 = vmand %vm2714, %vm2748
    %vm2781 = vmand %vm2715, %vm2749
    %vm2782 = vmand %vm2716, %vm2750
    %vm2783 = vmand %vm2717, %vm2751
    %vm2784 = vmand %vm2718, %vm2752
    %vm2785 = vmand %vm2719, %vm2753
    %vm2786 = vmand %vm2720, %vm2754
    %vm2787 = vmand %vm2721, %vm2755
    %vm2788 = vmand %vm2722, %vm2756
    %vm2789 = vmand %vm2723, %vm2757
    %vm2790 = vmand %vm2724, %vm2758
    %vm2791 = vmand %vm2725, %vm2759
    %vm2792 = vmand %vm2726, %vm2760
    %vm2793 = vmand %vm2727, %vm2761
    %vm2794 = vmand %vm2728, %vm2762
    %vm2795 = vmand %vm2729, %vm2763
    %vm2796 = vmand %vm2730, %vm2764
    %vm2797 = vmand %vm2731, %vm2765
    %vm2798 = vmand %vm2732, %vm2766
    %vm2799 = vmand %vm2733, %vm2767
    %vm2800 = vmand %vm2734, %vm2768
    %vm2801 = vmand %vm2735, %vm2769
    %v2802 = vsel %vm2770, 1, 0
    %v2803 = vsel %vm2771, 1, 0
    %v2804 = vsel %vm2772, 1, 0
    %v2805 = vsel %vm2773, 1, 0
    %v2806 = vsel %vm2774, 1, 0
    %v2807 = vsel %vm2775, 1, 0
    %v2808 = vsel %vm2776, 1, 0
    %v2809 = vsel %vm2777, 1, 0
    %v2810 = vsel %vm2778, 1, 0
    %v2811 = vsel %vm2779, 1, 0
    %v2812 = vsel %vm2780, 1, 0
    %v2813 = vsel %vm2781, 1, 0
    %v2814 = vsel %vm2782, 1, 0
    %v2815 = vsel %vm2783, 1, 0
    %v2816 = vsel %vm2784, 1, 0
    %v2817 = vsel %vm2785, 1, 0
    %v2818 = vsel %vm2786, 1, 0
    %v2819 = vsel %vm2787, 1, 0
    %v2820 = vsel %vm2788, 1, 0
    %v2821 = vsel %vm2789, 1, 0
    %v2822 = vsel %vm2790, 1, 0
    %v2823 = vsel %vm2791, 1, 0
    %v2824 = vsel %vm2792, 1, 0
    %v2825 = vsel %vm2793, 1, 0
    %v2826 = vsel %vm2794, 1, 0
    %v2827 = vsel %vm2795, 1, 0
    %v2828 = vsel %vm2796, 1, 0
    %v2829 = vsel %vm2797, 1, 0
    %v2830 = vsel %vm2798, 1, 0
    %v2831 = vsel %vm2799, 1, 0
    %v2832 = vsel %vm2800, 1, 0
    %v2833 = vsel %vm2801, 1, 0
    %v2834 = vcvt.s32.f32 %v2802
    %v2835 = vcvt.s32.f32 %v2803
    %v2836 = vcvt.s32.f32 %v2804
    %v2837 = vcvt.s32.f32 %v2805
    %v2838 = vcvt.s32.f32 %v2806
    %v2839 = vcvt.s32.f32 %v2807
    %v2840 = vcvt.s32.f32 %v2808
    %v2841 = vcvt.s32.f32 %v2809
    %v2842 = vcvt.s32.f32 %v2810
    %v2843 = vcvt.s32.f32 %v2811
    %v2844 = vcvt.s32.f32 %v2812
    %v2845 = vcvt.s32.f32 %v2813
    %v2846 = vcvt.s32.f32 %v2814
    %v2847 = vcvt.s32.f32 %v2815
    %v2848 = vcvt.s32.f32 %v2816
    %v2849 = vcvt.s32.f32 %v2817
    %v2850 = vcvt.s32.f32 %v2818
    %v2851 = vcvt.s32.f32 %v2819
    %v2852 = vcvt.s32.f32 %v2820
    %v2853 = vcvt.s32.f32 %v2821
    %v2854 = vcvt.s32.f32 %v2822
    %v2855 = vcvt.s32.f32 %v2823
    %v2856 = vcvt.s32.f32 %v2824
    %v2857 = vcvt.s32.f32 %v2825
    %v2858 = vcvt.s32.f32 %v2826
    %v2859 = vcvt.s32.f32 %v2827
    %v2860 = vcvt.s32.f32 %v2828
    %v2861 = vcvt.s32.f32 %v2829
    %v2862 = vcvt.s32.f32 %v2830
    %v2863 = vcvt.s32.f32 %v2831
    %v2864 = vcvt.s32.f32 %v2832
    %v2865 = vcvt.s32.f32 %v2833
    %v2866 = vmul.f32 %v2616, %v2667
    %v2867 = vmul.f32 %v2619, %v2667
    %2868 = vmatpush.msra.mxu0 %v2849
    %2869 = vmatpush.msra.mxu0 %v2848
    %2870 = vmatpush.msra.mxu0 %v2847
    %2871 = vmatpush.msra.mxu0 %v2846
    %2872 = vmatpush.msra.mxu0 %v2845
    %2873 = vmatpush.msra.mxu0 %v2844
    %2874 = vmatpush.msra.mxu0 %v2843
    %2875 = vmatpush.msra.mxu0 %v2842
    %2876 = vmatpush.msra.mxu0 %v2841
    %2877 = vmatpush.msra.mxu0 %v2840
    %2878 = vmatpush.msra.mxu0 %v2839
    %2879 = vmatpush.msra.mxu0 %v2838
    %2880 = vmatpush.msra.mxu0 %v2837
    %2881 = vmatpush.msra.mxu0 %v2836
    %2882 = vmatpush.msra.mxu0 %v2835
    %2883 = vmatpush.msra.mxu0 %v2834
    %2884 = vmatmul.f32.gmra.mxu0 %v2866
    %v2885 = vpop.f32.mrf.mxu0
    %v2886 = vadd.f32 0.0, %v2885
    %2887 = vdwg.mxu0
    %2888 = vmatpush.msra.mxu0 %v2865
    %2889 = vmatpush.msra.mxu0 %v2864
    %2890 = vmatpush.msra.mxu0 %v2863
    %2891 = vmatpush.msra.mxu0 %v2862
    %2892 = vmatpush.msra.mxu0 %v2861
    %2893 = vmatpush.msra.mxu0 %v2860
    %2894 = vmatpush.msra.mxu0 %v2859
    %2895 = vmatpush.msra.mxu0 %v2858
    %2896 = vmatpush.msra.mxu0 %v2857
    %2897 = vmatpush.msra.mxu0 %v2856
    %2898 = vmatpush.msra.mxu0 %v2855
    %2899 = vmatpush.msra.mxu0 %v2854
    %2900 = vmatpush.msra.mxu0 %v2853
    %2901 = vmatpush.msra.mxu0 %v2852
    %2902 = vmatpush.msra.mxu0 %v2851
    %2903 = vmatpush.msra.mxu0 %v2850
    %2904 = vmatmul.f32.gmra.mxu0 %v2867
    %v2905 = vpop.f32.mrf.mxu0
    %v2906 = vadd.f32 %v2886, %v2905
    %2907 = vdwg.mxu0
    %vm2908 = vcmask 58368
    %v2909 = vsel %vm2908, %v2906, -inf
    %2910 = vmax.xlane.f32.xlu0 %v2909
    %v2911 = vpop.xlane.xlu0 %2910
    %v2912 = vsub.f32 %v2906, %v2911
    %v2913 = vmul.f32 %v2912, 1.442695
    %v2914 = vpow.pop %v2913
    %v2915 = vsel %vm2908, %v2914, 0.0
    %2916 = vadd.xlane.f32.xlu0 %v2915
    %v2917 = vpop.xlane.xlu0 %2916
    %v2918 = vrcp.pop %v2917
    %v2919 = vmul.f32 %v2917, %v2918
    %v2920 = vsub.f32 1.0, %v2919
    %v2921 = vmul.f32 %v2918, %v2920
    %v2922 = vadd.f32 %v2918, %v2921
    %vm2923 = vweird.f32 %v2917
    %vm2924 = vweird.f32 %v2918
    %vm2925 = vmor %vm2923, %vm2924
    %v2926 = vsel %vm2925, %v2918, %v2922
    %v2927 = vand.u32 2147483647, %v2917
    %vm2928 = vcmp.eq.f32.partialorder %v2927, 8.507059e+37
    %v2929 = vand.u32 %v2917, 2147483648
    %v2930 = vor.u32 1.1754944e-38, %v2929
    %v2931 = vsel %vm2928, %v2930, %v2926
    %v2932 = vmul.f32 %v2914, %v2931
    %2934 = vset.pattern.permute.xlu0 0
    %2935 = vperm.xlu0 %2934, %v2932
    %v2936 = vpop.permute.xlu0 %2935
    %v2938 = vmul.f32 %v2936, %v2571
    %v2939 = vadd.f32 %v2938, 0.0
    %2940 = vset.pattern.permute.xlu0 1
    %2941 = vperm.xlu0 %2940, %v2932
    %v2942 = vpop.permute.xlu0 %2941
    %2944 = vrot.lane.b32.xlu0 %v2584, 32
    %v2945 = vpop.permute.xlu0 %2944
    %v2947 = vmul.f32 %v2942, %v2945
    %2949 = vrot.lane.b32.xlu0 %v2947, 96
    %v2950 = vpop.permute.xlu0 %2949
    %v2952 = vadd.f32 %v2939, %v2950
    %2953 = vset.pattern.permute.xlu0 2
    %2954 = vperm.xlu0 %2953, %v2932
    %v2955 = vpop.permute.xlu0 %2954
    %2957 = vrot.lane.b32.xlu0 %v2589, 32
    %v2958 = vpop.permute.xlu0 %2957
    %v2960 = vmul.f32 %v2955, %v2958
    %2962 = vrot.lane.b32.xlu0 %v2960, 96
    %v2963 = vpop.permute.xlu0 %2962
    %v2965 = vadd.f32 %v2952, %v2963
    %2966 = vset.pattern.permute.xlu0 3
    %2967 = vperm.xlu0 %2966, %v2932
    %v2968 = vpop.permute.xlu0 %2967
    %2970 = vrot.lane.b32.xlu0 %v2594, 32
    %v2971 = vpop.permute.xlu0 %2970
    %v2973 = vmul.f32 %v2968, %v2971
    %2975 = vrot.lane.b32.xlu0 %v2973, 96
    %v2976 = vpop.permute.xlu0 %2975
    %v2978 = vadd.f32 %v2965, %v2976
    %2979 = vset.pattern.permute.xlu0 4
    %2980 = vperm.xlu0 %2979, %v2932
    %v2981 = vpop.permute.xlu0 %2980
    %v2983 = vmul.f32 %v2981, %v2575
    %v2984 = vadd.f32 %v2978, %v2983
    %2985 = vset.pattern.permute.xlu0 5
    %2986 = vperm.xlu0 %2985, %v2932
    %v2987 = vpop.permute.xlu0 %2986
    %2989 = vrot.lane.b32.xlu0 %v2601, 32
    %v2990 = vpop.permute.xlu0 %2989
    %v2992 = vmul.f32 %v2987, %v2990
    %2994 = vrot.lane.b32.xlu0 %v2992, 96
    %v2995 = vpop.permute.xlu0 %2994
    %v2997 = vadd.f32 %v2984, %v2995
    %2998 = vset.pattern.permute.xlu0 6
    %2999 = vperm.xlu0 %2998, %v2932
    %v3000 = vpop.permute.xlu0 %2999
    %3002 = vrot.lane.b32.xlu0 %v2606, 32
    %v3003 = vpop.permute.xlu0 %3002
    %v3005 = vmul.f32 %v3000, %v3003
    %3007 = vrot.lane.b32.xlu0 %v3005, 96
    %v3008 = vpop.permute.xlu0 %3007
    %v3010 = vadd.f32 %v2997, %v3008
    %3011 = vset.pattern.permute.xlu0 7
    %3012 = vperm.xlu0 %3011, %v2932
    %v3013 = vpop.permute.xlu0 %3012
    %3015 = vrot.lane.b32.xlu0 %v2611, 32
    %v3016 = vpop.permute.xlu0 %3015
    %v3018 = vmul.f32 %v3013, %v3016
    %3020 = vrot.lane.b32.xlu0 %v3018, 96
    %v3021 = vpop.permute.xlu0 %3020
    %v3023 = vadd.f32 %v3010, %v3021
    %v3024 = vld [vmem:[%s8] sm:$0xff]
    %v3025 = vld [vmem:[%s8 + $0x8] sm:$0xff]
    %v3026 = vld [vmem:[%s8 + $0x10] sm:$0xff]
    %v3027 = vld [vmem:[%s8 + $0x18] sm:$0xff]
    %v3028 = vld [vmem:[%s9] sm:$0x1]
    %v3030 = vperm.slane %v3028, 0
    %3033 = vrot.lane.b32.xlu0 %v3023, 32
    %v3034 = vpop.permute.xlu0 %3033
    %v3035 = vsel %vm155, %v3034, 0
    %3037 = vmatpush.msra.mxu0 0.0
    %3038 = vmatpush.msra.mxu0 0.0
    %3039 = vmatpush.msra.mxu0 0.0
    %3040 = vmatpush.msra.mxu0 0.0
    %3041 = vmatpush.msra.mxu0 0.0
    %3042 = vmatpush.msra.mxu0 0.0
    %3043 = vmatpush.msra.mxu0 0.0
    %3044 = vmatpush.msra.mxu0 0.0
    %3045 = vmatpush.msra.mxu0 0.0
    %3046 = vmatpush.msra.mxu0 0.0
    %3047 = vmatpush.msra.mxu0 0.0
    %3048 = vmatpush.msra.mxu0 0.0
    %3049 = vmatpush.msra.mxu0 %v3027
    %3050 = vmatpush.msra.mxu0 %v3026
    %3051 = vmatpush.msra.mxu0 %v3025
    %3052 = vmatpush.msra.mxu0 %v3024
    %3053 = vmatmul.f32.gmra.mxu0 %v3035
    %v3054 = vpop.f32.mrf.mxu0
    %v3055 = vadd.f32 %v3030, %v3054
    %3056 = vdwg.mxu0
    %vm3057 = vcmask 115712
    %v3058 = vsel %vm3057, %v3055, -inf
    %3059 = vmax.xlane.f32.xlu0 %v3058
    %v3060 = vpop.xlane.xlu0 %3059
    %v3061 = vsub.f32 %v3055, %v3060
    %v3062 = vmul.f32 %v3061, 1.442695
    %v3063 = vpow.pop %v3062
    %v3064 = vsel %vm3057, %v3063, 0.0
    %3065 = vadd.xlane.f32.xlu0 %v3064
    %v3066 = vpop.xlane.xlu0 %3065
    %v3067 = vrcp.pop %v3066
    %v3068 = vmul.f32 %v3066, %v3067
    %v3069 = vsub.f32 1.0, %v3068
    %v3070 = vmul.f32 %v3067, %v3069
    %v3071 = vadd.f32 %v3067, %v3070
    %vm3072 = vweird.f32 %v3066
    %vm3073 = vweird.f32 %v3067
    %vm3074 = vmor %vm3072, %vm3073
    %v3075 = vsel %vm3074, %v3067, %v3071
    %v3076 = vand.u32 2147483647, %v3066
    %vm3077 = vcmp.eq.f32.partialorder %v3076, 8.507059e+37
    %v3078 = vand.u32 %v3066, 2147483648
    %v3079 = vor.u32 1.1754944e-38, %v3078
    %v3080 = vsel %vm3077, %v3079, %v3075
    %v3081 = vmul.f32 %v3063, %v3080
    %3082 = vst.msk [vmem:[#allocation8] sm:$0x3] %vm3057, %v3081
    // Predicated region
    $region50: #{bilstm_forward.1} parent=1 // pred_check
      _
    $region51: #{bilstm_forward.1} parent=1 // pred_check_branch
      %3084 = sbr.rel (0) target = $region53
    $region52: #{bilstm_forward.1} parent=1 // pred_region
      %3086 = vsyncadd [#allocation5], 0
      %s3088 = sshll.u32 [#allocation8], 4
      %s3089 = int_to_ptr.vmem [resolvable:$true] %s3088
      %s3090 = sshll.u32 %s10, 4
      %s3091 = int_to_ptr.hbm [resolvable:$true] %s3090
      %3093 = dma.vmem_to_hbm [thread:$0]  %s3089, 32, %s3091, [#allocation5]
    $region53: #{bilstm_forward.1} parent=1 // pred_fallthru
      _
    // Predicated region
    $region54: #{bilstm_forward.1} parent=1 // pred_check
      _
    $region55: #{bilstm_forward.1} parent=1 // pred_check_branch
      %3095 = sbr.rel (0) target = $region57
    $region56: #{bilstm_forward.1} parent=1 // pred_region
      %3097 = dma.done [#allocation5], 32
    $region57: #{bilstm_forward.1} parent=1 // pred_fallthru
      _
    %3098 = vsyncpa [#allocation4], 1
    %3099 = vsyncpa [#allocation7], 1
    %3100 = vsyncpa [#allocation5], 1

</llo_original>
